<compile_context>
chip_gen: v7x
topology: tpu7x:2x2x1
jax: 0.10.0
libtpu: 0.0.40
codegen_flags: <defaults>
</compile_context>

<pallas_src>
import numpy as np
import jax
import jax.numpy as jnp
from jax.experimental import pallas as pl
from jax.experimental.pallas import tpu as pltpu


def first_residual_d_forward(x_nchw, params):
    """x_nchw: (N, Cin, H, W) float32 (PyTorch layout). Returns (N, Cout, Ho, Wo)."""
    w1, b1, w2, b2, ws, bs = params
    N, Cin, H, W = x_nchw.shape
    Cout = w1.shape[0]
    assert H % 2 == 0 and W % 2 == 0, "even spatial dims expected"
    Wp = W + 2                       # padded row length
    Ho, Wo = H // 2 + 1, W // 2 + 1
    L = H * Wp                       # compute window: padded rows 1..H, all Wp columns
    Lx = (H + 2) * Wp + 2            # padded-flat input, zero-extended by 1 lane each side
    offs = [dy * Wp + dx for dy in range(3) for dx in range(3)]   # 3x3 tap lane offsets

    # ---- operand prep (tiny; weights/pooling matrices would be built once at init) ----
    # Input: spatial zero-pad, flatten rows, extend by 1 zero lane each side, cast bf16.
    # (One small fused XLA pad; the NCHW->NHWC transposes of the old version are gone.)
    xe = jnp.pad(x_nchw.astype(jnp.float32), ((0, 0), (0, 0), (1, 1), (1, 1)))
    xe = xe.reshape(N, Cin, (H + 2) * Wp)
    xe = jnp.pad(xe, ((0, 0), (0, 0), (1, 1))).astype(jnp.bfloat16)          # (N, Cin, Lx)

    w1k = jnp.transpose(w1, (2, 3, 0, 1)).reshape(9, Cout, Cin).astype(jnp.bfloat16)
    w2k = jnp.transpose(w2, (2, 3, 0, 1)).reshape(9, Cout, Cout).astype(jnp.bfloat16)
    wsk = ws.reshape(Cout, Cin).astype(jnp.bfloat16)
    b1r = b1.reshape(Cout, 1).astype(jnp.float32)
    b2s = (b2 + bs).reshape(Cout, 1).astype(jnp.float32)     # conv2 + shortcut bias fused

    # Border-column mask over the compute window (cols 0 / W+1 of each padded row).
    col = np.arange(L) % Wp
    maskw = jnp.asarray(((col != 0) & (col != Wp - 1)).astype(np.float32).reshape(1, L))

    # W-direction pooling matrix (padded cols -> Wo), 1/4 folded in; linear in W.
    qwp_np = np.zeros((Wp, Wo), np.float32)
    for qo in range(Wo):
        for j in (2 * qo, 2 * qo + 1):
            if 1 <= j <= W:
                qwp_np[j, qo] = 0.25
    qwp = jnp.asarray(qwp_np)

    cdims = (((1,), (0,)), ((), ()))

    def kernel(xe_ref, w1_ref, w2_ref, ws_ref, b1_ref, b2s_ref, mask_ref, qwp_ref,
               out_ref):
        xe_b = xe_ref[0]                                        # (Cin, Lx) bf16

        # ---- conv1 (3x3, pad 1): 9 tiny lane-dense matmuls accumulated in f32 --------
        acc = jax.lax.dot_general(w1_ref[0], xe_b[:, offs[0]:offs[0] + L], cdims,
                                  preferred_element_type=jnp.float32)
        for t in range(1, 9):
            o = offs[t]
            acc = acc + jax.lax.dot_general(w1_ref[t], xe_b[:, o:o + L], cdims,
                                            preferred_element_type=jnp.float32)
        # bias + ReLU (f32), then zero the padded border columns so h1 carries conv2's
        # zero padding with it (no padded VMEM scratch / halo zeroing needed).
        h1 = jnp.maximum(acc + b1_ref[...], 0.0) * mask_ref[...]        # (Cout, L) f32
        zpad = jnp.zeros((Cout, Wp + 1), jnp.bfloat16)
        h1e = jnp.concatenate([zpad, h1.astype(jnp.bfloat16), zpad], axis=1)  # (Cout, Lx)

        # ---- conv2 (3x3) + fused 1x1 shortcut, accumulated in f32 --------------------
        acc2 = jax.lax.dot_general(ws_ref[...], xe_b[:, Wp + 1:Wp + 1 + L], cdims,
                                   preferred_element_type=jnp.float32)
        for t in range(9):
            o = offs[t]
            acc2 = acc2 + jax.lax.dot_general(w2_ref[t], h1e[:, o:o + L], cdims,
                                              preferred_element_type=jnp.float32)
        r = acc2 + b2s_ref[...]                                  # (Cout, L) f32

        # ---- fused AvgPool2d(2,2,padding=1) of (residual + shortcut) -----------------
        # Per output row: VPU-add the (<=2) contributing conv rows (lane slices of r),
        # then a tiny (Wp, Wo) matmul selects/averages the W windows (border cols get
        # weight 0, pad rows/cols contribute 0 but divisor stays 4).
        qwp_v = qwp_ref[...]
        rows = []
        for po in range(Ho):
            lo, hi = 2 * po - 1, 2 * po
            if lo < 0:
                hsum = r[:, hi * Wp:(hi + 1) * Wp]
            elif hi > H - 1:
                hsum = r[:, lo * Wp:(lo + 1) * Wp]
            else:
                hsum = r[:, lo * Wp:(lo + 1) * Wp] + r[:, hi * Wp:(hi + 1) * Wp]
            rows.append(jax.lax.dot_general(hsum, qwp_v, cdims,
                                            preferred_element_type=jnp.float32))
        # Single lane-dense store of the whole (Cout, Ho*Wo) result (NCHW order).
        out_ref[0] = jnp.concatenate(rows, axis=1).astype(out_ref.dtype)

    flops = 2 * N * L * Cout * (9 * Cin + 9 * Cout + Cin) + 2 * N * Cout * Ho * Wp * Wo
    bytes_accessed = (N * Cin * Lx * 2 + 9 * Cout * (Cin + Cout) * 2 + Cout * Cin * 2
                      + 2 * Cout * 4 + L * 4 + Wp * Wo * 4 + N * Cout * Ho * Wo * 4)

    out = pl.pallas_call(
        kernel,
        out_shape=jax.ShapeDtypeStruct((N, Cout, Ho * Wo), jnp.float32),
        grid=(N,),
        in_specs=[
            pl.BlockSpec((1, Cin, Lx), lambda n: (n, 0, 0)),
            pl.BlockSpec((9, Cout, Cin), lambda n: (0, 0, 0)),
            pl.BlockSpec((9, Cout, Cout), lambda n: (0, 0, 0)),
            pl.BlockSpec((Cout, Cin), lambda n: (0, 0)),
            pl.BlockSpec((Cout, 1), lambda n: (0, 0)),
            pl.BlockSpec((Cout, 1), lambda n: (0, 0)),
            pl.BlockSpec((1, L), lambda n: (0, 0)),
            pl.BlockSpec((Wp, Wo), lambda n: (0, 0)),
        ],
        out_specs=pl.BlockSpec((1, Cout, Ho * Wo), lambda n: (n, 0, 0)),
        compiler_params=pltpu.CompilerParams(dimension_semantics=("parallel",)),
        cost_estimate=pl.CostEstimate(flops=flops, transcendentals=0,
                                      bytes_accessed=bytes_accessed),
    )(xe, w1k, w2k, wsk, b1r, b2s, maskw, qwp)

    # Trailing-dim split only -> metadata reshape, no transpose / extra HBM pass.
    return out.reshape(N, Cout, Ho, Wo)


def _reference_forward(x, params):
    """Pure-JAX NCHW reference mirroring the PyTorch module (correctness check)."""
    w1, b1, w2, b2, ws, bs = params
    dn = ('NCHW', 'OIHW', 'NCHW')

    def conv(inp, w, b, pad):
        y = jax.lax.conv_general_dilated(inp, w, window_strides=(1, 1),
                                         padding=[(pad, pad), (pad, pad)],
                                         dimension_numbers=dn)
        return y + b.reshape(1, -1, 1, 1)

    def avgpool(inp):  # AvgPool2d(2, 2, padding=1), count_include_pad=True
        s = jax.lax.reduce_window(inp, 0.0, jax.lax.add,
                                  (1, 1, 2, 2), (1, 1, 2, 2),
                                  [(0, 0), (0, 0), (1, 1), (1, 1)])
        return s / 4.0

    h1 = jnp.maximum(conv(x, w1, b1, 1), 0.0)
    resi = avgpool(conv(h1, w2, b2, 1))
    short = avgpool(conv(x, ws, bs, 0))
    return resi + short


if __name__ == "__main__":
    N, Cin, Cout, H, W = 2, 4, 8, 16, 16

    key = jax.random.PRNGKey(0)
    kx, k1, k2, k3, kb1, kb2, kb3 = jax.random.split(key, 7)
    x = jax.random.normal(kx, (N, Cin, H, W), jnp.float32)

    # Deterministic synthetic params (PyTorch init: normal_(std=0.02) on conv weights)
    w1 = 0.02 * jax.random.normal(k1, (Cout, Cin, 3, 3), jnp.float32)   # conv1 (OIHW)
    w2 = 0.02 * jax.random.normal(k2, (Cout, Cout, 3, 3), jnp.float32)  # conv2 (OIHW)
    ws = 0.02 * jax.random.normal(k3, (Cout, Cin, 1, 1), jnp.float32)   # conv_short 1x1
    b1 = 0.05 * jax.random.normal(kb1, (Cout,), jnp.float32)
    b2 = 0.05 * jax.random.normal(kb2, (Cout,), jnp.float32)
    bs = 0.05 * jax.random.normal(kb3, (Cout,), jnp.float32)
    params = (w1, b1, w2, b2, ws, bs)

    out = jax.block_until_ready(first_residual_d_forward(x, params))
    ref = jax.block_until_ready(_reference_forward(x, params))

    assert out.shape == (N, Cout, H // 2 + 1, W // 2 + 1), out.shape
    err = float(jnp.max(jnp.abs(out - ref)))
    # bf16 matmul inputs (f32 accumulation / bias / pooling) -> loosened tolerance.
    if err > 2e-2:
        raise AssertionError(f"mismatch vs reference: max abs err = {err}")
    print("KERNEL_OK")
</pallas_src>

<mosaic_0001>
module attributes {stable_mosaic.version = 11 : i64} {
  func.func @kernel(%arg0: i32, %arg1: memref<1x4x326xbf16, #tpu.memory_space<vmem>>, %arg2: memref<9x8x4xbf16, #tpu.memory_space<vmem>>, %arg3: memref<9x8x8xbf16, #tpu.memory_space<vmem>>, %arg4: memref<8x4xbf16, #tpu.memory_space<vmem>>, %arg5: memref<8x1xf32, #tpu.memory_space<vmem>>, %arg6: memref<8x1xf32, #tpu.memory_space<vmem>>, %arg7: memref<1x288xf32, #tpu.memory_space<vmem>>, %arg8: memref<18x9xf32, #tpu.memory_space<vmem>>, %arg9: memref<1x8x81xf32, #tpu.memory_space<vmem>>) attributes {dimension_semantics = [#tpu.dimension_semantics<parallel>], iteration_bounds = array<i64: 2>, scalar_prefetch = 0 : i64, scratch_operands = 0 : i64, tpu.core_type = #tpu.core_type<tc>, window_params = [{transform_indices = @transform_0, window_bounds = array<i64: 1, 4, 326>}, {pipeline_mode = #tpu.pipeline_mode<synchronous>, transform_indices = @transform_1, window_bounds = array<i64: 9, 8, 4>}, {pipeline_mode = #tpu.pipeline_mode<synchronous>, transform_indices = @transform_2, window_bounds = array<i64: 9, 8, 8>}, {pipeline_mode = #tpu.pipeline_mode<synchronous>, transform_indices = @transform_3, window_bounds = array<i64: 8, 4>}, {pipeline_mode = #tpu.pipeline_mode<synchronous>, transform_indices = @transform_4, window_bounds = array<i64: 8, 1>}, {pipeline_mode = #tpu.pipeline_mode<synchronous>, transform_indices = @transform_5, window_bounds = array<i64: 8, 1>}, {pipeline_mode = #tpu.pipeline_mode<synchronous>, transform_indices = @transform_6, window_bounds = array<i64: 1, 288>}, {pipeline_mode = #tpu.pipeline_mode<synchronous>, transform_indices = @transform_7, window_bounds = array<i64: 18, 9>}, {transform_indices = @transform_8, window_bounds = array<i64: 1, 8, 81>}]} {
    %c0 = arith.constant 0 : index
    %c0_0 = arith.constant 0 : index
    %c0_1 = arith.constant 0 : index
    %0 = vector.load %arg1[%c0, %c0_0, %c0_1] : memref<1x4x326xbf16, #tpu.memory_space<vmem>>, vector<1x4x326xbf16>
    %1 = vector.shape_cast %0 : vector<1x4x326xbf16> to vector<4x326xbf16>
    %c0_2 = arith.constant 0 : index
    %c0_3 = arith.constant 0 : index
    %c0_4 = arith.constant 0 : index
    %2 = vector.load %arg2[%c0_2, %c0_3, %c0_4] : memref<9x8x4xbf16, #tpu.memory_space<vmem>>, vector<1x8x4xbf16>
    %3 = vector.shape_cast %2 : vector<1x8x4xbf16> to vector<8x4xbf16>
    %4 = vector.extract_strided_slice %1 {offsets = [0, 0], sizes = [4, 288], strides = [1, 1]} : vector<4x326xbf16> to vector<4x288xbf16>
    %cst = arith.constant dense<0.000000e+00> : vector<8x288xf32>
    %5 = tpu.matmul %3, %4, %cst {dimension_numbers = #tpu.dot_dimension_numbers<[1], [0], [0], [1], [0, 0, 1, 1], [], []>} : vector<8x4xbf16>, vector<4x288xbf16>, vector<8x288xf32> -> vector<8x288xf32>
    %c1 = arith.constant 1 : index
    %c0_5 = arith.constant 0 : index
    %c0_6 = arith.constant 0 : index
    %6 = vector.load %arg2[%c1, %c0_5, %c0_6] : memref<9x8x4xbf16, #tpu.memory_space<vmem>>, vector<1x8x4xbf16>
    %7 = vector.shape_cast %6 : vector<1x8x4xbf16> to vector<8x4xbf16>
    %8 = vector.extract_strided_slice %1 {offsets = [0, 1], sizes = [4, 288], strides = [1, 1]} : vector<4x326xbf16> to vector<4x288xbf16>
    %cst_7 = arith.constant dense<0.000000e+00> : vector<8x288xf32>
    %9 = tpu.matmul %7, %8, %cst_7 {dimension_numbers = #tpu.dot_dimension_numbers<[1], [0], [0], [1], [0, 0, 1, 1], [], []>} : vector<8x4xbf16>, vector<4x288xbf16>, vector<8x288xf32> -> vector<8x288xf32>
    %10 = arith.addf %5, %9 : vector<8x288xf32>
    %c2 = arith.constant 2 : index
    %c0_8 = arith.constant 0 : index
    %c0_9 = arith.constant 0 : index
    %11 = vector.load %arg2[%c2, %c0_8, %c0_9] : memref<9x8x4xbf16, #tpu.memory_space<vmem>>, vector<1x8x4xbf16>
    %12 = vector.shape_cast %11 : vector<1x8x4xbf16> to vector<8x4xbf16>
    %13 = vector.extract_strided_slice %1 {offsets = [0, 2], sizes = [4, 288], strides = [1, 1]} : vector<4x326xbf16> to vector<4x288xbf16>
    %cst_10 = arith.constant dense<0.000000e+00> : vector<8x288xf32>
    %14 = tpu.matmul %12, %13, %cst_10 {dimension_numbers = #tpu.dot_dimension_numbers<[1], [0], [0], [1], [0, 0, 1, 1], [], []>} : vector<8x4xbf16>, vector<4x288xbf16>, vector<8x288xf32> -> vector<8x288xf32>
    %15 = arith.addf %10, %14 : vector<8x288xf32>
    %c3 = arith.constant 3 : index
    %c0_11 = arith.constant 0 : index
    %c0_12 = arith.constant 0 : index
    %16 = vector.load %arg2[%c3, %c0_11, %c0_12] : memref<9x8x4xbf16, #tpu.memory_space<vmem>>, vector<1x8x4xbf16>
    %17 = vector.shape_cast %16 : vector<1x8x4xbf16> to vector<8x4xbf16>
    %18 = vector.extract_strided_slice %1 {offsets = [0, 18], sizes = [4, 288], strides = [1, 1]} : vector<4x326xbf16> to vector<4x288xbf16>
    %cst_13 = arith.constant dense<0.000000e+00> : vector<8x288xf32>
    %19 = tpu.matmul %17, %18, %cst_13 {dimension_numbers = #tpu.dot_dimension_numbers<[1], [0], [0], [1], [0, 0, 1, 1], [], []>} : vector<8x4xbf16>, vector<4x288xbf16>, vector<8x288xf32> -> vector<8x288xf32>
    %20 = arith.addf %15, %19 : vector<8x288xf32>
    %c4 = arith.constant 4 : index
    %c0_14 = arith.constant 0 : index
    %c0_15 = arith.constant 0 : index
    %21 = vector.load %arg2[%c4, %c0_14, %c0_15] : memref<9x8x4xbf16, #tpu.memory_space<vmem>>, vector<1x8x4xbf16>
    %22 = vector.shape_cast %21 : vector<1x8x4xbf16> to vector<8x4xbf16>
    %23 = vector.extract_strided_slice %1 {offsets = [0, 19], sizes = [4, 288], strides = [1, 1]} : vector<4x326xbf16> to vector<4x288xbf16>
    %cst_16 = arith.constant dense<0.000000e+00> : vector<8x288xf32>
    %24 = tpu.matmul %22, %23, %cst_16 {dimension_numbers = #tpu.dot_dimension_numbers<[1], [0], [0], [1], [0, 0, 1, 1], [], []>} : vector<8x4xbf16>, vector<4x288xbf16>, vector<8x288xf32> -> vector<8x288xf32>
    %25 = arith.addf %20, %24 : vector<8x288xf32>
    %c5 = arith.constant 5 : index
    %c0_17 = arith.constant 0 : index
    %c0_18 = arith.constant 0 : index
    %26 = vector.load %arg2[%c5, %c0_17, %c0_18] : memref<9x8x4xbf16, #tpu.memory_space<vmem>>, vector<1x8x4xbf16>
    %27 = vector.shape_cast %26 : vector<1x8x4xbf16> to vector<8x4xbf16>
    %28 = vector.extract_strided_slice %1 {offsets = [0, 20], sizes = [4, 288], strides = [1, 1]} : vector<4x326xbf16> to vector<4x288xbf16>
    %cst_19 = arith.constant dense<0.000000e+00> : vector<8x288xf32>
    %29 = tpu.matmul %27, %28, %cst_19 {dimension_numbers = #tpu.dot_dimension_numbers<[1], [0], [0], [1], [0, 0, 1, 1], [], []>} : vector<8x4xbf16>, vector<4x288xbf16>, vector<8x288xf32> -> vector<8x288xf32>
    %30 = arith.addf %25, %29 : vector<8x288xf32>
    %c6 = arith.constant 6 : index
    %c0_20 = arith.constant 0 : index
    %c0_21 = arith.constant 0 : index
    %31 = vector.load %arg2[%c6, %c0_20, %c0_21] : memref<9x8x4xbf16, #tpu.memory_space<vmem>>, vector<1x8x4xbf16>
    %32 = vector.shape_cast %31 : vector<1x8x4xbf16> to vector<8x4xbf16>
    %33 = vector.extract_strided_slice %1 {offsets = [0, 36], sizes = [4, 288], strides = [1, 1]} : vector<4x326xbf16> to vector<4x288xbf16>
    %cst_22 = arith.constant dense<0.000000e+00> : vector<8x288xf32>
    %34 = tpu.matmul %32, %33, %cst_22 {dimension_numbers = #tpu.dot_dimension_numbers<[1], [0], [0], [1], [0, 0, 1, 1], [], []>} : vector<8x4xbf16>, vector<4x288xbf16>, vector<8x288xf32> -> vector<8x288xf32>
    %35 = arith.addf %30, %34 : vector<8x288xf32>
    %c7 = arith.constant 7 : index
    %c0_23 = arith.constant 0 : index
    %c0_24 = arith.constant 0 : index
    %36 = vector.load %arg2[%c7, %c0_23, %c0_24] : memref<9x8x4xbf16, #tpu.memory_space<vmem>>, vector<1x8x4xbf16>
    %37 = vector.shape_cast %36 : vector<1x8x4xbf16> to vector<8x4xbf16>
    %38 = vector.extract_strided_slice %1 {offsets = [0, 37], sizes = [4, 288], strides = [1, 1]} : vector<4x326xbf16> to vector<4x288xbf16>
    %cst_25 = arith.constant dense<0.000000e+00> : vector<8x288xf32>
    %39 = tpu.matmul %37, %38, %cst_25 {dimension_numbers = #tpu.dot_dimension_numbers<[1], [0], [0], [1], [0, 0, 1, 1], [], []>} : vector<8x4xbf16>, vector<4x288xbf16>, vector<8x288xf32> -> vector<8x288xf32>
    %40 = arith.addf %35, %39 : vector<8x288xf32>
    %c8 = arith.constant 8 : index
    %c0_26 = arith.constant 0 : index
    %c0_27 = arith.constant 0 : index
    %41 = vector.load %arg2[%c8, %c0_26, %c0_27] : memref<9x8x4xbf16, #tpu.memory_space<vmem>>, vector<1x8x4xbf16>
    %42 = vector.shape_cast %41 : vector<1x8x4xbf16> to vector<8x4xbf16>
    %43 = vector.extract_strided_slice %1 {offsets = [0, 38], sizes = [4, 288], strides = [1, 1]} : vector<4x326xbf16> to vector<4x288xbf16>
    %cst_28 = arith.constant dense<0.000000e+00> : vector<8x288xf32>
    %44 = tpu.matmul %42, %43, %cst_28 {dimension_numbers = #tpu.dot_dimension_numbers<[1], [0], [0], [1], [0, 0, 1, 1], [], []>} : vector<8x4xbf16>, vector<4x288xbf16>, vector<8x288xf32> -> vector<8x288xf32>
    %45 = arith.addf %40, %44 : vector<8x288xf32>
    %c0_29 = arith.constant 0 : index
    %c0_30 = arith.constant 0 : index
    %46 = vector.load %arg5[%c0_29, %c0_30] : memref<8x1xf32, #tpu.memory_space<vmem>>, vector<8x1xf32>
    %47 = vector.broadcast %46 : vector<8x1xf32> to vector<8x288xf32>
    %48 = arith.addf %45, %47 : vector<8x288xf32>
    %cst_31 = arith.constant 0.000000e+00 : f32
    %49 = vector.broadcast %cst_31 : f32 to vector<8x288xf32>
    %50 = arith.maximumf %48, %49 : vector<8x288xf32>
    %c0_32 = arith.constant 0 : index
    %c0_33 = arith.constant 0 : index
    %51 = vector.load %arg7[%c0_32, %c0_33] : memref<1x288xf32, #tpu.memory_space<vmem>>, vector<1x288xf32>
    %52 = vector.broadcast %51 : vector<1x288xf32> to vector<8x288xf32>
    %53 = arith.mulf %50, %52 : vector<8x288xf32>
    %cst_34 = arith.constant 0.000000e+00 : bf16
    %54 = vector.broadcast %cst_34 : bf16 to vector<8x19xbf16>
    %55 = arith.truncf %53 : vector<8x288xf32> to vector<8x288xbf16>
    %56 = tpu.concatenate %54, %55, %54 in 1 : vector<8x19xbf16>, vector<8x288xbf16>, vector<8x19xbf16> -> vector<8x326xbf16>
    %c0_35 = arith.constant 0 : index
    %c0_36 = arith.constant 0 : index
    %57 = vector.load %arg4[%c0_35, %c0_36] : memref<8x4xbf16, #tpu.memory_space<vmem>>, vector<8x4xbf16>
    %58 = vector.extract_strided_slice %1 {offsets = [0, 19], sizes = [4, 288], strides = [1, 1]} : vector<4x326xbf16> to vector<4x288xbf16>
    %cst_37 = arith.constant dense<0.000000e+00> : vector<8x288xf32>
    %59 = tpu.matmul %57, %58, %cst_37 {dimension_numbers = #tpu.dot_dimension_numbers<[1], [0], [0], [1], [0, 0, 1, 1], [], []>} : vector<8x4xbf16>, vector<4x288xbf16>, vector<8x288xf32> -> vector<8x288xf32>
    %c0_38 = arith.constant 0 : index
    %c0_39 = arith.constant 0 : index
    %c0_40 = arith.constant 0 : index
    %60 = vector.load %arg3[%c0_38, %c0_39, %c0_40] : memref<9x8x8xbf16, #tpu.memory_space<vmem>>, vector<1x8x8xbf16>
    %61 = vector.shape_cast %60 : vector<1x8x8xbf16> to vector<8x8xbf16>
    %62 = vector.extract_strided_slice %56 {offsets = [0, 0], sizes = [8, 288], strides = [1, 1]} : vector<8x326xbf16> to vector<8x288xbf16>
    %cst_41 = arith.constant dense<0.000000e+00> : vector<8x288xf32>
    %63 = tpu.matmul %61, %62, %cst_41 {dimension_numbers = #tpu.dot_dimension_numbers<[1], [0], [0], [1], [0, 0, 1, 1], [], []>} : vector<8x8xbf16>, vector<8x288xbf16>, vector<8x288xf32> -> vector<8x288xf32>
    %64 = arith.addf %59, %63 : vector<8x288xf32>
    %c1_42 = arith.constant 1 : index
    %c0_43 = arith.constant 0 : index
    %c0_44 = arith.constant 0 : index
    %65 = vector.load %arg3[%c1_42, %c0_43, %c0_44] : memref<9x8x8xbf16, #tpu.memory_space<vmem>>, vector<1x8x8xbf16>
    %66 = vector.shape_cast %65 : vector<1x8x8xbf16> to vector<8x8xbf16>
    %67 = vector.extract_strided_slice %56 {offsets = [0, 1], sizes = [8, 288], strides = [1, 1]} : vector<8x326xbf16> to vector<8x288xbf16>
    %cst_45 = arith.constant dense<0.000000e+00> : vector<8x288xf32>
    %68 = tpu.matmul %66, %67, %cst_45 {dimension_numbers = #tpu.dot_dimension_numbers<[1], [0], [0], [1], [0, 0, 1, 1], [], []>} : vector<8x8xbf16>, vector<8x288xbf16>, vector<8x288xf32> -> vector<8x288xf32>
    %69 = arith.addf %64, %68 : vector<8x288xf32>
    %c2_46 = arith.constant 2 : index
    %c0_47 = arith.constant 0 : index
    %c0_48 = arith.constant 0 : index
    %70 = vector.load %arg3[%c2_46, %c0_47, %c0_48] : memref<9x8x8xbf16, #tpu.memory_space<vmem>>, vector<1x8x8xbf16>
    %71 = vector.shape_cast %70 : vector<1x8x8xbf16> to vector<8x8xbf16>
    %72 = vector.extract_strided_slice %56 {offsets = [0, 2], sizes = [8, 288], strides = [1, 1]} : vector<8x326xbf16> to vector<8x288xbf16>
    %cst_49 = arith.constant dense<0.000000e+00> : vector<8x288xf32>
    %73 = tpu.matmul %71, %72, %cst_49 {dimension_numbers = #tpu.dot_dimension_numbers<[1], [0], [0], [1], [0, 0, 1, 1], [], []>} : vector<8x8xbf16>, vector<8x288xbf16>, vector<8x288xf32> -> vector<8x288xf32>
    %74 = arith.addf %69, %73 : vector<8x288xf32>
    %c3_50 = arith.constant 3 : index
    %c0_51 = arith.constant 0 : index
    %c0_52 = arith.constant 0 : index
    %75 = vector.load %arg3[%c3_50, %c0_51, %c0_52] : memref<9x8x8xbf16, #tpu.memory_space<vmem>>, vector<1x8x8xbf16>
    %76 = vector.shape_cast %75 : vector<1x8x8xbf16> to vector<8x8xbf16>
    %77 = vector.extract_strided_slice %56 {offsets = [0, 18], sizes = [8, 288], strides = [1, 1]} : vector<8x326xbf16> to vector<8x288xbf16>
    %cst_53 = arith.constant dense<0.000000e+00> : vector<8x288xf32>
    %78 = tpu.matmul %76, %77, %cst_53 {dimension_numbers = #tpu.dot_dimension_numbers<[1], [0], [0], [1], [0, 0, 1, 1], [], []>} : vector<8x8xbf16>, vector<8x288xbf16>, vector<8x288xf32> -> vector<8x288xf32>
    %79 = arith.addf %74, %78 : vector<8x288xf32>
    %c4_54 = arith.constant 4 : index
    %c0_55 = arith.constant 0 : index
    %c0_56 = arith.constant 0 : index
    %80 = vector.load %arg3[%c4_54, %c0_55, %c0_56] : memref<9x8x8xbf16, #tpu.memory_space<vmem>>, vector<1x8x8xbf16>
    %81 = vector.shape_cast %80 : vector<1x8x8xbf16> to vector<8x8xbf16>
    %82 = vector.extract_strided_slice %56 {offsets = [0, 19], sizes = [8, 288], strides = [1, 1]} : vector<8x326xbf16> to vector<8x288xbf16>
    %cst_57 = arith.constant dense<0.000000e+00> : vector<8x288xf32>
    %83 = tpu.matmul %81, %82, %cst_57 {dimension_numbers = #tpu.dot_dimension_numbers<[1], [0], [0], [1], [0, 0, 1, 1], [], []>} : vector<8x8xbf16>, vector<8x288xbf16>, vector<8x288xf32> -> vector<8x288xf32>
    %84 = arith.addf %79, %83 : vector<8x288xf32>
    %c5_58 = arith.constant 5 : index
    %c0_59 = arith.constant 0 : index
    %c0_60 = arith.constant 0 : index
    %85 = vector.load %arg3[%c5_58, %c0_59, %c0_60] : memref<9x8x8xbf16, #tpu.memory_space<vmem>>, vector<1x8x8xbf16>
    %86 = vector.shape_cast %85 : vector<1x8x8xbf16> to vector<8x8xbf16>
    %87 = vector.extract_strided_slice %56 {offsets = [0, 20], sizes = [8, 288], strides = [1, 1]} : vector<8x326xbf16> to vector<8x288xbf16>
    %cst_61 = arith.constant dense<0.000000e+00> : vector<8x288xf32>
    %88 = tpu.matmul %86, %87, %cst_61 {dimension_numbers = #tpu.dot_dimension_numbers<[1], [0], [0], [1], [0, 0, 1, 1], [], []>} : vector<8x8xbf16>, vector<8x288xbf16>, vector<8x288xf32> -> vector<8x288xf32>
    %89 = arith.addf %84, %88 : vector<8x288xf32>
    %c6_62 = arith.constant 6 : index
    %c0_63 = arith.constant 0 : index
    %c0_64 = arith.constant 0 : index
    %90 = vector.load %arg3[%c6_62, %c0_63, %c0_64] : memref<9x8x8xbf16, #tpu.memory_space<vmem>>, vector<1x8x8xbf16>
    %91 = vector.shape_cast %90 : vector<1x8x8xbf16> to vector<8x8xbf16>
    %92 = vector.extract_strided_slice %56 {offsets = [0, 36], sizes = [8, 288], strides = [1, 1]} : vector<8x326xbf16> to vector<8x288xbf16>
    %cst_65 = arith.constant dense<0.000000e+00> : vector<8x288xf32>
    %93 = tpu.matmul %91, %92, %cst_65 {dimension_numbers = #tpu.dot_dimension_numbers<[1], [0], [0], [1], [0, 0, 1, 1], [], []>} : vector<8x8xbf16>, vector<8x288xbf16>, vector<8x288xf32> -> vector<8x288xf32>
    %94 = arith.addf %89, %93 : vector<8x288xf32>
    %c7_66 = arith.constant 7 : index
    %c0_67 = arith.constant 0 : index
    %c0_68 = arith.constant 0 : index
    %95 = vector.load %arg3[%c7_66, %c0_67, %c0_68] : memref<9x8x8xbf16, #tpu.memory_space<vmem>>, vector<1x8x8xbf16>
    %96 = vector.shape_cast %95 : vector<1x8x8xbf16> to vector<8x8xbf16>
    %97 = vector.extract_strided_slice %56 {offsets = [0, 37], sizes = [8, 288], strides = [1, 1]} : vector<8x326xbf16> to vector<8x288xbf16>
    %cst_69 = arith.constant dense<0.000000e+00> : vector<8x288xf32>
    %98 = tpu.matmul %96, %97, %cst_69 {dimension_numbers = #tpu.dot_dimension_numbers<[1], [0], [0], [1], [0, 0, 1, 1], [], []>} : vector<8x8xbf16>, vector<8x288xbf16>, vector<8x288xf32> -> vector<8x288xf32>
    %99 = arith.addf %94, %98 : vector<8x288xf32>
    %c8_70 = arith.constant 8 : index
    %c0_71 = arith.constant 0 : index
    %c0_72 = arith.constant 0 : index
    %100 = vector.load %arg3[%c8_70, %c0_71, %c0_72] : memref<9x8x8xbf16, #tpu.memory_space<vmem>>, vector<1x8x8xbf16>
    %101 = vector.shape_cast %100 : vector<1x8x8xbf16> to vector<8x8xbf16>
    %102 = vector.extract_strided_slice %56 {offsets = [0, 38], sizes = [8, 288], strides = [1, 1]} : vector<8x326xbf16> to vector<8x288xbf16>
    %cst_73 = arith.constant dense<0.000000e+00> : vector<8x288xf32>
    %103 = tpu.matmul %101, %102, %cst_73 {dimension_numbers = #tpu.dot_dimension_numbers<[1], [0], [0], [1], [0, 0, 1, 1], [], []>} : vector<8x8xbf16>, vector<8x288xbf16>, vector<8x288xf32> -> vector<8x288xf32>
    %104 = arith.addf %99, %103 : vector<8x288xf32>
    %c0_74 = arith.constant 0 : index
    %c0_75 = arith.constant 0 : index
    %105 = vector.load %arg6[%c0_74, %c0_75] : memref<8x1xf32, #tpu.memory_space<vmem>>, vector<8x1xf32>
    %106 = vector.broadcast %105 : vector<8x1xf32> to vector<8x288xf32>
    %107 = arith.addf %104, %106 : vector<8x288xf32>
    %c0_76 = arith.constant 0 : index
    %c0_77 = arith.constant 0 : index
    %108 = vector.load %arg8[%c0_76, %c0_77] : memref<18x9xf32, #tpu.memory_space<vmem>>, vector<18x9xf32>
    %109 = vector.extract_strided_slice %107 {offsets = [0, 0], sizes = [8, 18], strides = [1, 1]} : vector<8x288xf32> to vector<8x18xf32>
    %cst_78 = arith.constant dense<0.000000e+00> : vector<8x9xf32>
    %110 = tpu.matmul %109, %108, %cst_78 {dimension_numbers = #tpu.dot_dimension_numbers<[1], [0], [0], [1], [0, 0, 1, 1], [], []>} : vector<8x18xf32>, vector<18x9xf32>, vector<8x9xf32> -> vector<8x9xf32>
    %111 = vector.extract_strided_slice %107 {offsets = [0, 18], sizes = [8, 18], strides = [1, 1]} : vector<8x288xf32> to vector<8x18xf32>
    %112 = vector.extract_strided_slice %107 {offsets = [0, 36], sizes = [8, 18], strides = [1, 1]} : vector<8x288xf32> to vector<8x18xf32>
    %113 = arith.addf %111, %112 : vector<8x18xf32>
    %cst_79 = arith.constant dense<0.000000e+00> : vector<8x9xf32>
    %114 = tpu.matmul %113, %108, %cst_79 {dimension_numbers = #tpu.dot_dimension_numbers<[1], [0], [0], [1], [0, 0, 1, 1], [], []>} : vector<8x18xf32>, vector<18x9xf32>, vector<8x9xf32> -> vector<8x9xf32>
    %115 = vector.extract_strided_slice %107 {offsets = [0, 54], sizes = [8, 18], strides = [1, 1]} : vector<8x288xf32> to vector<8x18xf32>
    %116 = vector.extract_strided_slice %107 {offsets = [0, 72], sizes = [8, 18], strides = [1, 1]} : vector<8x288xf32> to vector<8x18xf32>
    %117 = arith.addf %115, %116 : vector<8x18xf32>
    %cst_80 = arith.constant dense<0.000000e+00> : vector<8x9xf32>
    %118 = tpu.matmul %117, %108, %cst_80 {dimension_numbers = #tpu.dot_dimension_numbers<[1], [0], [0], [1], [0, 0, 1, 1], [], []>} : vector<8x18xf32>, vector<18x9xf32>, vector<8x9xf32> -> vector<8x9xf32>
    %119 = vector.extract_strided_slice %107 {offsets = [0, 90], sizes = [8, 18], strides = [1, 1]} : vector<8x288xf32> to vector<8x18xf32>
    %120 = vector.extract_strided_slice %107 {offsets = [0, 108], sizes = [8, 18], strides = [1, 1]} : vector<8x288xf32> to vector<8x18xf32>
    %121 = arith.addf %119, %120 : vector<8x18xf32>
    %cst_81 = arith.constant dense<0.000000e+00> : vector<8x9xf32>
    %122 = tpu.matmul %121, %108, %cst_81 {dimension_numbers = #tpu.dot_dimension_numbers<[1], [0], [0], [1], [0, 0, 1, 1], [], []>} : vector<8x18xf32>, vector<18x9xf32>, vector<8x9xf32> -> vector<8x9xf32>
    %123 = vector.extract_strided_slice %107 {offsets = [0, 126], sizes = [8, 18], strides = [1, 1]} : vector<8x288xf32> to vector<8x18xf32>
    %124 = vector.extract_strided_slice %107 {offsets = [0, 144], sizes = [8, 18], strides = [1, 1]} : vector<8x288xf32> to vector<8x18xf32>
    %125 = arith.addf %123, %124 : vector<8x18xf32>
    %cst_82 = arith.constant dense<0.000000e+00> : vector<8x9xf32>
    %126 = tpu.matmul %125, %108, %cst_82 {dimension_numbers = #tpu.dot_dimension_numbers<[1], [0], [0], [1], [0, 0, 1, 1], [], []>} : vector<8x18xf32>, vector<18x9xf32>, vector<8x9xf32> -> vector<8x9xf32>
    %127 = vector.extract_strided_slice %107 {offsets = [0, 162], sizes = [8, 18], strides = [1, 1]} : vector<8x288xf32> to vector<8x18xf32>
    %128 = vector.extract_strided_slice %107 {offsets = [0, 180], sizes = [8, 18], strides = [1, 1]} : vector<8x288xf32> to vector<8x18xf32>
    %129 = arith.addf %127, %128 : vector<8x18xf32>
    %cst_83 = arith.constant dense<0.000000e+00> : vector<8x9xf32>
    %130 = tpu.matmul %129, %108, %cst_83 {dimension_numbers = #tpu.dot_dimension_numbers<[1], [0], [0], [1], [0, 0, 1, 1], [], []>} : vector<8x18xf32>, vector<18x9xf32>, vector<8x9xf32> -> vector<8x9xf32>
    %131 = vector.extract_strided_slice %107 {offsets = [0, 198], sizes = [8, 18], strides = [1, 1]} : vector<8x288xf32> to vector<8x18xf32>
    %132 = vector.extract_strided_slice %107 {offsets = [0, 216], sizes = [8, 18], strides = [1, 1]} : vector<8x288xf32> to vector<8x18xf32>
    %133 = arith.addf %131, %132 : vector<8x18xf32>
    %cst_84 = arith.constant dense<0.000000e+00> : vector<8x9xf32>
    %134 = tpu.matmul %133, %108, %cst_84 {dimension_numbers = #tpu.dot_dimension_numbers<[1], [0], [0], [1], [0, 0, 1, 1], [], []>} : vector<8x18xf32>, vector<18x9xf32>, vector<8x9xf32> -> vector<8x9xf32>
    %135 = vector.extract_strided_slice %107 {offsets = [0, 234], sizes = [8, 18], strides = [1, 1]} : vector<8x288xf32> to vector<8x18xf32>
    %136 = vector.extract_strided_slice %107 {offsets = [0, 252], sizes = [8, 18], strides = [1, 1]} : vector<8x288xf32> to vector<8x18xf32>
    %137 = arith.addf %135, %136 : vector<8x18xf32>
    %cst_85 = arith.constant dense<0.000000e+00> : vector<8x9xf32>
    %138 = tpu.matmul %137, %108, %cst_85 {dimension_numbers = #tpu.dot_dimension_numbers<[1], [0], [0], [1], [0, 0, 1, 1], [], []>} : vector<8x18xf32>, vector<18x9xf32>, vector<8x9xf32> -> vector<8x9xf32>
    %139 = vector.extract_strided_slice %107 {offsets = [0, 270], sizes = [8, 18], strides = [1, 1]} : vector<8x288xf32> to vector<8x18xf32>
    %cst_86 = arith.constant dense<0.000000e+00> : vector<8x9xf32>
    %140 = tpu.matmul %139, %108, %cst_86 {dimension_numbers = #tpu.dot_dimension_numbers<[1], [0], [0], [1], [0, 0, 1, 1], [], []>} : vector<8x18xf32>, vector<18x9xf32>, vector<8x9xf32> -> vector<8x9xf32>
    %141 = tpu.concatenate %110, %114, %118, %122, %126, %130, %134, %138, %140 in 1 : vector<8x9xf32>, vector<8x9xf32>, vector<8x9xf32>, vector<8x9xf32>, vector<8x9xf32>, vector<8x9xf32>, vector<8x9xf32>, vector<8x9xf32>, vector<8x9xf32> -> vector<8x81xf32>
    %c0_87 = arith.constant 0 : index
    %c0_88 = arith.constant 0 : index
    %c0_89 = arith.constant 0 : index
    %142 = vector.load %arg9[%c0_87, %c0_88, %c0_89] : memref<1x8x81xf32, #tpu.memory_space<vmem>>, vector<1x8x81xf32>
    %143 = vector.shape_cast %142 : vector<1x8x81xf32> to vector<8x81xf32>
    %144 = vector.shape_cast %141 : vector<8x81xf32> to vector<1x8x81xf32>
    tpu.vector_store %arg9[%c0_87, %c0_88, %c0_89], %144 {strides = array<i32>} : memref<1x8x81xf32, #tpu.memory_space<vmem>>, vector<1x8x81xf32>,
    return
  }
  func.func @transform_0(%arg0: i32) -> (i32, i32, i32) {
    %c0_i32 = arith.constant 0 : i32
    %c0_i32_0 = arith.constant 0 : i32
    %c0_i32_1 = arith.constant 0 : i32
    return %arg0, %c0_i32, %c0_i32_0 : i32, i32, i32
  }
  func.func @transform_1(%arg0: i32) -> (i32, i32, i32) {
    %c0_i32 = arith.constant 0 : i32
    %c0_i32_0 = arith.constant 0 : i32
    %c0_i32_1 = arith.constant 0 : i32
    %c0_i32_2 = arith.constant 0 : i32
    return %c0_i32, %c0_i32_0, %c0_i32_1 : i32, i32, i32
  }
  func.func @transform_2(%arg0: i32) -> (i32, i32, i32) {
    %c0_i32 = arith.constant 0 : i32
    %c0_i32_0 = arith.constant 0 : i32
    %c0_i32_1 = arith.constant 0 : i32
    %c0_i32_2 = arith.constant 0 : i32
    return %c0_i32, %c0_i32_0, %c0_i32_1 : i32, i32, i32
  }
  func.func @transform_3(%arg0: i32) -> (i32, i32) {
    %c0_i32 = arith.constant 0 : i32
    %c0_i32_0 = arith.constant 0 : i32
    %c0_i32_1 = arith.constant 0 : i32
    return %c0_i32, %c0_i32_0 : i32, i32
  }
  func.func @transform_4(%arg0: i32) -> (i32, i32) {
    %c0_i32 = arith.constant 0 : i32
    %c0_i32_0 = arith.constant 0 : i32
    %c0_i32_1 = arith.constant 0 : i32
    return %c0_i32, %c0_i32_0 : i32, i32
  }
  func.func @transform_5(%arg0: i32) -> (i32, i32) {
    %c0_i32 = arith.constant 0 : i32
    %c0_i32_0 = arith.constant 0 : i32
    %c0_i32_1 = arith.constant 0 : i32
    return %c0_i32, %c0_i32_0 : i32, i32
  }
  func.func @transform_6(%arg0: i32) -> (i32, i32) {
    %c0_i32 = arith.constant 0 : i32
    %c0_i32_0 = arith.constant 0 : i32
    %c0_i32_1 = arith.constant 0 : i32
    return %c0_i32, %c0_i32_0 : i32, i32
  }
  func.func @transform_7(%arg0: i32) -> (i32, i32) {
    %c0_i32 = arith.constant 0 : i32
    %c0_i32_0 = arith.constant 0 : i32
    %c0_i32_1 = arith.constant 0 : i32
    return %c0_i32, %c0_i32_0 : i32, i32
  }
  func.func @transform_8(%arg0: i32) -> (i32, i32, i32) {
    %c0_i32 = arith.constant 0 : i32
    %c0_i32_0 = arith.constant 0 : i32
    %c0_i32_1 = arith.constant 0 : i32
    return %arg0, %c0_i32, %c0_i32_0 : i32, i32, i32
  }
}

</mosaic_0001>

<llo_original>
// kernel: tpu_custom_call.1
$region0: #{tpu_custom_call.1}
  #allocation0 [shape = 'u32[]', space=smem, size = 0x4, offset = 0x4, fixed_abs, tag = 'smem constant byte address 0x4 - core index']
  #allocation1 [shape = 'u32[144,128]{1,0:T(1,128)}', space=vmem, size = 0x12000, scoped, tag = 'internal scratch']
  %s0 = inlined_call_operand.vmem [shape: bf16[2,4,326], index: 0, kind: input, shape index: {}]
  %s1 = inlined_call_operand.vmem [shape: bf16[9,8,4], index: 1, kind: input, shape index: {}]
  %s2 = inlined_call_operand.vmem [shape: bf16[9,8,8], index: 2, kind: input, shape index: {}]
  %s3 = inlined_call_operand.vmem [shape: bf16[8,4], index: 3, kind: input, shape index: {}]
  %s4 = inlined_call_operand.vmem [shape: f32[8,1], index: 4, kind: input, shape index: {}]
  %s5 = inlined_call_operand.vmem [shape: f32[8,1], index: 5, kind: input, shape index: {}]
  %s6 = inlined_call_operand.vmem [shape: f32[1,288], index: 6, kind: input, shape index: {}]
  %s7 = inlined_call_operand.vmem [shape: f32[18,9], index: 7, kind: input, shape index: {}]
  %s8 = inlined_call_operand.hbm [shape: f32[2,8,81], index: 8, kind: output, shape index: {}]
  %s9 = sld [smem:[#allocation0]]
  $region65: #{tpu_custom_call.1} parent=0
    _
  %s11 = ssub.s32 1, %s9
  %s12 = scalar_select 0, %s11, %s9
  $region1: #{tpu_custom_call.1} parent=0
    #allocation2 [shape = 'u8[8192]{0}', space=vmem, size = 0x2000, scoped, tag = 'output window, operand 0']
    #allocation3 [shape = 's32[2]{0}', space=sflag, size = 0x8, scoped, tag = 'scoped memory for tpu_custom_call.1']
    %13 = vsyncpa [#allocation3], 0
    %s14 = scalar_lea.sflag [#allocation3], 1
    %15 = vsyncpa %s14, 0
    loop: start=0, step=1, limit=4
    $region2: #{tpu_custom_call.1} parent=1 // loop_pre_header
      _
    $region3: #{tpu_custom_call.1} parent=1 // loop_header
      %s17 = sphi 0, %s21
      %p18 = scmp.ge.s32.totalorder %s17, 4
      %s27 = sphi 0, %s29
      %s30 = sphi 0, %s27
      %s31 = sphi 0, %s30
      %s47 = sphi 0, %s31
      %s51 = sphi 0, %s51
      %s53 = sphi 0, %s51
      %s54 = sphi 0, %s53
      %s68 = sphi 0, %s54
      %s72 = sphi 0, %s72
      %s74 = sphi 0, %s72
      %s75 = sphi 0, %s74
      %s89 = sphi 0, %s75
      %s93 = sphi 0, %s93
      %s95 = sphi 0, %s93
      %s96 = sphi 0, %s95
      %s110 = sphi 0, %s96
      %s114 = sphi 0, %s114
      %s116 = sphi 0, %s114
      %s117 = sphi 0, %s116
      %s131 = sphi 0, %s117
      %s135 = sphi 0, %s135
      %s137 = sphi 0, %s135
      %s138 = sphi 0, %s137
      %s152 = sphi 0, %s138
      %s156 = sphi 0, %s156
      %s158 = sphi 0, %s156
      %s159 = sphi 0, %s158
      %s173 = sphi 0, %s159
      %s177 = sphi 0, %s177
      %s179 = sphi 0, %s177
      %s180 = sphi 0, %s179
      %s194 = sphi 0, %s180
      %s200 = sphi 0, %s202
      %s203 = sphi 0, %s200
      %s204 = sphi 0, %s203
      %s220 = sphi 0, %s204
    $region4: #{tpu_custom_call.1} parent=1 // loop_header_branch
      %20 = sbr.rel (%p18) target = $region8
    $region5: #{tpu_custom_call.1} parent=1 // loop_body
      %s22 = ssub.s32 %s17, 1
      %s23 = ssub.s32 %s17, 2
      %s24 = sadd.s32 %s17, 1
      %s25 = ssub.s32 %s17, %s24
      %p26 = scmp.eq.s32.totalorder %s25, 0
      %s28 = sadd.s32 %s27, 1
      %s29 = scalar_select %p26, %s27, %s28
      %p32 = pneg %p26
      %p33 = scmp.eq.s32.totalorder %s17, 1
      %p34 = por %p32, %p33
      %p35 = scmp.ne.s32.totalorder %s27, %s30
      %p36 = scmp.eq.s32.totalorder %s17, 0
      %p37 = por %p35, %p36
      %p38 = scmp.ne.s32.totalorder %s27, %s30
      %p39 = scmp.eq.s32.totalorder %s22, 1
      %p40 = por %p38, %p39
      %p41 = scmp.ne.s32.totalorder %s30, %s31
      %p42 = scmp.eq.s32.totalorder %s22, 0
      %p43 = por %p41, %p42
      %p44 = scmp.ne.s32.totalorder %s30, %s31
      %p45 = scmp.eq.s32.totalorder %s23, 1
      %p46 = por %p44, %p45
      %p48 = scmp.ne.s32.totalorder %s31, %s47
      %p49 = scmp.eq.s32.totalorder %s23, 0
      %p50 = por %p48, %p49
      %s52 = sadd.s32 %s51, 1
      %p55 = scmp.eq.s32.totalorder %s17, 1
      %p56 = scmp.ne.s32.totalorder %s51, %s53
      %p57 = scmp.eq.s32.totalorder %s17, 0
      %p58 = por %p56, %p57
      %p59 = scmp.ne.s32.totalorder %s51, %s53
      %p60 = scmp.eq.s32.totalorder %s22, 1
      %p61 = por %p59, %p60
      %p62 = scmp.ne.s32.totalorder %s53, %s54
      %p63 = scmp.eq.s32.totalorder %s22, 0
      %p64 = por %p62, %p63
      %p65 = scmp.ne.s32.totalorder %s53, %s54
      %p66 = scmp.eq.s32.totalorder %s23, 1
      %p67 = por %p65, %p66
      %p69 = scmp.ne.s32.totalorder %s54, %s68
      %p70 = scmp.eq.s32.totalorder %s23, 0
      %p71 = por %p69, %p70
      %s73 = sadd.s32 %s72, 1
      %p76 = scmp.eq.s32.totalorder %s17, 1
      %p77 = scmp.ne.s32.totalorder %s72, %s74
      %p78 = scmp.eq.s32.totalorder %s17, 0
      %p79 = por %p77, %p78
      %p80 = scmp.ne.s32.totalorder %s72, %s74
      %p81 = scmp.eq.s32.totalorder %s22, 1
      %p82 = por %p80, %p81
      %p83 = scmp.ne.s32.totalorder %s74, %s75
      %p84 = scmp.eq.s32.totalorder %s22, 0
      %p85 = por %p83, %p84
      %p86 = scmp.ne.s32.totalorder %s74, %s75
      %p87 = scmp.eq.s32.totalorder %s23, 1
      %p88 = por %p86, %p87
      %p90 = scmp.ne.s32.totalorder %s75, %s89
      %p91 = scmp.eq.s32.totalorder %s23, 0
      %p92 = por %p90, %p91
      %s94 = sadd.s32 %s93, 1
      %p97 = scmp.eq.s32.totalorder %s17, 1
      %p98 = scmp.ne.s32.totalorder %s93, %s95
      %p99 = scmp.eq.s32.totalorder %s17, 0
      %p100 = por %p98, %p99
      %p101 = scmp.ne.s32.totalorder %s93, %s95
      %p102 = scmp.eq.s32.totalorder %s22, 1
      %p103 = por %p101, %p102
      %p104 = scmp.ne.s32.totalorder %s95, %s96
      %p105 = scmp.eq.s32.totalorder %s22, 0
      %p106 = por %p104, %p105
      %p107 = scmp.ne.s32.totalorder %s95, %s96
      %p108 = scmp.eq.s32.totalorder %s23, 1
      %p109 = por %p107, %p108
      %p111 = scmp.ne.s32.totalorder %s96, %s110
      %p112 = scmp.eq.s32.totalorder %s23, 0
      %p113 = por %p111, %p112
      %s115 = sadd.s32 %s114, 1
      %p118 = scmp.eq.s32.totalorder %s17, 1
      %p119 = scmp.ne.s32.totalorder %s114, %s116
      %p120 = scmp.eq.s32.totalorder %s17, 0
      %p121 = por %p119, %p120
      %p122 = scmp.ne.s32.totalorder %s114, %s116
      %p123 = scmp.eq.s32.totalorder %s22, 1
      %p124 = por %p122, %p123
      %p125 = scmp.ne.s32.totalorder %s116, %s117
      %p126 = scmp.eq.s32.totalorder %s22, 0
      %p127 = por %p125, %p126
      %p128 = scmp.ne.s32.totalorder %s116, %s117
      %p129 = scmp.eq.s32.totalorder %s23, 1
      %p130 = por %p128, %p129
      %p132 = scmp.ne.s32.totalorder %s117, %s131
      %p133 = scmp.eq.s32.totalorder %s23, 0
      %p134 = por %p132, %p133
      %s136 = sadd.s32 %s135, 1
      %p139 = scmp.eq.s32.totalorder %s17, 1
      %p140 = scmp.ne.s32.totalorder %s135, %s137
      %p141 = scmp.eq.s32.totalorder %s17, 0
      %p142 = por %p140, %p141
      %p143 = scmp.ne.s32.totalorder %s135, %s137
      %p144 = scmp.eq.s32.totalorder %s22, 1
      %p145 = por %p143, %p144
      %p146 = scmp.ne.s32.totalorder %s137, %s138
      %p147 = scmp.eq.s32.totalorder %s22, 0
      %p148 = por %p146, %p147
      %p149 = scmp.ne.s32.totalorder %s137, %s138
      %p150 = scmp.eq.s32.totalorder %s23, 1
      %p151 = por %p149, %p150
      %p153 = scmp.ne.s32.totalorder %s138, %s152
      %p154 = scmp.eq.s32.totalorder %s23, 0
      %p155 = por %p153, %p154
      %s157 = sadd.s32 %s156, 1
      %p160 = scmp.eq.s32.totalorder %s17, 1
      %p161 = scmp.ne.s32.totalorder %s156, %s158
      %p162 = scmp.eq.s32.totalorder %s17, 0
      %p163 = por %p161, %p162
      %p164 = scmp.ne.s32.totalorder %s156, %s158
      %p165 = scmp.eq.s32.totalorder %s22, 1
      %p166 = por %p164, %p165
      %p167 = scmp.ne.s32.totalorder %s158, %s159
      %p168 = scmp.eq.s32.totalorder %s22, 0
      %p169 = por %p167, %p168
      %p170 = scmp.ne.s32.totalorder %s158, %s159
      %p171 = scmp.eq.s32.totalorder %s23, 1
      %p172 = por %p170, %p171
      %p174 = scmp.ne.s32.totalorder %s159, %s173
      %p175 = scmp.eq.s32.totalorder %s23, 0
      %p176 = por %p174, %p175
      %s178 = sadd.s32 %s177, 1
      %p181 = scmp.eq.s32.totalorder %s17, 1
      %p182 = scmp.ne.s32.totalorder %s177, %s179
      %p183 = scmp.eq.s32.totalorder %s17, 0
      %p184 = por %p182, %p183
      %p185 = scmp.ne.s32.totalorder %s177, %s179
      %p186 = scmp.eq.s32.totalorder %s22, 1
      %p187 = por %p185, %p186
      %p188 = scmp.ne.s32.totalorder %s179, %s180
      %p189 = scmp.eq.s32.totalorder %s22, 0
      %p190 = por %p188, %p189
      %p191 = scmp.ne.s32.totalorder %s179, %s180
      %p192 = scmp.eq.s32.totalorder %s23, 1
      %p193 = por %p191, %p192
      %p195 = scmp.ne.s32.totalorder %s180, %s194
      %p196 = scmp.eq.s32.totalorder %s23, 0
      %p197 = por %p195, %p196
      %s198 = ssub.s32 %s17, %s24
      %p199 = scmp.eq.s32.totalorder %s198, 0
      %s201 = sadd.s32 %s200, 1
      %s202 = scalar_select %p199, %s200, %s201
      %p205 = pneg %p199
      %p206 = scmp.eq.s32.totalorder %s17, 1
      %p207 = por %p205, %p206
      %p208 = scmp.ne.s32.totalorder %s200, %s203
      %p209 = scmp.eq.s32.totalorder %s17, 0
      %p210 = por %p208, %p209
      %p211 = scmp.ne.s32.totalorder %s200, %s203
      %p212 = scmp.eq.s32.totalorder %s22, 1
      %p213 = por %p211, %p212
      %p214 = scmp.ne.s32.totalorder %s203, %s204
      %p215 = scmp.eq.s32.totalorder %s22, 0
      %p216 = por %p214, %p215
      %p217 = scmp.ne.s32.totalorder %s203, %s204
      %p218 = scmp.eq.s32.totalorder %s23, 1
      %p219 = por %p217, %p218
      %p221 = scmp.ne.s32.totalorder %s204, %s220
      %p222 = scmp.eq.s32.totalorder %s23, 0
      %p223 = por %p221, %p222
      %p224 = scmp.le.s32.totalorder 1, %s17
      %p225 = scmp.lt.s32.totalorder %s17, 3
      %p226 = pnand %p224, %p225
      %p227 = pneg %p226
      // Predicated region
      $region9: #{tpu_custom_call.1} parent=5 // pred_check
        _
      $region10: #{tpu_custom_call.1} parent=5 // pred_check_branch
        %229 = sbr.rel (%p226) target = $region12
      $region11: #{tpu_custom_call.1} parent=5 // pred_region
        %s230 = ssub.s32 %s17, 1
        // Predicated region
        $region13: #{tpu_custom_call.1} parent=11 // pred_check
          %p231 = pneg %p64
        $region14: #{tpu_custom_call.1} parent=11 // pred_check_branch
          %233 = sbr.rel (%p231) target = $region16
        $region15: #{tpu_custom_call.1} parent=11 // pred_region
          _
        $region16: #{tpu_custom_call.1} parent=11 // pred_fallthru
          _
        // Predicated region
        $region17: #{tpu_custom_call.1} parent=11 // pred_check
          %p234 = pneg %p85
        $region18: #{tpu_custom_call.1} parent=11 // pred_check_branch
          %236 = sbr.rel (%p234) target = $region20
        $region19: #{tpu_custom_call.1} parent=11 // pred_region
          _
        $region20: #{tpu_custom_call.1} parent=11 // pred_fallthru
          _
        // Predicated region
        $region21: #{tpu_custom_call.1} parent=11 // pred_check
          %p237 = pneg %p106
        $region22: #{tpu_custom_call.1} parent=11 // pred_check_branch
          %239 = sbr.rel (%p237) target = $region24
        $region23: #{tpu_custom_call.1} parent=11 // pred_region
          _
        $region24: #{tpu_custom_call.1} parent=11 // pred_fallthru
          _
        // Predicated region
        $region25: #{tpu_custom_call.1} parent=11 // pred_check
          %p240 = pneg %p127
        $region26: #{tpu_custom_call.1} parent=11 // pred_check_branch
          %242 = sbr.rel (%p240) target = $region28
        $region27: #{tpu_custom_call.1} parent=11 // pred_region
          _
        $region28: #{tpu_custom_call.1} parent=11 // pred_fallthru
          _
        // Predicated region
        $region29: #{tpu_custom_call.1} parent=11 // pred_check
          %p243 = pneg %p148
        $region30: #{tpu_custom_call.1} parent=11 // pred_check_branch
          %245 = sbr.rel (%p243) target = $region32
        $region31: #{tpu_custom_call.1} parent=11 // pred_region
          _
        $region32: #{tpu_custom_call.1} parent=11 // pred_fallthru
          _
        // Predicated region
        $region33: #{tpu_custom_call.1} parent=11 // pred_check
          %p246 = pneg %p169
        $region34: #{tpu_custom_call.1} parent=11 // pred_check_branch
          %248 = sbr.rel (%p246) target = $region36
        $region35: #{tpu_custom_call.1} parent=11 // pred_region
          _
        $region36: #{tpu_custom_call.1} parent=11 // pred_fallthru
          _
        // Predicated region
        $region37: #{tpu_custom_call.1} parent=11 // pred_check
          %p249 = pneg %p190
        $region38: #{tpu_custom_call.1} parent=11 // pred_check_branch
          %251 = sbr.rel (%p249) target = $region40
        $region39: #{tpu_custom_call.1} parent=11 // pred_region
          _
        $region40: #{tpu_custom_call.1} parent=11 // pred_fallthru
          _
      $region12: #{tpu_custom_call.1} parent=5 // pred_fallthru
        _
      %p252 = scmp.lt.s32.totalorder %s17, 2
      // Predicated region
      $region41: #{tpu_custom_call.1} parent=5 // pred_check
        %p253 = pneg %p252
      $region42: #{tpu_custom_call.1} parent=5 // pred_check_branch
        %255 = sbr.rel (%p253) target = $region44
      $region43: #{tpu_custom_call.1} parent=5 // pred_region
        // Predicated region
        $region45: #{tpu_custom_call.1} parent=43 // pred_check
          %p256 = pneg %p37
        $region46: #{tpu_custom_call.1} parent=43 // pred_check_branch
          %258 = sbr.rel (%p256) target = $region48
        $region47: #{tpu_custom_call.1} parent=43 // pred_region
          %p259 = scmp.lt.s32.totalorder %s17, 1
          %s260 = scalar_select %p259, %s17, 1
          %s261 = smul.addr %s260, 3
          %s262 = smul.addr %s261, 2
          %s263 = scalar_lea.vmem %s0, %s262
        $region48: #{tpu_custom_call.1} parent=43 // pred_fallthru
          _
      $region44: #{tpu_custom_call.1} parent=5 // pred_fallthru
        _
      %p264 = scmp.le.s32.totalorder 1, %s17
      %p265 = scmp.lt.s32.totalorder %s17, 3
      %p266 = pnand %p264, %p265
      %p267 = pneg %p266
      // Predicated region
      $region49: #{tpu_custom_call.1} parent=5 // pred_check
        _
      $region50: #{tpu_custom_call.1} parent=5 // pred_check_branch
        %269 = sbr.rel (%p266) target = $region52
      $region51: #{tpu_custom_call.1} parent=5 // pred_region
        %s270 = ssub.s32 %s17, 1
        %p271 = scmp.lt.s32.totalorder %s22, 1
        %s272 = scalar_select %p271, %s22, 1
        %s273 = smul.addr %s272, 3
        %s274 = smul.addr %s273, 2
        %s275 = scalar_lea.vmem %s0, %s274
        %p276 = pneg %p43
        %p277 = pneg %p40
        %p278 = pneg %p64
        %p279 = pneg %p61
        %p280 = pneg %p85
        %p281 = pneg %p82
        %p282 = pneg %p106
        %p283 = pneg %p103
        %p284 = pneg %p127
        %p285 = pneg %p124
        %p286 = pneg %p148
        %p287 = pneg %p145
        %p288 = pneg %p169
        %p289 = pneg %p166
        %p290 = pneg %p190
        %p291 = pneg %p187
        %p292 = pneg %p216
        %p293 = pneg %p213
        %s294 = sand.u32 %s203, 1
        %s295 = scalar_lea.sflag [#allocation3], %s294
        %s296 = sand.u32 %s203, 1
        %s297 = smul.addr %s296, 8
        %s298 = scalar_lea.vmem [#allocation2], %s297
        %p299 = scmp.lt.s32.totalorder %s22, 1
        %s300 = scalar_select %p299, %s22, 1
        %s301 = smul.addr %s300, 3
        %s302 = smul.addr %s301, 2
        %s303 = scalar_lea.vmem %s0, %s302
        %v305 = vld [vmem:[%s303] sm:$0x3f]
        %v306 = vld [vmem:[%s1] sm:$0xf]
        %s307 = scalar_lea.vmem %s1, 4
        %v308 = vld [vmem:[%s307] sm:$0xf]
        %v310 = vcombine.high %v305, %v305
        %v312 = vunpack.c.l.s4 1983009808
        %v313 = vunpack.c.0.s8 %v312
        %v314 = vlaneseq
        %v315 = vshrl.u32 %v314, 7
        %v316 = vsub.s32 %v313, %v315
        %v317 = vrot.slane %v305, %v316
        %v319 = vunpack.c.l.s4 1983009808
        %v320 = vunpack.c.0.s8 %v319
        %v321 = vlaneseq
        %v322 = vshrl.u32 %v321, 7
        %v323 = vsub.s32 %v320, %v322
        %v324 = vrot.slane %v310, %v323
        %v325 = vcombine.high %v317, %v317
        %326 = vrot.lane.b32.xlu0 %v317, 127
        %v327 = vpop.permute.xlu0 %326
        %328 = vrot.lane.b32.xlu0 %v325, 127
        %v329 = vpop.permute.xlu0 %328
        %330 = vrot.lane.b32.xlu0 %v324, 127
        %v331 = vpop.permute.xlu0 %330
        %vm332 = vcmask 1039360
        %v333 = vsel %vm332, %v327, %v329
        %v334 = vsel %vm332, %v329, %v331
        %vm335 = vcmask 31744
        %v337 = vsel %vm335, %v308, 0
        %vm339 = vcmask 1041408
        %v341 = vsel %vm339, %v333, 0
        %v344 = vsel %vm339, %v334, 0
        %v347 = vsel %vm339, %v331, 0
        %349 = vmatprep.subr.bf16.mxu0 %v344
        %350 = vmatpush1.bf16.msra.mxu0 %v341
        %351 = vmatprep.subr.bf16.mxu0 0
        %352 = vmatpush1.bf16.msra.mxu0 0
        %353 = vmatprep.subr.bf16.mxu0 0
        %354 = vmatpush1.bf16.msra.mxu0 0
        %355 = vmatprep.subr.bf16.mxu0 0
        %356 = vmatpush1.bf16.msra.mxu0 0
        %357 = vmatprep.subr.bf16.mxu0 0
        %358 = vmatpush1.bf16.msra.mxu0 0
        %359 = vmatprep.subr.bf16.mxu0 0
        %360 = vmatpush1.bf16.msra.mxu0 0
        %361 = vmatprep.subr.bf16.mxu0 0
        %362 = vmatpush1.bf16.msra.mxu0 0
        %363 = vmatprep.subr.bf16.mxu0 0
        %364 = vmatpush1.bf16.msra.mxu0 0
        %365 = vmatprep.subr.bf16.mxu0 0
        %366 = vmatpush1.bf16.msra.mxu0 0
        %367 = vmatprep.subr.bf16.mxu0 0
        %368 = vmatpush1.bf16.msra.mxu0 0
        %369 = vmatprep.subr.bf16.mxu0 0
        %370 = vmatpush1.bf16.msra.mxu0 0
        %371 = vmatprep.subr.bf16.mxu0 0
        %372 = vmatpush1.bf16.msra.mxu0 0
        %373 = vmatprep.subr.bf16.mxu0 0
        %374 = vmatpush1.bf16.msra.mxu0 0
        %375 = vmatprep.subr.bf16.mxu0 0
        %376 = vmatpush1.bf16.msra.mxu0 0
        %377 = vmatprep.subr.bf16.mxu0 0
        %378 = vmatpush1.bf16.msra.mxu0 0
        %379 = vmatprep.subr.bf16.mxu0 0
        %380 = vmatpush1.bf16.msra.mxu0 0
        %381 = vmatprep.mubr.bf16.mxu0 0
        %382 = vmatmul.mubr.bf16.gmra.mrb[0].mxu0 %v337
        %v383 = vpop.f32.mrb[0].mxu0
        %v384 = vadd.f32 0.0, %v383
        %v385 = vpop.f32.mrb[0].mxu0
        %v386 = vadd.f32 0.0, %v385
        %v387 = vpop.f32.mrb[0].mxu0
        %v388 = vpop.f32.mrb[0].mxu0
        %389 = vdwg.mxu0
        %390 = vmatprep.subr.bf16.mxu0 0
        %391 = vmatpush1.bf16.msra.mxu0 %v347
        %392 = vmatprep.subr.bf16.mxu0 0
        %393 = vmatpush1.bf16.msra.mxu0 0
        %394 = vmatprep.subr.bf16.mxu0 0
        %395 = vmatpush1.bf16.msra.mxu0 0
        %396 = vmatprep.subr.bf16.mxu0 0
        %397 = vmatpush1.bf16.msra.mxu0 0
        %398 = vmatprep.subr.bf16.mxu0 0
        %399 = vmatpush1.bf16.msra.mxu0 0
        %400 = vmatprep.subr.bf16.mxu0 0
        %401 = vmatpush1.bf16.msra.mxu0 0
        %402 = vmatprep.subr.bf16.mxu0 0
        %403 = vmatpush1.bf16.msra.mxu0 0
        %404 = vmatprep.subr.bf16.mxu0 0
        %405 = vmatpush1.bf16.msra.mxu0 0
        %406 = vmatprep.subr.bf16.mxu0 0
        %407 = vmatpush1.bf16.msra.mxu0 0
        %408 = vmatprep.subr.bf16.mxu0 0
        %409 = vmatpush1.bf16.msra.mxu0 0
        %410 = vmatprep.subr.bf16.mxu0 0
        %411 = vmatpush1.bf16.msra.mxu0 0
        %412 = vmatprep.subr.bf16.mxu0 0
        %413 = vmatpush1.bf16.msra.mxu0 0
        %414 = vmatprep.subr.bf16.mxu0 0
        %415 = vmatpush1.bf16.msra.mxu0 0
        %416 = vmatprep.subr.bf16.mxu0 0
        %417 = vmatpush1.bf16.msra.mxu0 0
        %418 = vmatprep.subr.bf16.mxu0 0
        %419 = vmatpush1.bf16.msra.mxu0 0
        %420 = vmatprep.subr.bf16.mxu0 0
        %421 = vmatpush1.bf16.msra.mxu0 0
        %422 = vmatprep.mubr.bf16.mxu0 0
        %423 = vmatmul.mubr.bf16.gmra.mrb[0].mxu0 %v337
        %v424 = vpop.f32.mrb[0].mxu0
        %v425 = vadd.f32 0.0, %v424
        %v426 = vpop.f32.mrb[0].mxu0
        %v427 = vpop.f32.mrb[0].mxu0
        %v428 = vpop.f32.mrb[0].mxu0
        %429 = vdwg.mxu0
        %v431 = vsel %vm335, %v306, 0
        %v434 = vsel %vm339, %v317, 0
        %v437 = vsel %vm339, %v325, 0
        %v440 = vsel %vm339, %v324, 0
        %442 = vmatprep.subr.bf16.mxu0 %v437
        %443 = vmatpush1.bf16.msra.mxu0 %v434
        %444 = vmatprep.subr.bf16.mxu0 0
        %445 = vmatpush1.bf16.msra.mxu0 0
        %446 = vmatprep.subr.bf16.mxu0 0
        %447 = vmatpush1.bf16.msra.mxu0 0
        %448 = vmatprep.subr.bf16.mxu0 0
        %449 = vmatpush1.bf16.msra.mxu0 0
        %450 = vmatprep.subr.bf16.mxu0 0
        %451 = vmatpush1.bf16.msra.mxu0 0
        %452 = vmatprep.subr.bf16.mxu0 0
        %453 = vmatpush1.bf16.msra.mxu0 0
        %454 = vmatprep.subr.bf16.mxu0 0
        %455 = vmatpush1.bf16.msra.mxu0 0
        %456 = vmatprep.subr.bf16.mxu0 0
        %457 = vmatpush1.bf16.msra.mxu0 0
        %458 = vmatprep.subr.bf16.mxu0 0
        %459 = vmatpush1.bf16.msra.mxu0 0
        %460 = vmatprep.subr.bf16.mxu0 0
        %461 = vmatpush1.bf16.msra.mxu0 0
        %462 = vmatprep.subr.bf16.mxu0 0
        %463 = vmatpush1.bf16.msra.mxu0 0
        %464 = vmatprep.subr.bf16.mxu0 0
        %465 = vmatpush1.bf16.msra.mxu0 0
        %466 = vmatprep.subr.bf16.mxu0 0
        %467 = vmatpush1.bf16.msra.mxu0 0
        %468 = vmatprep.subr.bf16.mxu0 0
        %469 = vmatpush1.bf16.msra.mxu0 0
        %470 = vmatprep.subr.bf16.mxu0 0
        %471 = vmatpush1.bf16.msra.mxu0 0
        %472 = vmatprep.subr.bf16.mxu0 0
        %473 = vmatpush1.bf16.msra.mxu0 0
        %474 = vmatprep.mubr.bf16.mxu0 0
        %475 = vmatmul.mubr.bf16.gmra.mrb[0].mxu0 %v431
        %v476 = vpop.f32.mrb[0].mxu0
        %v477 = vadd.f32 %v384, %v476
        %v478 = vpop.f32.mrb[0].mxu0
        %v479 = vadd.f32 %v386, %v478
        %v480 = vpop.f32.mrb[0].mxu0
        %v481 = vpop.f32.mrb[0].mxu0
        %482 = vdwg.mxu0
        %483 = vmatprep.subr.bf16.mxu0 0
        %484 = vmatpush1.bf16.msra.mxu0 %v440
        %485 = vmatprep.subr.bf16.mxu0 0
        %486 = vmatpush1.bf16.msra.mxu0 0
        %487 = vmatprep.subr.bf16.mxu0 0
        %488 = vmatpush1.bf16.msra.mxu0 0
        %489 = vmatprep.subr.bf16.mxu0 0
        %490 = vmatpush1.bf16.msra.mxu0 0
        %491 = vmatprep.subr.bf16.mxu0 0
        %492 = vmatpush1.bf16.msra.mxu0 0
        %493 = vmatprep.subr.bf16.mxu0 0
        %494 = vmatpush1.bf16.msra.mxu0 0
        %495 = vmatprep.subr.bf16.mxu0 0
        %496 = vmatpush1.bf16.msra.mxu0 0
        %497 = vmatprep.subr.bf16.mxu0 0
        %498 = vmatpush1.bf16.msra.mxu0 0
        %499 = vmatprep.subr.bf16.mxu0 0
        %500 = vmatpush1.bf16.msra.mxu0 0
        %501 = vmatprep.subr.bf16.mxu0 0
        %502 = vmatpush1.bf16.msra.mxu0 0
        %503 = vmatprep.subr.bf16.mxu0 0
        %504 = vmatpush1.bf16.msra.mxu0 0
        %505 = vmatprep.subr.bf16.mxu0 0
        %506 = vmatpush1.bf16.msra.mxu0 0
        %507 = vmatprep.subr.bf16.mxu0 0
        %508 = vmatpush1.bf16.msra.mxu0 0
        %509 = vmatprep.subr.bf16.mxu0 0
        %510 = vmatpush1.bf16.msra.mxu0 0
        %511 = vmatprep.subr.bf16.mxu0 0
        %512 = vmatpush1.bf16.msra.mxu0 0
        %513 = vmatprep.subr.bf16.mxu0 0
        %514 = vmatpush1.bf16.msra.mxu0 0
        %515 = vmatprep.mubr.bf16.mxu0 0
        %516 = vmatmul.mubr.bf16.gmra.mrb[0].mxu0 %v431
        %v517 = vpop.f32.mrb[0].mxu0
        %v518 = vadd.f32 %v425, %v517
        %v519 = vpop.f32.mrb[0].mxu0
        %v520 = vpop.f32.mrb[0].mxu0
        %v521 = vpop.f32.mrb[0].mxu0
        %522 = vdwg.mxu0
        %s523 = scalar_lea.vmem %s1, 8
        %v524 = vld [vmem:[%s523] sm:$0xf]
        %525 = vrot.lane.b32.xlu0 %v317, 126
        %v526 = vpop.permute.xlu0 %525
        %527 = vrot.lane.b32.xlu0 %v325, 126
        %v528 = vpop.permute.xlu0 %527
        %529 = vrot.lane.b32.xlu0 %v324, 126
        %v530 = vpop.permute.xlu0 %529
        %vm531 = vcmask 1031168
        %v532 = vsel %vm531, %v526, %v528
        %v533 = vsel %vm531, %v528, %v530
        %v535 = vsel %vm335, %v524, 0
        %v538 = vsel %vm339, %v532, 0
        %v541 = vsel %vm339, %v533, 0
        %v544 = vsel %vm339, %v530, 0
        %546 = vmatprep.subr.bf16.mxu0 %v541
        %547 = vmatpush1.bf16.msra.mxu0 %v538
        %548 = vmatprep.subr.bf16.mxu0 0
        %549 = vmatpush1.bf16.msra.mxu0 0
        %550 = vmatprep.subr.bf16.mxu0 0
        %551 = vmatpush1.bf16.msra.mxu0 0
        %552 = vmatprep.subr.bf16.mxu0 0
        %553 = vmatpush1.bf16.msra.mxu0 0
        %554 = vmatprep.subr.bf16.mxu0 0
        %555 = vmatpush1.bf16.msra.mxu0 0
        %556 = vmatprep.subr.bf16.mxu0 0
        %557 = vmatpush1.bf16.msra.mxu0 0
        %558 = vmatprep.subr.bf16.mxu0 0
        %559 = vmatpush1.bf16.msra.mxu0 0
        %560 = vmatprep.subr.bf16.mxu0 0
        %561 = vmatpush1.bf16.msra.mxu0 0
        %562 = vmatprep.subr.bf16.mxu0 0
        %563 = vmatpush1.bf16.msra.mxu0 0
        %564 = vmatprep.subr.bf16.mxu0 0
        %565 = vmatpush1.bf16.msra.mxu0 0
        %566 = vmatprep.subr.bf16.mxu0 0
        %567 = vmatpush1.bf16.msra.mxu0 0
        %568 = vmatprep.subr.bf16.mxu0 0
        %569 = vmatpush1.bf16.msra.mxu0 0
        %570 = vmatprep.subr.bf16.mxu0 0
        %571 = vmatpush1.bf16.msra.mxu0 0
        %572 = vmatprep.subr.bf16.mxu0 0
        %573 = vmatpush1.bf16.msra.mxu0 0
        %574 = vmatprep.subr.bf16.mxu0 0
        %575 = vmatpush1.bf16.msra.mxu0 0
        %576 = vmatprep.subr.bf16.mxu0 0
        %577 = vmatpush1.bf16.msra.mxu0 0
        %578 = vmatprep.mubr.bf16.mxu0 0
        %579 = vmatmul.mubr.bf16.gmra.mrb[0].mxu0 %v535
        %v580 = vpop.f32.mrb[0].mxu0
        %v581 = vadd.f32 0.0, %v580
        %v582 = vpop.f32.mrb[0].mxu0
        %v583 = vadd.f32 0.0, %v582
        %v584 = vpop.f32.mrb[0].mxu0
        %v585 = vpop.f32.mrb[0].mxu0
        %586 = vdwg.mxu0
        %587 = vmatprep.subr.bf16.mxu0 0
        %588 = vmatpush1.bf16.msra.mxu0 %v544
        %589 = vmatprep.subr.bf16.mxu0 0
        %590 = vmatpush1.bf16.msra.mxu0 0
        %591 = vmatprep.subr.bf16.mxu0 0
        %592 = vmatpush1.bf16.msra.mxu0 0
        %593 = vmatprep.subr.bf16.mxu0 0
        %594 = vmatpush1.bf16.msra.mxu0 0
        %595 = vmatprep.subr.bf16.mxu0 0
        %596 = vmatpush1.bf16.msra.mxu0 0
        %597 = vmatprep.subr.bf16.mxu0 0
        %598 = vmatpush1.bf16.msra.mxu0 0
        %599 = vmatprep.subr.bf16.mxu0 0
        %600 = vmatpush1.bf16.msra.mxu0 0
        %601 = vmatprep.subr.bf16.mxu0 0
        %602 = vmatpush1.bf16.msra.mxu0 0
        %603 = vmatprep.subr.bf16.mxu0 0
        %604 = vmatpush1.bf16.msra.mxu0 0
        %605 = vmatprep.subr.bf16.mxu0 0
        %606 = vmatpush1.bf16.msra.mxu0 0
        %607 = vmatprep.subr.bf16.mxu0 0
        %608 = vmatpush1.bf16.msra.mxu0 0
        %609 = vmatprep.subr.bf16.mxu0 0
        %610 = vmatpush1.bf16.msra.mxu0 0
        %611 = vmatprep.subr.bf16.mxu0 0
        %612 = vmatpush1.bf16.msra.mxu0 0
        %613 = vmatprep.subr.bf16.mxu0 0
        %614 = vmatpush1.bf16.msra.mxu0 0
        %615 = vmatprep.subr.bf16.mxu0 0
        %616 = vmatpush1.bf16.msra.mxu0 0
        %617 = vmatprep.subr.bf16.mxu0 0
        %618 = vmatpush1.bf16.msra.mxu0 0
        %619 = vmatprep.mubr.bf16.mxu0 0
        %620 = vmatmul.mubr.bf16.gmra.mrb[0].mxu0 %v535
        %v621 = vpop.f32.mrb[0].mxu0
        %v622 = vadd.f32 0.0, %v621
        %v623 = vpop.f32.mrb[0].mxu0
        %v624 = vpop.f32.mrb[0].mxu0
        %v625 = vpop.f32.mrb[0].mxu0
        %626 = vdwg.mxu0
        %v627 = vadd.f32 %v477, %v581
        %v628 = vadd.f32 %v479, %v583
        %v629 = vadd.f32 %v518, %v622
        %s630 = scalar_lea.vmem %s1, 12
        %v631 = vld [vmem:[%s630] sm:$0xf]
        %632 = vrot.lane.b32.xlu0 %v317, 110
        %v633 = vpop.permute.xlu0 %632
        %634 = vrot.lane.b32.xlu0 %v325, 110
        %v635 = vpop.permute.xlu0 %634
        %636 = vrot.lane.b32.xlu0 %v324, 110
        %v637 = vpop.permute.xlu0 %636
        %vm638 = vcmask 900096
        %v639 = vsel %vm638, %v633, %v635
        %v640 = vsel %vm638, %v635, %v637
        %v642 = vsel %vm335, %v631, 0
        %v645 = vsel %vm339, %v639, 0
        %v648 = vsel %vm339, %v640, 0
        %v651 = vsel %vm339, %v637, 0
        %653 = vmatprep.subr.bf16.mxu0 %v648
        %654 = vmatpush1.bf16.msra.mxu0 %v645
        %655 = vmatprep.subr.bf16.mxu0 0
        %656 = vmatpush1.bf16.msra.mxu0 0
        %657 = vmatprep.subr.bf16.mxu0 0
        %658 = vmatpush1.bf16.msra.mxu0 0
        %659 = vmatprep.subr.bf16.mxu0 0
        %660 = vmatpush1.bf16.msra.mxu0 0
        %661 = vmatprep.subr.bf16.mxu0 0
        %662 = vmatpush1.bf16.msra.mxu0 0
        %663 = vmatprep.subr.bf16.mxu0 0
        %664 = vmatpush1.bf16.msra.mxu0 0
        %665 = vmatprep.subr.bf16.mxu0 0
        %666 = vmatpush1.bf16.msra.mxu0 0
        %667 = vmatprep.subr.bf16.mxu0 0
        %668 = vmatpush1.bf16.msra.mxu0 0
        %669 = vmatprep.subr.bf16.mxu0 0
        %670 = vmatpush1.bf16.msra.mxu0 0
        %671 = vmatprep.subr.bf16.mxu0 0
        %672 = vmatpush1.bf16.msra.mxu0 0
        %673 = vmatprep.subr.bf16.mxu0 0
        %674 = vmatpush1.bf16.msra.mxu0 0
        %675 = vmatprep.subr.bf16.mxu0 0
        %676 = vmatpush1.bf16.msra.mxu0 0
        %677 = vmatprep.subr.bf16.mxu0 0
        %678 = vmatpush1.bf16.msra.mxu0 0
        %679 = vmatprep.subr.bf16.mxu0 0
        %680 = vmatpush1.bf16.msra.mxu0 0
        %681 = vmatprep.subr.bf16.mxu0 0
        %682 = vmatpush1.bf16.msra.mxu0 0
        %683 = vmatprep.subr.bf16.mxu0 0
        %684 = vmatpush1.bf16.msra.mxu0 0
        %685 = vmatprep.mubr.bf16.mxu0 0
        %686 = vmatmul.mubr.bf16.gmra.mrb[0].mxu0 %v642
        %v687 = vpop.f32.mrb[0].mxu0
        %v688 = vadd.f32 0.0, %v687
        %v689 = vpop.f32.mrb[0].mxu0
        %v690 = vadd.f32 0.0, %v689
        %v691 = vpop.f32.mrb[0].mxu0
        %v692 = vpop.f32.mrb[0].mxu0
        %693 = vdwg.mxu0
        %694 = vmatprep.subr.bf16.mxu0 0
        %695 = vmatpush1.bf16.msra.mxu0 %v651
        %696 = vmatprep.subr.bf16.mxu0 0
        %697 = vmatpush1.bf16.msra.mxu0 0
        %698 = vmatprep.subr.bf16.mxu0 0
        %699 = vmatpush1.bf16.msra.mxu0 0
        %700 = vmatprep.subr.bf16.mxu0 0
        %701 = vmatpush1.bf16.msra.mxu0 0
        %702 = vmatprep.subr.bf16.mxu0 0
        %703 = vmatpush1.bf16.msra.mxu0 0
        %704 = vmatprep.subr.bf16.mxu0 0
        %705 = vmatpush1.bf16.msra.mxu0 0
        %706 = vmatprep.subr.bf16.mxu0 0
        %707 = vmatpush1.bf16.msra.mxu0 0
        %708 = vmatprep.subr.bf16.mxu0 0
        %709 = vmatpush1.bf16.msra.mxu0 0
        %710 = vmatprep.subr.bf16.mxu0 0
        %711 = vmatpush1.bf16.msra.mxu0 0
        %712 = vmatprep.subr.bf16.mxu0 0
        %713 = vmatpush1.bf16.msra.mxu0 0
        %714 = vmatprep.subr.bf16.mxu0 0
        %715 = vmatpush1.bf16.msra.mxu0 0
        %716 = vmatprep.subr.bf16.mxu0 0
        %717 = vmatpush1.bf16.msra.mxu0 0
        %718 = vmatprep.subr.bf16.mxu0 0
        %719 = vmatpush1.bf16.msra.mxu0 0
        %720 = vmatprep.subr.bf16.mxu0 0
        %721 = vmatpush1.bf16.msra.mxu0 0
        %722 = vmatprep.subr.bf16.mxu0 0
        %723 = vmatpush1.bf16.msra.mxu0 0
        %724 = vmatprep.subr.bf16.mxu0 0
        %725 = vmatpush1.bf16.msra.mxu0 0
        %726 = vmatprep.mubr.bf16.mxu0 0
        %727 = vmatmul.mubr.bf16.gmra.mrb[0].mxu0 %v642
        %v728 = vpop.f32.mrb[0].mxu0
        %v729 = vadd.f32 0.0, %v728
        %v730 = vpop.f32.mrb[0].mxu0
        %v731 = vpop.f32.mrb[0].mxu0
        %v732 = vpop.f32.mrb[0].mxu0
        %733 = vdwg.mxu0
        %v734 = vadd.f32 %v627, %v688
        %v735 = vadd.f32 %v628, %v690
        %v736 = vadd.f32 %v629, %v729
        %s737 = scalar_lea.vmem %s1, 16
        %v738 = vld [vmem:[%s737] sm:$0xf]
        %739 = vrot.lane.b32.xlu0 %v317, 109
        %v740 = vpop.permute.xlu0 %739
        %741 = vrot.lane.b32.xlu0 %v325, 109
        %v742 = vpop.permute.xlu0 %741
        %743 = vrot.lane.b32.xlu0 %v324, 109
        %v744 = vpop.permute.xlu0 %743
        %vm745 = vcmask 891904
        %v746 = vsel %vm745, %v740, %v742
        %v747 = vsel %vm745, %v742, %v744
        %v749 = vsel %vm335, %v738, 0
        %v752 = vsel %vm339, %v746, 0
        %v755 = vsel %vm339, %v747, 0
        %v758 = vsel %vm339, %v744, 0
        %760 = vmatprep.subr.bf16.mxu0 %v755
        %761 = vmatpush1.bf16.msra.mxu0 %v752
        %762 = vmatprep.subr.bf16.mxu0 0
        %763 = vmatpush1.bf16.msra.mxu0 0
        %764 = vmatprep.subr.bf16.mxu0 0
        %765 = vmatpush1.bf16.msra.mxu0 0
        %766 = vmatprep.subr.bf16.mxu0 0
        %767 = vmatpush1.bf16.msra.mxu0 0
        %768 = vmatprep.subr.bf16.mxu0 0
        %769 = vmatpush1.bf16.msra.mxu0 0
        %770 = vmatprep.subr.bf16.mxu0 0
        %771 = vmatpush1.bf16.msra.mxu0 0
        %772 = vmatprep.subr.bf16.mxu0 0
        %773 = vmatpush1.bf16.msra.mxu0 0
        %774 = vmatprep.subr.bf16.mxu0 0
        %775 = vmatpush1.bf16.msra.mxu0 0
        %776 = vmatprep.subr.bf16.mxu0 0
        %777 = vmatpush1.bf16.msra.mxu0 0
        %778 = vmatprep.subr.bf16.mxu0 0
        %779 = vmatpush1.bf16.msra.mxu0 0
        %780 = vmatprep.subr.bf16.mxu0 0
        %781 = vmatpush1.bf16.msra.mxu0 0
        %782 = vmatprep.subr.bf16.mxu0 0
        %783 = vmatpush1.bf16.msra.mxu0 0
        %784 = vmatprep.subr.bf16.mxu0 0
        %785 = vmatpush1.bf16.msra.mxu0 0
        %786 = vmatprep.subr.bf16.mxu0 0
        %787 = vmatpush1.bf16.msra.mxu0 0
        %788 = vmatprep.subr.bf16.mxu0 0
        %789 = vmatpush1.bf16.msra.mxu0 0
        %790 = vmatprep.subr.bf16.mxu0 0
        %791 = vmatpush1.bf16.msra.mxu0 0
        %792 = vmatprep.mubr.bf16.mxu0 0
        %793 = vmatmul.mubr.bf16.gmra.mrb[0].mxu0 %v749
        %v794 = vpop.f32.mrb[0].mxu0
        %v795 = vadd.f32 0.0, %v794
        %v796 = vpop.f32.mrb[0].mxu0
        %v797 = vadd.f32 0.0, %v796
        %v798 = vpop.f32.mrb[0].mxu0
        %v799 = vpop.f32.mrb[0].mxu0
        %800 = vdwg.mxu0
        %801 = vmatprep.subr.bf16.mxu0 0
        %802 = vmatpush1.bf16.msra.mxu0 %v758
        %803 = vmatprep.subr.bf16.mxu0 0
        %804 = vmatpush1.bf16.msra.mxu0 0
        %805 = vmatprep.subr.bf16.mxu0 0
        %806 = vmatpush1.bf16.msra.mxu0 0
        %807 = vmatprep.subr.bf16.mxu0 0
        %808 = vmatpush1.bf16.msra.mxu0 0
        %809 = vmatprep.subr.bf16.mxu0 0
        %810 = vmatpush1.bf16.msra.mxu0 0
        %811 = vmatprep.subr.bf16.mxu0 0
        %812 = vmatpush1.bf16.msra.mxu0 0
        %813 = vmatprep.subr.bf16.mxu0 0
        %814 = vmatpush1.bf16.msra.mxu0 0
        %815 = vmatprep.subr.bf16.mxu0 0
        %816 = vmatpush1.bf16.msra.mxu0 0
        %817 = vmatprep.subr.bf16.mxu0 0
        %818 = vmatpush1.bf16.msra.mxu0 0
        %819 = vmatprep.subr.bf16.mxu0 0
        %820 = vmatpush1.bf16.msra.mxu0 0
        %821 = vmatprep.subr.bf16.mxu0 0
        %822 = vmatpush1.bf16.msra.mxu0 0
        %823 = vmatprep.subr.bf16.mxu0 0
        %824 = vmatpush1.bf16.msra.mxu0 0
        %825 = vmatprep.subr.bf16.mxu0 0
        %826 = vmatpush1.bf16.msra.mxu0 0
        %827 = vmatprep.subr.bf16.mxu0 0
        %828 = vmatpush1.bf16.msra.mxu0 0
        %829 = vmatprep.subr.bf16.mxu0 0
        %830 = vmatpush1.bf16.msra.mxu0 0
        %831 = vmatprep.subr.bf16.mxu0 0
        %832 = vmatpush1.bf16.msra.mxu0 0
        %833 = vmatprep.mubr.bf16.mxu0 0
        %834 = vmatmul.mubr.bf16.gmra.mrb[0].mxu0 %v749
        %v835 = vpop.f32.mrb[0].mxu0
        %v836 = vadd.f32 0.0, %v835
        %v837 = vpop.f32.mrb[0].mxu0
        %v838 = vpop.f32.mrb[0].mxu0
        %v839 = vpop.f32.mrb[0].mxu0
        %840 = vdwg.mxu0
        %v841 = vadd.f32 %v734, %v795
        %v842 = vadd.f32 %v735, %v797
        %v843 = vadd.f32 %v736, %v836
        %s844 = scalar_lea.vmem %s1, 20
        %v845 = vld [vmem:[%s844] sm:$0xf]
        %846 = vrot.lane.b32.xlu0 %v317, 108
        %v847 = vpop.permute.xlu0 %846
        %848 = vrot.lane.b32.xlu0 %v325, 108
        %v849 = vpop.permute.xlu0 %848
        %850 = vrot.lane.b32.xlu0 %v324, 108
        %v851 = vpop.permute.xlu0 %850
        %vm852 = vcmask 883712
        %v853 = vsel %vm852, %v847, %v849
        %v854 = vsel %vm852, %v849, %v851
        %v856 = vsel %vm335, %v845, 0
        %v859 = vsel %vm339, %v853, 0
        %v862 = vsel %vm339, %v854, 0
        %v865 = vsel %vm339, %v851, 0
        %867 = vmatprep.subr.bf16.mxu0 %v862
        %868 = vmatpush1.bf16.msra.mxu0 %v859
        %869 = vmatprep.subr.bf16.mxu0 0
        %870 = vmatpush1.bf16.msra.mxu0 0
        %871 = vmatprep.subr.bf16.mxu0 0
        %872 = vmatpush1.bf16.msra.mxu0 0
        %873 = vmatprep.subr.bf16.mxu0 0
        %874 = vmatpush1.bf16.msra.mxu0 0
        %875 = vmatprep.subr.bf16.mxu0 0
        %876 = vmatpush1.bf16.msra.mxu0 0
        %877 = vmatprep.subr.bf16.mxu0 0
        %878 = vmatpush1.bf16.msra.mxu0 0
        %879 = vmatprep.subr.bf16.mxu0 0
        %880 = vmatpush1.bf16.msra.mxu0 0
        %881 = vmatprep.subr.bf16.mxu0 0
        %882 = vmatpush1.bf16.msra.mxu0 0
        %883 = vmatprep.subr.bf16.mxu0 0
        %884 = vmatpush1.bf16.msra.mxu0 0
        %885 = vmatprep.subr.bf16.mxu0 0
        %886 = vmatpush1.bf16.msra.mxu0 0
        %887 = vmatprep.subr.bf16.mxu0 0
        %888 = vmatpush1.bf16.msra.mxu0 0
        %889 = vmatprep.subr.bf16.mxu0 0
        %890 = vmatpush1.bf16.msra.mxu0 0
        %891 = vmatprep.subr.bf16.mxu0 0
        %892 = vmatpush1.bf16.msra.mxu0 0
        %893 = vmatprep.subr.bf16.mxu0 0
        %894 = vmatpush1.bf16.msra.mxu0 0
        %895 = vmatprep.subr.bf16.mxu0 0
        %896 = vmatpush1.bf16.msra.mxu0 0
        %897 = vmatprep.subr.bf16.mxu0 0
        %898 = vmatpush1.bf16.msra.mxu0 0
        %899 = vmatprep.mubr.bf16.mxu0 0
        %900 = vmatmul.mubr.bf16.gmra.mrb[0].mxu0 %v856
        %v901 = vpop.f32.mrb[0].mxu0
        %v902 = vadd.f32 0.0, %v901
        %v903 = vpop.f32.mrb[0].mxu0
        %v904 = vadd.f32 0.0, %v903
        %v905 = vpop.f32.mrb[0].mxu0
        %v906 = vpop.f32.mrb[0].mxu0
        %907 = vdwg.mxu0
        %908 = vmatprep.subr.bf16.mxu0 0
        %909 = vmatpush1.bf16.msra.mxu0 %v865
        %910 = vmatprep.subr.bf16.mxu0 0
        %911 = vmatpush1.bf16.msra.mxu0 0
        %912 = vmatprep.subr.bf16.mxu0 0
        %913 = vmatpush1.bf16.msra.mxu0 0
        %914 = vmatprep.subr.bf16.mxu0 0
        %915 = vmatpush1.bf16.msra.mxu0 0
        %916 = vmatprep.subr.bf16.mxu0 0
        %917 = vmatpush1.bf16.msra.mxu0 0
        %918 = vmatprep.subr.bf16.mxu0 0
        %919 = vmatpush1.bf16.msra.mxu0 0
        %920 = vmatprep.subr.bf16.mxu0 0
        %921 = vmatpush1.bf16.msra.mxu0 0
        %922 = vmatprep.subr.bf16.mxu0 0
        %923 = vmatpush1.bf16.msra.mxu0 0
        %924 = vmatprep.subr.bf16.mxu0 0
        %925 = vmatpush1.bf16.msra.mxu0 0
        %926 = vmatprep.subr.bf16.mxu0 0
        %927 = vmatpush1.bf16.msra.mxu0 0
        %928 = vmatprep.subr.bf16.mxu0 0
        %929 = vmatpush1.bf16.msra.mxu0 0
        %930 = vmatprep.subr.bf16.mxu0 0
        %931 = vmatpush1.bf16.msra.mxu0 0
        %932 = vmatprep.subr.bf16.mxu0 0
        %933 = vmatpush1.bf16.msra.mxu0 0
        %934 = vmatprep.subr.bf16.mxu0 0
        %935 = vmatpush1.bf16.msra.mxu0 0
        %936 = vmatprep.subr.bf16.mxu0 0
        %937 = vmatpush1.bf16.msra.mxu0 0
        %938 = vmatprep.subr.bf16.mxu0 0
        %939 = vmatpush1.bf16.msra.mxu0 0
        %940 = vmatprep.mubr.bf16.mxu0 0
        %941 = vmatmul.mubr.bf16.gmra.mrb[0].mxu0 %v856
        %v942 = vpop.f32.mrb[0].mxu0
        %v943 = vadd.f32 0.0, %v942
        %v944 = vpop.f32.mrb[0].mxu0
        %v945 = vpop.f32.mrb[0].mxu0
        %v946 = vpop.f32.mrb[0].mxu0
        %947 = vdwg.mxu0
        %v948 = vadd.f32 %v841, %v902
        %v949 = vadd.f32 %v842, %v904
        %v950 = vadd.f32 %v843, %v943
        %s951 = scalar_lea.vmem %s1, 24
        %v952 = vld [vmem:[%s951] sm:$0xf]
        %953 = vrot.lane.b32.xlu0 %v317, 92
        %v954 = vpop.permute.xlu0 %953
        %955 = vrot.lane.b32.xlu0 %v325, 92
        %v956 = vpop.permute.xlu0 %955
        %957 = vrot.lane.b32.xlu0 %v324, 92
        %v958 = vpop.permute.xlu0 %957
        %vm959 = vcmask 752640
        %v960 = vsel %vm959, %v954, %v956
        %v961 = vsel %vm959, %v956, %v958
        %v963 = vsel %vm335, %v952, 0
        %v966 = vsel %vm339, %v960, 0
        %v969 = vsel %vm339, %v961, 0
        %v972 = vsel %vm339, %v958, 0
        %974 = vmatprep.subr.bf16.mxu0 %v969
        %975 = vmatpush1.bf16.msra.mxu0 %v966
        %976 = vmatprep.subr.bf16.mxu0 0
        %977 = vmatpush1.bf16.msra.mxu0 0
        %978 = vmatprep.subr.bf16.mxu0 0
        %979 = vmatpush1.bf16.msra.mxu0 0
        %980 = vmatprep.subr.bf16.mxu0 0
        %981 = vmatpush1.bf16.msra.mxu0 0
        %982 = vmatprep.subr.bf16.mxu0 0
        %983 = vmatpush1.bf16.msra.mxu0 0
        %984 = vmatprep.subr.bf16.mxu0 0
        %985 = vmatpush1.bf16.msra.mxu0 0
        %986 = vmatprep.subr.bf16.mxu0 0
        %987 = vmatpush1.bf16.msra.mxu0 0
        %988 = vmatprep.subr.bf16.mxu0 0
        %989 = vmatpush1.bf16.msra.mxu0 0
        %990 = vmatprep.subr.bf16.mxu0 0
        %991 = vmatpush1.bf16.msra.mxu0 0
        %992 = vmatprep.subr.bf16.mxu0 0
        %993 = vmatpush1.bf16.msra.mxu0 0
        %994 = vmatprep.subr.bf16.mxu0 0
        %995 = vmatpush1.bf16.msra.mxu0 0
        %996 = vmatprep.subr.bf16.mxu0 0
        %997 = vmatpush1.bf16.msra.mxu0 0
        %998 = vmatprep.subr.bf16.mxu0 0
        %999 = vmatpush1.bf16.msra.mxu0 0
        %1000 = vmatprep.subr.bf16.mxu0 0
        %1001 = vmatpush1.bf16.msra.mxu0 0
        %1002 = vmatprep.subr.bf16.mxu0 0
        %1003 = vmatpush1.bf16.msra.mxu0 0
        %1004 = vmatprep.subr.bf16.mxu0 0
        %1005 = vmatpush1.bf16.msra.mxu0 0
        %1006 = vmatprep.mubr.bf16.mxu0 0
        %1007 = vmatmul.mubr.bf16.gmra.mrb[0].mxu0 %v963
        %v1008 = vpop.f32.mrb[0].mxu0
        %v1009 = vadd.f32 0.0, %v1008
        %v1010 = vpop.f32.mrb[0].mxu0
        %v1011 = vadd.f32 0.0, %v1010
        %v1012 = vpop.f32.mrb[0].mxu0
        %v1013 = vpop.f32.mrb[0].mxu0
        %1014 = vdwg.mxu0
        %1015 = vmatprep.subr.bf16.mxu0 0
        %1016 = vmatpush1.bf16.msra.mxu0 %v972
        %1017 = vmatprep.subr.bf16.mxu0 0
        %1018 = vmatpush1.bf16.msra.mxu0 0
        %1019 = vmatprep.subr.bf16.mxu0 0
        %1020 = vmatpush1.bf16.msra.mxu0 0
        %1021 = vmatprep.subr.bf16.mxu0 0
        %1022 = vmatpush1.bf16.msra.mxu0 0
        %1023 = vmatprep.subr.bf16.mxu0 0
        %1024 = vmatpush1.bf16.msra.mxu0 0
        %1025 = vmatprep.subr.bf16.mxu0 0
        %1026 = vmatpush1.bf16.msra.mxu0 0
        %1027 = vmatprep.subr.bf16.mxu0 0
        %1028 = vmatpush1.bf16.msra.mxu0 0
        %1029 = vmatprep.subr.bf16.mxu0 0
        %1030 = vmatpush1.bf16.msra.mxu0 0
        %1031 = vmatprep.subr.bf16.mxu0 0
        %1032 = vmatpush1.bf16.msra.mxu0 0
        %1033 = vmatprep.subr.bf16.mxu0 0
        %1034 = vmatpush1.bf16.msra.mxu0 0
        %1035 = vmatprep.subr.bf16.mxu0 0
        %1036 = vmatpush1.bf16.msra.mxu0 0
        %1037 = vmatprep.subr.bf16.mxu0 0
        %1038 = vmatpush1.bf16.msra.mxu0 0
        %1039 = vmatprep.subr.bf16.mxu0 0
        %1040 = vmatpush1.bf16.msra.mxu0 0
        %1041 = vmatprep.subr.bf16.mxu0 0
        %1042 = vmatpush1.bf16.msra.mxu0 0
        %1043 = vmatprep.subr.bf16.mxu0 0
        %1044 = vmatpush1.bf16.msra.mxu0 0
        %1045 = vmatprep.subr.bf16.mxu0 0
        %1046 = vmatpush1.bf16.msra.mxu0 0
        %1047 = vmatprep.mubr.bf16.mxu0 0
        %1048 = vmatmul.mubr.bf16.gmra.mrb[0].mxu0 %v963
        %v1049 = vpop.f32.mrb[0].mxu0
        %v1050 = vadd.f32 0.0, %v1049
        %v1051 = vpop.f32.mrb[0].mxu0
        %v1052 = vpop.f32.mrb[0].mxu0
        %v1053 = vpop.f32.mrb[0].mxu0
        %1054 = vdwg.mxu0
        %v1055 = vadd.f32 %v948, %v1009
        %v1056 = vadd.f32 %v949, %v1011
        %v1057 = vadd.f32 %v950, %v1050
        %s1058 = scalar_lea.vmem %s1, 28
        %v1059 = vld [vmem:[%s1058] sm:$0xf]
        %1060 = vrot.lane.b32.xlu0 %v317, 91
        %v1061 = vpop.permute.xlu0 %1060
        %1062 = vrot.lane.b32.xlu0 %v325, 91
        %v1063 = vpop.permute.xlu0 %1062
        %1064 = vrot.lane.b32.xlu0 %v324, 91
        %v1065 = vpop.permute.xlu0 %1064
        %vm1066 = vcmask 744448
        %v1067 = vsel %vm1066, %v1061, %v1063
        %v1068 = vsel %vm1066, %v1063, %v1065
        %v1070 = vsel %vm335, %v1059, 0
        %v1073 = vsel %vm339, %v1067, 0
        %v1076 = vsel %vm339, %v1068, 0
        %v1079 = vsel %vm339, %v1065, 0
        %1081 = vmatprep.subr.bf16.mxu0 %v1076
        %1082 = vmatpush1.bf16.msra.mxu0 %v1073
        %1083 = vmatprep.subr.bf16.mxu0 0
        %1084 = vmatpush1.bf16.msra.mxu0 0
        %1085 = vmatprep.subr.bf16.mxu0 0
        %1086 = vmatpush1.bf16.msra.mxu0 0
        %1087 = vmatprep.subr.bf16.mxu0 0
        %1088 = vmatpush1.bf16.msra.mxu0 0
        %1089 = vmatprep.subr.bf16.mxu0 0
        %1090 = vmatpush1.bf16.msra.mxu0 0
        %1091 = vmatprep.subr.bf16.mxu0 0
        %1092 = vmatpush1.bf16.msra.mxu0 0
        %1093 = vmatprep.subr.bf16.mxu0 0
        %1094 = vmatpush1.bf16.msra.mxu0 0
        %1095 = vmatprep.subr.bf16.mxu0 0
        %1096 = vmatpush1.bf16.msra.mxu0 0
        %1097 = vmatprep.subr.bf16.mxu0 0
        %1098 = vmatpush1.bf16.msra.mxu0 0
        %1099 = vmatprep.subr.bf16.mxu0 0
        %1100 = vmatpush1.bf16.msra.mxu0 0
        %1101 = vmatprep.subr.bf16.mxu0 0
        %1102 = vmatpush1.bf16.msra.mxu0 0
        %1103 = vmatprep.subr.bf16.mxu0 0
        %1104 = vmatpush1.bf16.msra.mxu0 0
        %1105 = vmatprep.subr.bf16.mxu0 0
        %1106 = vmatpush1.bf16.msra.mxu0 0
        %1107 = vmatprep.subr.bf16.mxu0 0
        %1108 = vmatpush1.bf16.msra.mxu0 0
        %1109 = vmatprep.subr.bf16.mxu0 0
        %1110 = vmatpush1.bf16.msra.mxu0 0
        %1111 = vmatprep.subr.bf16.mxu0 0
        %1112 = vmatpush1.bf16.msra.mxu0 0
        %1113 = vmatprep.mubr.bf16.mxu0 0
        %1114 = vmatmul.mubr.bf16.gmra.mrb[0].mxu0 %v1070
        %v1115 = vpop.f32.mrb[0].mxu0
        %v1116 = vadd.f32 0.0, %v1115
        %v1117 = vpop.f32.mrb[0].mxu0
        %v1118 = vadd.f32 0.0, %v1117
        %v1119 = vpop.f32.mrb[0].mxu0
        %v1120 = vpop.f32.mrb[0].mxu0
        %1121 = vdwg.mxu0
        %1122 = vmatprep.subr.bf16.mxu0 0
        %1123 = vmatpush1.bf16.msra.mxu0 %v1079
        %1124 = vmatprep.subr.bf16.mxu0 0
        %1125 = vmatpush1.bf16.msra.mxu0 0
        %1126 = vmatprep.subr.bf16.mxu0 0
        %1127 = vmatpush1.bf16.msra.mxu0 0
        %1128 = vmatprep.subr.bf16.mxu0 0
        %1129 = vmatpush1.bf16.msra.mxu0 0
        %1130 = vmatprep.subr.bf16.mxu0 0
        %1131 = vmatpush1.bf16.msra.mxu0 0
        %1132 = vmatprep.subr.bf16.mxu0 0
        %1133 = vmatpush1.bf16.msra.mxu0 0
        %1134 = vmatprep.subr.bf16.mxu0 0
        %1135 = vmatpush1.bf16.msra.mxu0 0
        %1136 = vmatprep.subr.bf16.mxu0 0
        %1137 = vmatpush1.bf16.msra.mxu0 0
        %1138 = vmatprep.subr.bf16.mxu0 0
        %1139 = vmatpush1.bf16.msra.mxu0 0
        %1140 = vmatprep.subr.bf16.mxu0 0
        %1141 = vmatpush1.bf16.msra.mxu0 0
        %1142 = vmatprep.subr.bf16.mxu0 0
        %1143 = vmatpush1.bf16.msra.mxu0 0
        %1144 = vmatprep.subr.bf16.mxu0 0
        %1145 = vmatpush1.bf16.msra.mxu0 0
        %1146 = vmatprep.subr.bf16.mxu0 0
        %1147 = vmatpush1.bf16.msra.mxu0 0
        %1148 = vmatprep.subr.bf16.mxu0 0
        %1149 = vmatpush1.bf16.msra.mxu0 0
        %1150 = vmatprep.subr.bf16.mxu0 0
        %1151 = vmatpush1.bf16.msra.mxu0 0
        %1152 = vmatprep.subr.bf16.mxu0 0
        %1153 = vmatpush1.bf16.msra.mxu0 0
        %1154 = vmatprep.mubr.bf16.mxu0 0
        %1155 = vmatmul.mubr.bf16.gmra.mrb[0].mxu0 %v1070
        %v1156 = vpop.f32.mrb[0].mxu0
        %v1157 = vadd.f32 0.0, %v1156
        %v1158 = vpop.f32.mrb[0].mxu0
        %v1159 = vpop.f32.mrb[0].mxu0
        %v1160 = vpop.f32.mrb[0].mxu0
        %1161 = vdwg.mxu0
        %v1162 = vadd.f32 %v1055, %v1116
        %v1163 = vadd.f32 %v1056, %v1118
        %v1164 = vadd.f32 %v1057, %v1157
        %s1165 = scalar_lea.vmem %s1, 32
        %v1166 = vld [vmem:[%s1165] sm:$0xf]
        %1167 = vrot.lane.b32.xlu0 %v317, 90
        %v1168 = vpop.permute.xlu0 %1167
        %1169 = vrot.lane.b32.xlu0 %v325, 90
        %v1170 = vpop.permute.xlu0 %1169
        %1171 = vrot.lane.b32.xlu0 %v324, 90
        %v1172 = vpop.permute.xlu0 %1171
        %vm1173 = vcmask 736256
        %v1174 = vsel %vm1173, %v1168, %v1170
        %v1175 = vsel %vm1173, %v1170, %v1172
        %v1177 = vsel %vm335, %v1166, 0
        %v1180 = vsel %vm339, %v1174, 0
        %v1183 = vsel %vm339, %v1175, 0
        %v1186 = vsel %vm339, %v1172, 0
        %1188 = vmatprep.subr.bf16.mxu0 %v1183
        %1189 = vmatpush1.bf16.msra.mxu0 %v1180
        %1190 = vmatprep.subr.bf16.mxu0 0
        %1191 = vmatpush1.bf16.msra.mxu0 0
        %1192 = vmatprep.subr.bf16.mxu0 0
        %1193 = vmatpush1.bf16.msra.mxu0 0
        %1194 = vmatprep.subr.bf16.mxu0 0
        %1195 = vmatpush1.bf16.msra.mxu0 0
        %1196 = vmatprep.subr.bf16.mxu0 0
        %1197 = vmatpush1.bf16.msra.mxu0 0
        %1198 = vmatprep.subr.bf16.mxu0 0
        %1199 = vmatpush1.bf16.msra.mxu0 0
        %1200 = vmatprep.subr.bf16.mxu0 0
        %1201 = vmatpush1.bf16.msra.mxu0 0
        %1202 = vmatprep.subr.bf16.mxu0 0
        %1203 = vmatpush1.bf16.msra.mxu0 0
        %1204 = vmatprep.subr.bf16.mxu0 0
        %1205 = vmatpush1.bf16.msra.mxu0 0
        %1206 = vmatprep.subr.bf16.mxu0 0
        %1207 = vmatpush1.bf16.msra.mxu0 0
        %1208 = vmatprep.subr.bf16.mxu0 0
        %1209 = vmatpush1.bf16.msra.mxu0 0
        %1210 = vmatprep.subr.bf16.mxu0 0
        %1211 = vmatpush1.bf16.msra.mxu0 0
        %1212 = vmatprep.subr.bf16.mxu0 0
        %1213 = vmatpush1.bf16.msra.mxu0 0
        %1214 = vmatprep.subr.bf16.mxu0 0
        %1215 = vmatpush1.bf16.msra.mxu0 0
        %1216 = vmatprep.subr.bf16.mxu0 0
        %1217 = vmatpush1.bf16.msra.mxu0 0
        %1218 = vmatprep.subr.bf16.mxu0 0
        %1219 = vmatpush1.bf16.msra.mxu0 0
        %1220 = vmatprep.mubr.bf16.mxu0 0
        %1221 = vmatmul.mubr.bf16.gmra.mrb[0].mxu0 %v1177
        %v1222 = vpop.f32.mrb[0].mxu0
        %v1223 = vadd.f32 0.0, %v1222
        %v1224 = vpop.f32.mrb[0].mxu0
        %v1225 = vadd.f32 0.0, %v1224
        %v1226 = vpop.f32.mrb[0].mxu0
        %v1227 = vpop.f32.mrb[0].mxu0
        %1228 = vdwg.mxu0
        %1229 = vmatprep.subr.bf16.mxu0 0
        %1230 = vmatpush1.bf16.msra.mxu0 %v1186
        %1231 = vmatprep.subr.bf16.mxu0 0
        %1232 = vmatpush1.bf16.msra.mxu0 0
        %1233 = vmatprep.subr.bf16.mxu0 0
        %1234 = vmatpush1.bf16.msra.mxu0 0
        %1235 = vmatprep.subr.bf16.mxu0 0
        %1236 = vmatpush1.bf16.msra.mxu0 0
        %1237 = vmatprep.subr.bf16.mxu0 0
        %1238 = vmatpush1.bf16.msra.mxu0 0
        %1239 = vmatprep.subr.bf16.mxu0 0
        %1240 = vmatpush1.bf16.msra.mxu0 0
        %1241 = vmatprep.subr.bf16.mxu0 0
        %1242 = vmatpush1.bf16.msra.mxu0 0
        %1243 = vmatprep.subr.bf16.mxu0 0
        %1244 = vmatpush1.bf16.msra.mxu0 0
        %1245 = vmatprep.subr.bf16.mxu0 0
        %1246 = vmatpush1.bf16.msra.mxu0 0
        %1247 = vmatprep.subr.bf16.mxu0 0
        %1248 = vmatpush1.bf16.msra.mxu0 0
        %1249 = vmatprep.subr.bf16.mxu0 0
        %1250 = vmatpush1.bf16.msra.mxu0 0
        %1251 = vmatprep.subr.bf16.mxu0 0
        %1252 = vmatpush1.bf16.msra.mxu0 0
        %1253 = vmatprep.subr.bf16.mxu0 0
        %1254 = vmatpush1.bf16.msra.mxu0 0
        %1255 = vmatprep.subr.bf16.mxu0 0
        %1256 = vmatpush1.bf16.msra.mxu0 0
        %1257 = vmatprep.subr.bf16.mxu0 0
        %1258 = vmatpush1.bf16.msra.mxu0 0
        %1259 = vmatprep.subr.bf16.mxu0 0
        %1260 = vmatpush1.bf16.msra.mxu0 0
        %1261 = vmatprep.mubr.bf16.mxu0 0
        %1262 = vmatmul.mubr.bf16.gmra.mrb[0].mxu0 %v1177
        %v1263 = vpop.f32.mrb[0].mxu0
        %v1264 = vadd.f32 0.0, %v1263
        %v1265 = vpop.f32.mrb[0].mxu0
        %v1266 = vpop.f32.mrb[0].mxu0
        %v1267 = vpop.f32.mrb[0].mxu0
        %1268 = vdwg.mxu0
        %v1269 = vadd.f32 %v1162, %v1223
        %v1270 = vadd.f32 %v1163, %v1225
        %v1271 = vadd.f32 %v1164, %v1264
        %v1272 = vld [vmem:[%s4] sm:$0xff]
        %1274 = vset.pattern.permute.xlu0 0
        %1275 = vperm.xlu0 %1274, %v1272
        %v1276 = vpop.permute.xlu0 %1275
        %v1278 = vadd.f32 %v1269, %v1276
        %v1279 = vadd.f32 %v1270, %v1276
        %v1280 = vadd.f32 %v1271, %v1276
        %v1281 = vmax.f32 %v1278, 0.0
        %v1282 = vmax.f32 %v1279, 0.0
        %v1283 = vmax.f32 %v1280, 0.0
        %v1284 = vld [vmem:[%s6] sm:$0x7]
        %v1286 = vlaneseq
        %v1287 = vshrl.u32 %v1286, 7
        %v1288 = vsub.s32 0, %v1287
        %v1289 = vrot.slane %v1284, %v1288
        %v1290 = vlaneseq
        %v1291 = vshrl.u32 %v1290, 7
        %v1292 = vsub.s32 1, %v1291
        %v1293 = vrot.slane %v1284, %v1292
        %v1294 = vlaneseq
        %v1295 = vshrl.u32 %v1294, 7
        %v1296 = vsub.s32 2, %v1295
        %v1297 = vrot.slane %v1284, %v1296
        %v1301 = vmul.f32 %v1281, %v1289
        %v1302 = vmul.f32 %v1282, %v1293
        %v1303 = vmul.f32 %v1283, %v1297
        %v1304 = vpack.c.bf16 %v1301, %v1301
        %v1305 = vpack.c.bf16 %v1302, %v1302
        %v1306 = vpack.c.bf16 %v1303, %v1303
        %1310 = vrot.lane.b32.xlu0 %v1304, 19
        %v1311 = vpop.permute.xlu0 %1310
        %1312 = vrot.lane.b32.xlu0 %v1305, 19
        %v1313 = vpop.permute.xlu0 %1312
        %1314 = vrot.lane.b32.xlu0 %v1306, 19
        %v1315 = vpop.permute.xlu0 %1314
        %vm1316 = vcmask 154624
        %v1317 = vsel %vm1316, %v1311, %v1313
        %v1318 = vsel %vm1316, %v1313, %v1315
        %vm1319 = vcmask 154624
        %v1322 = vsel %vm1319, 0, %v1311
        %vm1323 = vcmask 416768
        %v1325 = vsel %vm1323, %v1318, 0
        %v1326 = vld [vmem:[%s3] sm:$0xf]
        %v1327 = vld [vmem:[%s2] sm:$0xf]
        %vm1328 = vcmask 64512
        %v1330 = vsel %vm1328, %v1327, 0
        %vm1332 = vcmask 1043456
        %v1333 = vsel %vm1332, %v1322, 0
        %v1336 = vsel %vm1332, %v1317, 0
        %v1338 = vsel %vm1332, %v1325, 0
        %1340 = vmatprep.subr.bf16.mxu0 %v1336
        %1341 = vmatpush1.bf16.msra.mxu0 %v1333
        %1342 = vmatprep.subr.bf16.mxu0 0
        %1343 = vmatpush1.bf16.msra.mxu0 0
        %1344 = vmatprep.subr.bf16.mxu0 0
        %1345 = vmatpush1.bf16.msra.mxu0 0
        %1346 = vmatprep.subr.bf16.mxu0 0
        %1347 = vmatpush1.bf16.msra.mxu0 0
        %1348 = vmatprep.subr.bf16.mxu0 0
        %1349 = vmatpush1.bf16.msra.mxu0 0
        %1350 = vmatprep.subr.bf16.mxu0 0
        %1351 = vmatpush1.bf16.msra.mxu0 0
        %1352 = vmatprep.subr.bf16.mxu0 0
        %1353 = vmatpush1.bf16.msra.mxu0 0
        %1354 = vmatprep.subr.bf16.mxu0 0
        %1355 = vmatpush1.bf16.msra.mxu0 0
        %1356 = vmatprep.subr.bf16.mxu0 0
        %1357 = vmatpush1.bf16.msra.mxu0 0
        %1358 = vmatprep.subr.bf16.mxu0 0
        %1359 = vmatpush1.bf16.msra.mxu0 0
        %1360 = vmatprep.subr.bf16.mxu0 0
        %1361 = vmatpush1.bf16.msra.mxu0 0
        %1362 = vmatprep.subr.bf16.mxu0 0
        %1363 = vmatpush1.bf16.msra.mxu0 0
        %1364 = vmatprep.subr.bf16.mxu0 0
        %1365 = vmatpush1.bf16.msra.mxu0 0
        %1366 = vmatprep.subr.bf16.mxu0 0
        %1367 = vmatpush1.bf16.msra.mxu0 0
        %1368 = vmatprep.subr.bf16.mxu0 0
        %1369 = vmatpush1.bf16.msra.mxu0 0
        %1370 = vmatprep.subr.bf16.mxu0 0
        %1371 = vmatpush1.bf16.msra.mxu0 0
        %1372 = vmatprep.mubr.bf16.mxu0 0
        %1373 = vmatmul.mubr.bf16.gmra.mrb[0].mxu0 %v1330
        %v1374 = vpop.f32.mrb[0].mxu0
        %v1375 = vadd.f32 0.0, %v1374
        %v1376 = vpop.f32.mrb[0].mxu0
        %v1377 = vadd.f32 0.0, %v1376
        %v1378 = vpop.f32.mrb[0].mxu0
        %v1379 = vpop.f32.mrb[0].mxu0
        %1380 = vdwg.mxu0
        %1381 = vmatprep.subr.bf16.mxu0 0
        %1382 = vmatpush1.bf16.msra.mxu0 %v1338
        %1383 = vmatprep.subr.bf16.mxu0 0
        %1384 = vmatpush1.bf16.msra.mxu0 0
        %1385 = vmatprep.subr.bf16.mxu0 0
        %1386 = vmatpush1.bf16.msra.mxu0 0
        %1387 = vmatprep.subr.bf16.mxu0 0
        %1388 = vmatpush1.bf16.msra.mxu0 0
        %1389 = vmatprep.subr.bf16.mxu0 0
        %1390 = vmatpush1.bf16.msra.mxu0 0
        %1391 = vmatprep.subr.bf16.mxu0 0
        %1392 = vmatpush1.bf16.msra.mxu0 0
        %1393 = vmatprep.subr.bf16.mxu0 0
        %1394 = vmatpush1.bf16.msra.mxu0 0
        %1395 = vmatprep.subr.bf16.mxu0 0
        %1396 = vmatpush1.bf16.msra.mxu0 0
        %1397 = vmatprep.subr.bf16.mxu0 0
        %1398 = vmatpush1.bf16.msra.mxu0 0
        %1399 = vmatprep.subr.bf16.mxu0 0
        %1400 = vmatpush1.bf16.msra.mxu0 0
        %1401 = vmatprep.subr.bf16.mxu0 0
        %1402 = vmatpush1.bf16.msra.mxu0 0
        %1403 = vmatprep.subr.bf16.mxu0 0
        %1404 = vmatpush1.bf16.msra.mxu0 0
        %1405 = vmatprep.subr.bf16.mxu0 0
        %1406 = vmatpush1.bf16.msra.mxu0 0
        %1407 = vmatprep.subr.bf16.mxu0 0
        %1408 = vmatpush1.bf16.msra.mxu0 0
        %1409 = vmatprep.subr.bf16.mxu0 0
        %1410 = vmatpush1.bf16.msra.mxu0 0
        %1411 = vmatprep.subr.bf16.mxu0 0
        %1412 = vmatpush1.bf16.msra.mxu0 0
        %1413 = vmatprep.mubr.bf16.mxu0 0
        %1414 = vmatmul.mubr.bf16.gmra.mrb[0].mxu0 %v1330
        %v1415 = vpop.f32.mrb[0].mxu0
        %v1416 = vadd.f32 0.0, %v1415
        %v1417 = vpop.f32.mrb[0].mxu0
        %v1418 = vpop.f32.mrb[0].mxu0
        %v1419 = vpop.f32.mrb[0].mxu0
        %1420 = vdwg.mxu0
        %v1422 = vsel %vm335, %v1326, 0
        %1424 = vmatprep.subr.bf16.mxu0 %v755
        %1425 = vmatpush1.bf16.msra.mxu0 %v752
        %1426 = vmatprep.subr.bf16.mxu0 0
        %1427 = vmatpush1.bf16.msra.mxu0 0
        %1428 = vmatprep.subr.bf16.mxu0 0
        %1429 = vmatpush1.bf16.msra.mxu0 0
        %1430 = vmatprep.subr.bf16.mxu0 0
        %1431 = vmatpush1.bf16.msra.mxu0 0
        %1432 = vmatprep.subr.bf16.mxu0 0
        %1433 = vmatpush1.bf16.msra.mxu0 0
        %1434 = vmatprep.subr.bf16.mxu0 0
        %1435 = vmatpush1.bf16.msra.mxu0 0
        %1436 = vmatprep.subr.bf16.mxu0 0
        %1437 = vmatpush1.bf16.msra.mxu0 0
        %1438 = vmatprep.subr.bf16.mxu0 0
        %1439 = vmatpush1.bf16.msra.mxu0 0
        %1440 = vmatprep.subr.bf16.mxu0 0
        %1441 = vmatpush1.bf16.msra.mxu0 0
        %1442 = vmatprep.subr.bf16.mxu0 0
        %1443 = vmatpush1.bf16.msra.mxu0 0
        %1444 = vmatprep.subr.bf16.mxu0 0
        %1445 = vmatpush1.bf16.msra.mxu0 0
        %1446 = vmatprep.subr.bf16.mxu0 0
        %1447 = vmatpush1.bf16.msra.mxu0 0
        %1448 = vmatprep.subr.bf16.mxu0 0
        %1449 = vmatpush1.bf16.msra.mxu0 0
        %1450 = vmatprep.subr.bf16.mxu0 0
        %1451 = vmatpush1.bf16.msra.mxu0 0
        %1452 = vmatprep.subr.bf16.mxu0 0
        %1453 = vmatpush1.bf16.msra.mxu0 0
        %1454 = vmatprep.subr.bf16.mxu0 0
        %1455 = vmatpush1.bf16.msra.mxu0 0
        %1456 = vmatprep.mubr.bf16.mxu0 0
        %1457 = vmatmul.mubr.bf16.gmra.mrb[0].mxu0 %v1422
        %v1458 = vpop.f32.mrb[0].mxu0
        %v1459 = vadd.f32 %v1375, %v1458
        %v1460 = vpop.f32.mrb[0].mxu0
        %v1461 = vadd.f32 %v1377, %v1460
        %v1462 = vpop.f32.mrb[0].mxu0
        %v1463 = vpop.f32.mrb[0].mxu0
        %1464 = vdwg.mxu0
        %1465 = vmatprep.subr.bf16.mxu0 0
        %1466 = vmatpush1.bf16.msra.mxu0 %v758
        %1467 = vmatprep.subr.bf16.mxu0 0
        %1468 = vmatpush1.bf16.msra.mxu0 0
        %1469 = vmatprep.subr.bf16.mxu0 0
        %1470 = vmatpush1.bf16.msra.mxu0 0
        %1471 = vmatprep.subr.bf16.mxu0 0
        %1472 = vmatpush1.bf16.msra.mxu0 0
        %1473 = vmatprep.subr.bf16.mxu0 0
        %1474 = vmatpush1.bf16.msra.mxu0 0
        %1475 = vmatprep.subr.bf16.mxu0 0
        %1476 = vmatpush1.bf16.msra.mxu0 0
        %1477 = vmatprep.subr.bf16.mxu0 0
        %1478 = vmatpush1.bf16.msra.mxu0 0
        %1479 = vmatprep.subr.bf16.mxu0 0
        %1480 = vmatpush1.bf16.msra.mxu0 0
        %1481 = vmatprep.subr.bf16.mxu0 0
        %1482 = vmatpush1.bf16.msra.mxu0 0
        %1483 = vmatprep.subr.bf16.mxu0 0
        %1484 = vmatpush1.bf16.msra.mxu0 0
        %1485 = vmatprep.subr.bf16.mxu0 0
        %1486 = vmatpush1.bf16.msra.mxu0 0
        %1487 = vmatprep.subr.bf16.mxu0 0
        %1488 = vmatpush1.bf16.msra.mxu0 0
        %1489 = vmatprep.subr.bf16.mxu0 0
        %1490 = vmatpush1.bf16.msra.mxu0 0
        %1491 = vmatprep.subr.bf16.mxu0 0
        %1492 = vmatpush1.bf16.msra.mxu0 0
        %1493 = vmatprep.subr.bf16.mxu0 0
        %1494 = vmatpush1.bf16.msra.mxu0 0
        %1495 = vmatprep.subr.bf16.mxu0 0
        %1496 = vmatpush1.bf16.msra.mxu0 0
        %1497 = vmatprep.mubr.bf16.mxu0 0
        %1498 = vmatmul.mubr.bf16.gmra.mrb[0].mxu0 %v1422
        %v1499 = vpop.f32.mrb[0].mxu0
        %v1500 = vadd.f32 %v1416, %v1499
        %v1501 = vpop.f32.mrb[0].mxu0
        %v1502 = vpop.f32.mrb[0].mxu0
        %v1503 = vpop.f32.mrb[0].mxu0
        %1504 = vdwg.mxu0
        %s1505 = scalar_lea.vmem %s2, 4
        %v1506 = vld [vmem:[%s1505] sm:$0xf]
        %1509 = vrot.lane.b32.xlu0 %v1322, 127
        %v1510 = vpop.permute.xlu0 %1509
        %1511 = vrot.lane.b32.xlu0 %v1317, 127
        %v1512 = vpop.permute.xlu0 %1511
        %1513 = vrot.lane.b32.xlu0 %v1325, 127
        %v1514 = vpop.permute.xlu0 %1513
        %v1515 = vsel %vm332, %v1510, %v1512
        %v1516 = vsel %vm332, %v1512, %v1514
        %v1518 = vsel %vm1328, %v1506, 0
        %v1521 = vsel %vm1332, %v1515, 0
        %v1524 = vsel %vm1332, %v1516, 0
        %v1527 = vsel %vm1332, %v1514, 0
        %1529 = vmatprep.subr.bf16.mxu0 %v1524
        %1530 = vmatpush1.bf16.msra.mxu0 %v1521
        %1531 = vmatprep.subr.bf16.mxu0 0
        %1532 = vmatpush1.bf16.msra.mxu0 0
        %1533 = vmatprep.subr.bf16.mxu0 0
        %1534 = vmatpush1.bf16.msra.mxu0 0
        %1535 = vmatprep.subr.bf16.mxu0 0
        %1536 = vmatpush1.bf16.msra.mxu0 0
        %1537 = vmatprep.subr.bf16.mxu0 0
        %1538 = vmatpush1.bf16.msra.mxu0 0
        %1539 = vmatprep.subr.bf16.mxu0 0
        %1540 = vmatpush1.bf16.msra.mxu0 0
        %1541 = vmatprep.subr.bf16.mxu0 0
        %1542 = vmatpush1.bf16.msra.mxu0 0
        %1543 = vmatprep.subr.bf16.mxu0 0
        %1544 = vmatpush1.bf16.msra.mxu0 0
        %1545 = vmatprep.subr.bf16.mxu0 0
        %1546 = vmatpush1.bf16.msra.mxu0 0
        %1547 = vmatprep.subr.bf16.mxu0 0
        %1548 = vmatpush1.bf16.msra.mxu0 0
        %1549 = vmatprep.subr.bf16.mxu0 0
        %1550 = vmatpush1.bf16.msra.mxu0 0
        %1551 = vmatprep.subr.bf16.mxu0 0
        %1552 = vmatpush1.bf16.msra.mxu0 0
        %1553 = vmatprep.subr.bf16.mxu0 0
        %1554 = vmatpush1.bf16.msra.mxu0 0
        %1555 = vmatprep.subr.bf16.mxu0 0
        %1556 = vmatpush1.bf16.msra.mxu0 0
        %1557 = vmatprep.subr.bf16.mxu0 0
        %1558 = vmatpush1.bf16.msra.mxu0 0
        %1559 = vmatprep.subr.bf16.mxu0 0
        %1560 = vmatpush1.bf16.msra.mxu0 0
        %1561 = vmatprep.mubr.bf16.mxu0 0
        %1562 = vmatmul.mubr.bf16.gmra.mrb[0].mxu0 %v1518
        %v1563 = vpop.f32.mrb[0].mxu0
        %v1564 = vadd.f32 0.0, %v1563
        %v1565 = vpop.f32.mrb[0].mxu0
        %v1566 = vadd.f32 0.0, %v1565
        %v1567 = vpop.f32.mrb[0].mxu0
        %v1568 = vpop.f32.mrb[0].mxu0
        %1569 = vdwg.mxu0
        %1570 = vmatprep.subr.bf16.mxu0 0
        %1571 = vmatpush1.bf16.msra.mxu0 %v1527
        %1572 = vmatprep.subr.bf16.mxu0 0
        %1573 = vmatpush1.bf16.msra.mxu0 0
        %1574 = vmatprep.subr.bf16.mxu0 0
        %1575 = vmatpush1.bf16.msra.mxu0 0
        %1576 = vmatprep.subr.bf16.mxu0 0
        %1577 = vmatpush1.bf16.msra.mxu0 0
        %1578 = vmatprep.subr.bf16.mxu0 0
        %1579 = vmatpush1.bf16.msra.mxu0 0
        %1580 = vmatprep.subr.bf16.mxu0 0
        %1581 = vmatpush1.bf16.msra.mxu0 0
        %1582 = vmatprep.subr.bf16.mxu0 0
        %1583 = vmatpush1.bf16.msra.mxu0 0
        %1584 = vmatprep.subr.bf16.mxu0 0
        %1585 = vmatpush1.bf16.msra.mxu0 0
        %1586 = vmatprep.subr.bf16.mxu0 0
        %1587 = vmatpush1.bf16.msra.mxu0 0
        %1588 = vmatprep.subr.bf16.mxu0 0
        %1589 = vmatpush1.bf16.msra.mxu0 0
        %1590 = vmatprep.subr.bf16.mxu0 0
        %1591 = vmatpush1.bf16.msra.mxu0 0
        %1592 = vmatprep.subr.bf16.mxu0 0
        %1593 = vmatpush1.bf16.msra.mxu0 0
        %1594 = vmatprep.subr.bf16.mxu0 0
        %1595 = vmatpush1.bf16.msra.mxu0 0
        %1596 = vmatprep.subr.bf16.mxu0 0
        %1597 = vmatpush1.bf16.msra.mxu0 0
        %1598 = vmatprep.subr.bf16.mxu0 0
        %1599 = vmatpush1.bf16.msra.mxu0 0
        %1600 = vmatprep.subr.bf16.mxu0 0
        %1601 = vmatpush1.bf16.msra.mxu0 0
        %1602 = vmatprep.mubr.bf16.mxu0 0
        %1603 = vmatmul.mubr.bf16.gmra.mrb[0].mxu0 %v1518
        %v1604 = vpop.f32.mrb[0].mxu0
        %v1605 = vadd.f32 0.0, %v1604
        %v1606 = vpop.f32.mrb[0].mxu0
        %v1607 = vpop.f32.mrb[0].mxu0
        %v1608 = vpop.f32.mrb[0].mxu0
        %1609 = vdwg.mxu0
        %v1610 = vadd.f32 %v1459, %v1564
        %v1611 = vadd.f32 %v1461, %v1566
        %v1612 = vadd.f32 %v1500, %v1605
        %s1613 = scalar_lea.vmem %s2, 8
        %v1614 = vld [vmem:[%s1613] sm:$0xf]
        %1615 = vrot.lane.b32.xlu0 %v1322, 126
        %v1616 = vpop.permute.xlu0 %1615
        %1617 = vrot.lane.b32.xlu0 %v1317, 126
        %v1618 = vpop.permute.xlu0 %1617
        %1619 = vrot.lane.b32.xlu0 %v1325, 126
        %v1620 = vpop.permute.xlu0 %1619
        %v1621 = vsel %vm531, %v1616, %v1618
        %v1622 = vsel %vm531, %v1618, %v1620
        %v1624 = vsel %vm1328, %v1614, 0
        %v1627 = vsel %vm1332, %v1621, 0
        %v1630 = vsel %vm1332, %v1622, 0
        %v1633 = vsel %vm1332, %v1620, 0
        %1635 = vmatprep.subr.bf16.mxu0 %v1630
        %1636 = vmatpush1.bf16.msra.mxu0 %v1627
        %1637 = vmatprep.subr.bf16.mxu0 0
        %1638 = vmatpush1.bf16.msra.mxu0 0
        %1639 = vmatprep.subr.bf16.mxu0 0
        %1640 = vmatpush1.bf16.msra.mxu0 0
        %1641 = vmatprep.subr.bf16.mxu0 0
        %1642 = vmatpush1.bf16.msra.mxu0 0
        %1643 = vmatprep.subr.bf16.mxu0 0
        %1644 = vmatpush1.bf16.msra.mxu0 0
        %1645 = vmatprep.subr.bf16.mxu0 0
        %1646 = vmatpush1.bf16.msra.mxu0 0
        %1647 = vmatprep.subr.bf16.mxu0 0
        %1648 = vmatpush1.bf16.msra.mxu0 0
        %1649 = vmatprep.subr.bf16.mxu0 0
        %1650 = vmatpush1.bf16.msra.mxu0 0
        %1651 = vmatprep.subr.bf16.mxu0 0
        %1652 = vmatpush1.bf16.msra.mxu0 0
        %1653 = vmatprep.subr.bf16.mxu0 0
        %1654 = vmatpush1.bf16.msra.mxu0 0
        %1655 = vmatprep.subr.bf16.mxu0 0
        %1656 = vmatpush1.bf16.msra.mxu0 0
        %1657 = vmatprep.subr.bf16.mxu0 0
        %1658 = vmatpush1.bf16.msra.mxu0 0
        %1659 = vmatprep.subr.bf16.mxu0 0
        %1660 = vmatpush1.bf16.msra.mxu0 0
        %1661 = vmatprep.subr.bf16.mxu0 0
        %1662 = vmatpush1.bf16.msra.mxu0 0
        %1663 = vmatprep.subr.bf16.mxu0 0
        %1664 = vmatpush1.bf16.msra.mxu0 0
        %1665 = vmatprep.subr.bf16.mxu0 0
        %1666 = vmatpush1.bf16.msra.mxu0 0
        %1667 = vmatprep.mubr.bf16.mxu0 0
        %1668 = vmatmul.mubr.bf16.gmra.mrb[0].mxu0 %v1624
        %v1669 = vpop.f32.mrb[0].mxu0
        %v1670 = vadd.f32 0.0, %v1669
        %v1671 = vpop.f32.mrb[0].mxu0
        %v1672 = vadd.f32 0.0, %v1671
        %v1673 = vpop.f32.mrb[0].mxu0
        %v1674 = vpop.f32.mrb[0].mxu0
        %1675 = vdwg.mxu0
        %1676 = vmatprep.subr.bf16.mxu0 0
        %1677 = vmatpush1.bf16.msra.mxu0 %v1633
        %1678 = vmatprep.subr.bf16.mxu0 0
        %1679 = vmatpush1.bf16.msra.mxu0 0
        %1680 = vmatprep.subr.bf16.mxu0 0
        %1681 = vmatpush1.bf16.msra.mxu0 0
        %1682 = vmatprep.subr.bf16.mxu0 0
        %1683 = vmatpush1.bf16.msra.mxu0 0
        %1684 = vmatprep.subr.bf16.mxu0 0
        %1685 = vmatpush1.bf16.msra.mxu0 0
        %1686 = vmatprep.subr.bf16.mxu0 0
        %1687 = vmatpush1.bf16.msra.mxu0 0
        %1688 = vmatprep.subr.bf16.mxu0 0
        %1689 = vmatpush1.bf16.msra.mxu0 0
        %1690 = vmatprep.subr.bf16.mxu0 0
        %1691 = vmatpush1.bf16.msra.mxu0 0
        %1692 = vmatprep.subr.bf16.mxu0 0
        %1693 = vmatpush1.bf16.msra.mxu0 0
        %1694 = vmatprep.subr.bf16.mxu0 0
        %1695 = vmatpush1.bf16.msra.mxu0 0
        %1696 = vmatprep.subr.bf16.mxu0 0
        %1697 = vmatpush1.bf16.msra.mxu0 0
        %1698 = vmatprep.subr.bf16.mxu0 0
        %1699 = vmatpush1.bf16.msra.mxu0 0
        %1700 = vmatprep.subr.bf16.mxu0 0
        %1701 = vmatpush1.bf16.msra.mxu0 0
        %1702 = vmatprep.subr.bf16.mxu0 0
        %1703 = vmatpush1.bf16.msra.mxu0 0
        %1704 = vmatprep.subr.bf16.mxu0 0
        %1705 = vmatpush1.bf16.msra.mxu0 0
        %1706 = vmatprep.subr.bf16.mxu0 0
        %1707 = vmatpush1.bf16.msra.mxu0 0
        %1708 = vmatprep.mubr.bf16.mxu0 0
        %1709 = vmatmul.mubr.bf16.gmra.mrb[0].mxu0 %v1624
        %v1710 = vpop.f32.mrb[0].mxu0
        %v1711 = vadd.f32 0.0, %v1710
        %v1712 = vpop.f32.mrb[0].mxu0
        %v1713 = vpop.f32.mrb[0].mxu0
        %v1714 = vpop.f32.mrb[0].mxu0
        %1715 = vdwg.mxu0
        %v1716 = vadd.f32 %v1610, %v1670
        %v1717 = vadd.f32 %v1611, %v1672
        %v1718 = vadd.f32 %v1612, %v1711
        %s1719 = scalar_lea.vmem %s2, 12
        %v1720 = vld [vmem:[%s1719] sm:$0xf]
        %1721 = vrot.lane.b32.xlu0 %v1322, 110
        %v1722 = vpop.permute.xlu0 %1721
        %1723 = vrot.lane.b32.xlu0 %v1317, 110
        %v1724 = vpop.permute.xlu0 %1723
        %1725 = vrot.lane.b32.xlu0 %v1325, 110
        %v1726 = vpop.permute.xlu0 %1725
        %v1727 = vsel %vm638, %v1722, %v1724
        %v1728 = vsel %vm638, %v1724, %v1726
        %v1730 = vsel %vm1328, %v1720, 0
        %v1733 = vsel %vm1332, %v1727, 0
        %v1736 = vsel %vm1332, %v1728, 0
        %v1739 = vsel %vm1332, %v1726, 0
        %1741 = vmatprep.subr.bf16.mxu0 %v1736
        %1742 = vmatpush1.bf16.msra.mxu0 %v1733
        %1743 = vmatprep.subr.bf16.mxu0 0
        %1744 = vmatpush1.bf16.msra.mxu0 0
        %1745 = vmatprep.subr.bf16.mxu0 0
        %1746 = vmatpush1.bf16.msra.mxu0 0
        %1747 = vmatprep.subr.bf16.mxu0 0
        %1748 = vmatpush1.bf16.msra.mxu0 0
        %1749 = vmatprep.subr.bf16.mxu0 0
        %1750 = vmatpush1.bf16.msra.mxu0 0
        %1751 = vmatprep.subr.bf16.mxu0 0
        %1752 = vmatpush1.bf16.msra.mxu0 0
        %1753 = vmatprep.subr.bf16.mxu0 0
        %1754 = vmatpush1.bf16.msra.mxu0 0
        %1755 = vmatprep.subr.bf16.mxu0 0
        %1756 = vmatpush1.bf16.msra.mxu0 0
        %1757 = vmatprep.subr.bf16.mxu0 0
        %1758 = vmatpush1.bf16.msra.mxu0 0
        %1759 = vmatprep.subr.bf16.mxu0 0
        %1760 = vmatpush1.bf16.msra.mxu0 0
        %1761 = vmatprep.subr.bf16.mxu0 0
        %1762 = vmatpush1.bf16.msra.mxu0 0
        %1763 = vmatprep.subr.bf16.mxu0 0
        %1764 = vmatpush1.bf16.msra.mxu0 0
        %1765 = vmatprep.subr.bf16.mxu0 0
        %1766 = vmatpush1.bf16.msra.mxu0 0
        %1767 = vmatprep.subr.bf16.mxu0 0
        %1768 = vmatpush1.bf16.msra.mxu0 0
        %1769 = vmatprep.subr.bf16.mxu0 0
        %1770 = vmatpush1.bf16.msra.mxu0 0
        %1771 = vmatprep.subr.bf16.mxu0 0
        %1772 = vmatpush1.bf16.msra.mxu0 0
        %1773 = vmatprep.mubr.bf16.mxu0 0
        %1774 = vmatmul.mubr.bf16.gmra.mrb[0].mxu0 %v1730
        %v1775 = vpop.f32.mrb[0].mxu0
        %v1776 = vadd.f32 0.0, %v1775
        %v1777 = vpop.f32.mrb[0].mxu0
        %v1778 = vadd.f32 0.0, %v1777
        %v1779 = vpop.f32.mrb[0].mxu0
        %v1780 = vpop.f32.mrb[0].mxu0
        %1781 = vdwg.mxu0
        %1782 = vmatprep.subr.bf16.mxu0 0
        %1783 = vmatpush1.bf16.msra.mxu0 %v1739
        %1784 = vmatprep.subr.bf16.mxu0 0
        %1785 = vmatpush1.bf16.msra.mxu0 0
        %1786 = vmatprep.subr.bf16.mxu0 0
        %1787 = vmatpush1.bf16.msra.mxu0 0
        %1788 = vmatprep.subr.bf16.mxu0 0
        %1789 = vmatpush1.bf16.msra.mxu0 0
        %1790 = vmatprep.subr.bf16.mxu0 0
        %1791 = vmatpush1.bf16.msra.mxu0 0
        %1792 = vmatprep.subr.bf16.mxu0 0
        %1793 = vmatpush1.bf16.msra.mxu0 0
        %1794 = vmatprep.subr.bf16.mxu0 0
        %1795 = vmatpush1.bf16.msra.mxu0 0
        %1796 = vmatprep.subr.bf16.mxu0 0
        %1797 = vmatpush1.bf16.msra.mxu0 0
        %1798 = vmatprep.subr.bf16.mxu0 0
        %1799 = vmatpush1.bf16.msra.mxu0 0
        %1800 = vmatprep.subr.bf16.mxu0 0
        %1801 = vmatpush1.bf16.msra.mxu0 0
        %1802 = vmatprep.subr.bf16.mxu0 0
        %1803 = vmatpush1.bf16.msra.mxu0 0
        %1804 = vmatprep.subr.bf16.mxu0 0
        %1805 = vmatpush1.bf16.msra.mxu0 0
        %1806 = vmatprep.subr.bf16.mxu0 0
        %1807 = vmatpush1.bf16.msra.mxu0 0
        %1808 = vmatprep.subr.bf16.mxu0 0
        %1809 = vmatpush1.bf16.msra.mxu0 0
        %1810 = vmatprep.subr.bf16.mxu0 0
        %1811 = vmatpush1.bf16.msra.mxu0 0
        %1812 = vmatprep.subr.bf16.mxu0 0
        %1813 = vmatpush1.bf16.msra.mxu0 0
        %1814 = vmatprep.mubr.bf16.mxu0 0
        %1815 = vmatmul.mubr.bf16.gmra.mrb[0].mxu0 %v1730
        %v1816 = vpop.f32.mrb[0].mxu0
        %v1817 = vadd.f32 0.0, %v1816
        %v1818 = vpop.f32.mrb[0].mxu0
        %v1819 = vpop.f32.mrb[0].mxu0
        %v1820 = vpop.f32.mrb[0].mxu0
        %1821 = vdwg.mxu0
        %v1822 = vadd.f32 %v1716, %v1776
        %v1823 = vadd.f32 %v1717, %v1778
        %v1824 = vadd.f32 %v1718, %v1817
        %s1825 = scalar_lea.vmem %s2, 16
        %v1826 = vld [vmem:[%s1825] sm:$0xf]
        %1827 = vrot.lane.b32.xlu0 %v1322, 109
        %v1828 = vpop.permute.xlu0 %1827
        %1829 = vrot.lane.b32.xlu0 %v1317, 109
        %v1830 = vpop.permute.xlu0 %1829
        %1831 = vrot.lane.b32.xlu0 %v1325, 109
        %v1832 = vpop.permute.xlu0 %1831
        %v1833 = vsel %vm745, %v1828, %v1830
        %v1834 = vsel %vm745, %v1830, %v1832
        %v1836 = vsel %vm1328, %v1826, 0
        %v1839 = vsel %vm1332, %v1833, 0
        %v1842 = vsel %vm1332, %v1834, 0
        %v1845 = vsel %vm1332, %v1832, 0
        %1847 = vmatprep.subr.bf16.mxu0 %v1842
        %1848 = vmatpush1.bf16.msra.mxu0 %v1839
        %1849 = vmatprep.subr.bf16.mxu0 0
        %1850 = vmatpush1.bf16.msra.mxu0 0
        %1851 = vmatprep.subr.bf16.mxu0 0
        %1852 = vmatpush1.bf16.msra.mxu0 0
        %1853 = vmatprep.subr.bf16.mxu0 0
        %1854 = vmatpush1.bf16.msra.mxu0 0
        %1855 = vmatprep.subr.bf16.mxu0 0
        %1856 = vmatpush1.bf16.msra.mxu0 0
        %1857 = vmatprep.subr.bf16.mxu0 0
        %1858 = vmatpush1.bf16.msra.mxu0 0
        %1859 = vmatprep.subr.bf16.mxu0 0
        %1860 = vmatpush1.bf16.msra.mxu0 0
        %1861 = vmatprep.subr.bf16.mxu0 0
        %1862 = vmatpush1.bf16.msra.mxu0 0
        %1863 = vmatprep.subr.bf16.mxu0 0
        %1864 = vmatpush1.bf16.msra.mxu0 0
        %1865 = vmatprep.subr.bf16.mxu0 0
        %1866 = vmatpush1.bf16.msra.mxu0 0
        %1867 = vmatprep.subr.bf16.mxu0 0
        %1868 = vmatpush1.bf16.msra.mxu0 0
        %1869 = vmatprep.subr.bf16.mxu0 0
        %1870 = vmatpush1.bf16.msra.mxu0 0
        %1871 = vmatprep.subr.bf16.mxu0 0
        %1872 = vmatpush1.bf16.msra.mxu0 0
        %1873 = vmatprep.subr.bf16.mxu0 0
        %1874 = vmatpush1.bf16.msra.mxu0 0
        %1875 = vmatprep.subr.bf16.mxu0 0
        %1876 = vmatpush1.bf16.msra.mxu0 0
        %1877 = vmatprep.subr.bf16.mxu0 0
        %1878 = vmatpush1.bf16.msra.mxu0 0
        %1879 = vmatprep.mubr.bf16.mxu0 0
        %1880 = vmatmul.mubr.bf16.gmra.mrb[0].mxu0 %v1836
        %v1881 = vpop.f32.mrb[0].mxu0
        %v1882 = vadd.f32 0.0, %v1881
        %v1883 = vpop.f32.mrb[0].mxu0
        %v1884 = vadd.f32 0.0, %v1883
        %v1885 = vpop.f32.mrb[0].mxu0
        %v1886 = vpop.f32.mrb[0].mxu0
        %1887 = vdwg.mxu0
        %1888 = vmatprep.subr.bf16.mxu0 0
        %1889 = vmatpush1.bf16.msra.mxu0 %v1845
        %1890 = vmatprep.subr.bf16.mxu0 0
        %1891 = vmatpush1.bf16.msra.mxu0 0
        %1892 = vmatprep.subr.bf16.mxu0 0
        %1893 = vmatpush1.bf16.msra.mxu0 0
        %1894 = vmatprep.subr.bf16.mxu0 0
        %1895 = vmatpush1.bf16.msra.mxu0 0
        %1896 = vmatprep.subr.bf16.mxu0 0
        %1897 = vmatpush1.bf16.msra.mxu0 0
        %1898 = vmatprep.subr.bf16.mxu0 0
        %1899 = vmatpush1.bf16.msra.mxu0 0
        %1900 = vmatprep.subr.bf16.mxu0 0
        %1901 = vmatpush1.bf16.msra.mxu0 0
        %1902 = vmatprep.subr.bf16.mxu0 0
        %1903 = vmatpush1.bf16.msra.mxu0 0
        %1904 = vmatprep.subr.bf16.mxu0 0
        %1905 = vmatpush1.bf16.msra.mxu0 0
        %1906 = vmatprep.subr.bf16.mxu0 0
        %1907 = vmatpush1.bf16.msra.mxu0 0
        %1908 = vmatprep.subr.bf16.mxu0 0
        %1909 = vmatpush1.bf16.msra.mxu0 0
        %1910 = vmatprep.subr.bf16.mxu0 0
        %1911 = vmatpush1.bf16.msra.mxu0 0
        %1912 = vmatprep.subr.bf16.mxu0 0
        %1913 = vmatpush1.bf16.msra.mxu0 0
        %1914 = vmatprep.subr.bf16.mxu0 0
        %1915 = vmatpush1.bf16.msra.mxu0 0
        %1916 = vmatprep.subr.bf16.mxu0 0
        %1917 = vmatpush1.bf16.msra.mxu0 0
        %1918 = vmatprep.subr.bf16.mxu0 0
        %1919 = vmatpush1.bf16.msra.mxu0 0
        %1920 = vmatprep.mubr.bf16.mxu0 0
        %1921 = vmatmul.mubr.bf16.gmra.mrb[0].mxu0 %v1836
        %v1922 = vpop.f32.mrb[0].mxu0
        %v1923 = vadd.f32 0.0, %v1922
        %v1924 = vpop.f32.mrb[0].mxu0
        %v1925 = vpop.f32.mrb[0].mxu0
        %v1926 = vpop.f32.mrb[0].mxu0
        %1927 = vdwg.mxu0
        %v1928 = vadd.f32 %v1822, %v1882
        %v1929 = vadd.f32 %v1823, %v1884
        %v1930 = vadd.f32 %v1824, %v1923
        %s1931 = scalar_lea.vmem %s2, 20
        %v1932 = vld [vmem:[%s1931] sm:$0xf]
        %1933 = vrot.lane.b32.xlu0 %v1322, 108
        %v1934 = vpop.permute.xlu0 %1933
        %1935 = vrot.lane.b32.xlu0 %v1317, 108
        %v1936 = vpop.permute.xlu0 %1935
        %1937 = vrot.lane.b32.xlu0 %v1325, 108
        %v1938 = vpop.permute.xlu0 %1937
        %v1939 = vsel %vm852, %v1934, %v1936
        %v1940 = vsel %vm852, %v1936, %v1938
        %v1942 = vsel %vm1328, %v1932, 0
        %v1945 = vsel %vm1332, %v1939, 0
        %v1948 = vsel %vm1332, %v1940, 0
        %v1951 = vsel %vm1332, %v1938, 0
        %1953 = vmatprep.subr.bf16.mxu0 %v1948
        %1954 = vmatpush1.bf16.msra.mxu0 %v1945
        %1955 = vmatprep.subr.bf16.mxu0 0
        %1956 = vmatpush1.bf16.msra.mxu0 0
        %1957 = vmatprep.subr.bf16.mxu0 0
        %1958 = vmatpush1.bf16.msra.mxu0 0
        %1959 = vmatprep.subr.bf16.mxu0 0
        %1960 = vmatpush1.bf16.msra.mxu0 0
        %1961 = vmatprep.subr.bf16.mxu0 0
        %1962 = vmatpush1.bf16.msra.mxu0 0
        %1963 = vmatprep.subr.bf16.mxu0 0
        %1964 = vmatpush1.bf16.msra.mxu0 0
        %1965 = vmatprep.subr.bf16.mxu0 0
        %1966 = vmatpush1.bf16.msra.mxu0 0
        %1967 = vmatprep.subr.bf16.mxu0 0
        %1968 = vmatpush1.bf16.msra.mxu0 0
        %1969 = vmatprep.subr.bf16.mxu0 0
        %1970 = vmatpush1.bf16.msra.mxu0 0
        %1971 = vmatprep.subr.bf16.mxu0 0
        %1972 = vmatpush1.bf16.msra.mxu0 0
        %1973 = vmatprep.subr.bf16.mxu0 0
        %1974 = vmatpush1.bf16.msra.mxu0 0
        %1975 = vmatprep.subr.bf16.mxu0 0
        %1976 = vmatpush1.bf16.msra.mxu0 0
        %1977 = vmatprep.subr.bf16.mxu0 0
        %1978 = vmatpush1.bf16.msra.mxu0 0
        %1979 = vmatprep.subr.bf16.mxu0 0
        %1980 = vmatpush1.bf16.msra.mxu0 0
        %1981 = vmatprep.subr.bf16.mxu0 0
        %1982 = vmatpush1.bf16.msra.mxu0 0
        %1983 = vmatprep.subr.bf16.mxu0 0
        %1984 = vmatpush1.bf16.msra.mxu0 0
        %1985 = vmatprep.mubr.bf16.mxu0 0
        %1986 = vmatmul.mubr.bf16.gmra.mrb[0].mxu0 %v1942
        %v1987 = vpop.f32.mrb[0].mxu0
        %v1988 = vadd.f32 0.0, %v1987
        %v1989 = vpop.f32.mrb[0].mxu0
        %v1990 = vadd.f32 0.0, %v1989
        %v1991 = vpop.f32.mrb[0].mxu0
        %v1992 = vpop.f32.mrb[0].mxu0
        %1993 = vdwg.mxu0
        %1994 = vmatprep.subr.bf16.mxu0 0
        %1995 = vmatpush1.bf16.msra.mxu0 %v1951
        %1996 = vmatprep.subr.bf16.mxu0 0
        %1997 = vmatpush1.bf16.msra.mxu0 0
        %1998 = vmatprep.subr.bf16.mxu0 0
        %1999 = vmatpush1.bf16.msra.mxu0 0
        %2000 = vmatprep.subr.bf16.mxu0 0
        %2001 = vmatpush1.bf16.msra.mxu0 0
        %2002 = vmatprep.subr.bf16.mxu0 0
        %2003 = vmatpush1.bf16.msra.mxu0 0
        %2004 = vmatprep.subr.bf16.mxu0 0
        %2005 = vmatpush1.bf16.msra.mxu0 0
        %2006 = vmatprep.subr.bf16.mxu0 0
        %2007 = vmatpush1.bf16.msra.mxu0 0
        %2008 = vmatprep.subr.bf16.mxu0 0
        %2009 = vmatpush1.bf16.msra.mxu0 0
        %2010 = vmatprep.subr.bf16.mxu0 0
        %2011 = vmatpush1.bf16.msra.mxu0 0
        %2012 = vmatprep.subr.bf16.mxu0 0
        %2013 = vmatpush1.bf16.msra.mxu0 0
        %2014 = vmatprep.subr.bf16.mxu0 0
        %2015 = vmatpush1.bf16.msra.mxu0 0
        %2016 = vmatprep.subr.bf16.mxu0 0
        %2017 = vmatpush1.bf16.msra.mxu0 0
        %2018 = vmatprep.subr.bf16.mxu0 0
        %2019 = vmatpush1.bf16.msra.mxu0 0
        %2020 = vmatprep.subr.bf16.mxu0 0
        %2021 = vmatpush1.bf16.msra.mxu0 0
        %2022 = vmatprep.subr.bf16.mxu0 0
        %2023 = vmatpush1.bf16.msra.mxu0 0
        %2024 = vmatprep.subr.bf16.mxu0 0
        %2025 = vmatpush1.bf16.msra.mxu0 0
        %2026 = vmatprep.mubr.bf16.mxu0 0
        %2027 = vmatmul.mubr.bf16.gmra.mrb[0].mxu0 %v1942
        %v2028 = vpop.f32.mrb[0].mxu0
        %v2029 = vadd.f32 0.0, %v2028
        %v2030 = vpop.f32.mrb[0].mxu0
        %v2031 = vpop.f32.mrb[0].mxu0
        %v2032 = vpop.f32.mrb[0].mxu0
        %2033 = vdwg.mxu0
        %v2034 = vadd.f32 %v1928, %v1988
        %v2035 = vadd.f32 %v1929, %v1990
        %v2036 = vadd.f32 %v1930, %v2029
        %s2037 = scalar_lea.vmem %s2, 24
        %v2038 = vld [vmem:[%s2037] sm:$0xf]
        %2039 = vrot.lane.b32.xlu0 %v1322, 92
        %v2040 = vpop.permute.xlu0 %2039
        %2041 = vrot.lane.b32.xlu0 %v1317, 92
        %v2042 = vpop.permute.xlu0 %2041
        %2043 = vrot.lane.b32.xlu0 %v1325, 92
        %v2044 = vpop.permute.xlu0 %2043
        %v2045 = vsel %vm959, %v2040, %v2042
        %v2046 = vsel %vm959, %v2042, %v2044
        %v2048 = vsel %vm1328, %v2038, 0
        %v2051 = vsel %vm1332, %v2045, 0
        %v2054 = vsel %vm1332, %v2046, 0
        %v2057 = vsel %vm1332, %v2044, 0
        %2059 = vmatprep.subr.bf16.mxu0 %v2054
        %2060 = vmatpush1.bf16.msra.mxu0 %v2051
        %2061 = vmatprep.subr.bf16.mxu0 0
        %2062 = vmatpush1.bf16.msra.mxu0 0
        %2063 = vmatprep.subr.bf16.mxu0 0
        %2064 = vmatpush1.bf16.msra.mxu0 0
        %2065 = vmatprep.subr.bf16.mxu0 0
        %2066 = vmatpush1.bf16.msra.mxu0 0
        %2067 = vmatprep.subr.bf16.mxu0 0
        %2068 = vmatpush1.bf16.msra.mxu0 0
        %2069 = vmatprep.subr.bf16.mxu0 0
        %2070 = vmatpush1.bf16.msra.mxu0 0
        %2071 = vmatprep.subr.bf16.mxu0 0
        %2072 = vmatpush1.bf16.msra.mxu0 0
        %2073 = vmatprep.subr.bf16.mxu0 0
        %2074 = vmatpush1.bf16.msra.mxu0 0
        %2075 = vmatprep.subr.bf16.mxu0 0
        %2076 = vmatpush1.bf16.msra.mxu0 0
        %2077 = vmatprep.subr.bf16.mxu0 0
        %2078 = vmatpush1.bf16.msra.mxu0 0
        %2079 = vmatprep.subr.bf16.mxu0 0
        %2080 = vmatpush1.bf16.msra.mxu0 0
        %2081 = vmatprep.subr.bf16.mxu0 0
        %2082 = vmatpush1.bf16.msra.mxu0 0
        %2083 = vmatprep.subr.bf16.mxu0 0
        %2084 = vmatpush1.bf16.msra.mxu0 0
        %2085 = vmatprep.subr.bf16.mxu0 0
        %2086 = vmatpush1.bf16.msra.mxu0 0
        %2087 = vmatprep.subr.bf16.mxu0 0
        %2088 = vmatpush1.bf16.msra.mxu0 0
        %2089 = vmatprep.subr.bf16.mxu0 0
        %2090 = vmatpush1.bf16.msra.mxu0 0
        %2091 = vmatprep.mubr.bf16.mxu0 0
        %2092 = vmatmul.mubr.bf16.gmra.mrb[0].mxu0 %v2048
        %v2093 = vpop.f32.mrb[0].mxu0
        %v2094 = vadd.f32 0.0, %v2093
        %v2095 = vpop.f32.mrb[0].mxu0
        %v2096 = vadd.f32 0.0, %v2095
        %v2097 = vpop.f32.mrb[0].mxu0
        %v2098 = vpop.f32.mrb[0].mxu0
        %2099 = vdwg.mxu0
        %2100 = vmatprep.subr.bf16.mxu0 0
        %2101 = vmatpush1.bf16.msra.mxu0 %v2057
        %2102 = vmatprep.subr.bf16.mxu0 0
        %2103 = vmatpush1.bf16.msra.mxu0 0
        %2104 = vmatprep.subr.bf16.mxu0 0
        %2105 = vmatpush1.bf16.msra.mxu0 0
        %2106 = vmatprep.subr.bf16.mxu0 0
        %2107 = vmatpush1.bf16.msra.mxu0 0
        %2108 = vmatprep.subr.bf16.mxu0 0
        %2109 = vmatpush1.bf16.msra.mxu0 0
        %2110 = vmatprep.subr.bf16.mxu0 0
        %2111 = vmatpush1.bf16.msra.mxu0 0
        %2112 = vmatprep.subr.bf16.mxu0 0
        %2113 = vmatpush1.bf16.msra.mxu0 0
        %2114 = vmatprep.subr.bf16.mxu0 0
        %2115 = vmatpush1.bf16.msra.mxu0 0
        %2116 = vmatprep.subr.bf16.mxu0 0
        %2117 = vmatpush1.bf16.msra.mxu0 0
        %2118 = vmatprep.subr.bf16.mxu0 0
        %2119 = vmatpush1.bf16.msra.mxu0 0
        %2120 = vmatprep.subr.bf16.mxu0 0
        %2121 = vmatpush1.bf16.msra.mxu0 0
        %2122 = vmatprep.subr.bf16.mxu0 0
        %2123 = vmatpush1.bf16.msra.mxu0 0
        %2124 = vmatprep.subr.bf16.mxu0 0
        %2125 = vmatpush1.bf16.msra.mxu0 0
        %2126 = vmatprep.subr.bf16.mxu0 0
        %2127 = vmatpush1.bf16.msra.mxu0 0
        %2128 = vmatprep.subr.bf16.mxu0 0
        %2129 = vmatpush1.bf16.msra.mxu0 0
        %2130 = vmatprep.subr.bf16.mxu0 0
        %2131 = vmatpush1.bf16.msra.mxu0 0
        %2132 = vmatprep.mubr.bf16.mxu0 0
        %2133 = vmatmul.mubr.bf16.gmra.mrb[0].mxu0 %v2048
        %v2134 = vpop.f32.mrb[0].mxu0
        %v2135 = vadd.f32 0.0, %v2134
        %v2136 = vpop.f32.mrb[0].mxu0
        %v2137 = vpop.f32.mrb[0].mxu0
        %v2138 = vpop.f32.mrb[0].mxu0
        %2139 = vdwg.mxu0
        %v2140 = vadd.f32 %v2034, %v2094
        %v2141 = vadd.f32 %v2035, %v2096
        %v2142 = vadd.f32 %v2036, %v2135
        %s2143 = scalar_lea.vmem %s2, 28
        %v2144 = vld [vmem:[%s2143] sm:$0xf]
        %2145 = vrot.lane.b32.xlu0 %v1322, 91
        %v2146 = vpop.permute.xlu0 %2145
        %2147 = vrot.lane.b32.xlu0 %v1317, 91
        %v2148 = vpop.permute.xlu0 %2147
        %2149 = vrot.lane.b32.xlu0 %v1325, 91
        %v2150 = vpop.permute.xlu0 %2149
        %v2151 = vsel %vm1066, %v2146, %v2148
        %v2152 = vsel %vm1066, %v2148, %v2150
        %v2154 = vsel %vm1328, %v2144, 0
        %v2157 = vsel %vm1332, %v2151, 0
        %v2160 = vsel %vm1332, %v2152, 0
        %v2163 = vsel %vm1332, %v2150, 0
        %2165 = vmatprep.subr.bf16.mxu0 %v2160
        %2166 = vmatpush1.bf16.msra.mxu0 %v2157
        %2167 = vmatprep.subr.bf16.mxu0 0
        %2168 = vmatpush1.bf16.msra.mxu0 0
        %2169 = vmatprep.subr.bf16.mxu0 0
        %2170 = vmatpush1.bf16.msra.mxu0 0
        %2171 = vmatprep.subr.bf16.mxu0 0
        %2172 = vmatpush1.bf16.msra.mxu0 0
        %2173 = vmatprep.subr.bf16.mxu0 0
        %2174 = vmatpush1.bf16.msra.mxu0 0
        %2175 = vmatprep.subr.bf16.mxu0 0
        %2176 = vmatpush1.bf16.msra.mxu0 0
        %2177 = vmatprep.subr.bf16.mxu0 0
        %2178 = vmatpush1.bf16.msra.mxu0 0
        %2179 = vmatprep.subr.bf16.mxu0 0
        %2180 = vmatpush1.bf16.msra.mxu0 0
        %2181 = vmatprep.subr.bf16.mxu0 0
        %2182 = vmatpush1.bf16.msra.mxu0 0
        %2183 = vmatprep.subr.bf16.mxu0 0
        %2184 = vmatpush1.bf16.msra.mxu0 0
        %2185 = vmatprep.subr.bf16.mxu0 0
        %2186 = vmatpush1.bf16.msra.mxu0 0
        %2187 = vmatprep.subr.bf16.mxu0 0
        %2188 = vmatpush1.bf16.msra.mxu0 0
        %2189 = vmatprep.subr.bf16.mxu0 0
        %2190 = vmatpush1.bf16.msra.mxu0 0
        %2191 = vmatprep.subr.bf16.mxu0 0
        %2192 = vmatpush1.bf16.msra.mxu0 0
        %2193 = vmatprep.subr.bf16.mxu0 0
        %2194 = vmatpush1.bf16.msra.mxu0 0
        %2195 = vmatprep.subr.bf16.mxu0 0
        %2196 = vmatpush1.bf16.msra.mxu0 0
        %2197 = vmatprep.mubr.bf16.mxu0 0
        %2198 = vmatmul.mubr.bf16.gmra.mrb[0].mxu0 %v2154
        %v2199 = vpop.f32.mrb[0].mxu0
        %v2200 = vadd.f32 0.0, %v2199
        %v2201 = vpop.f32.mrb[0].mxu0
        %v2202 = vadd.f32 0.0, %v2201
        %v2203 = vpop.f32.mrb[0].mxu0
        %v2204 = vpop.f32.mrb[0].mxu0
        %2205 = vdwg.mxu0
        %2206 = vmatprep.subr.bf16.mxu0 0
        %2207 = vmatpush1.bf16.msra.mxu0 %v2163
        %2208 = vmatprep.subr.bf16.mxu0 0
        %2209 = vmatpush1.bf16.msra.mxu0 0
        %2210 = vmatprep.subr.bf16.mxu0 0
        %2211 = vmatpush1.bf16.msra.mxu0 0
        %2212 = vmatprep.subr.bf16.mxu0 0
        %2213 = vmatpush1.bf16.msra.mxu0 0
        %2214 = vmatprep.subr.bf16.mxu0 0
        %2215 = vmatpush1.bf16.msra.mxu0 0
        %2216 = vmatprep.subr.bf16.mxu0 0
        %2217 = vmatpush1.bf16.msra.mxu0 0
        %2218 = vmatprep.subr.bf16.mxu0 0
        %2219 = vmatpush1.bf16.msra.mxu0 0
        %2220 = vmatprep.subr.bf16.mxu0 0
        %2221 = vmatpush1.bf16.msra.mxu0 0
        %2222 = vmatprep.subr.bf16.mxu0 0
        %2223 = vmatpush1.bf16.msra.mxu0 0
        %2224 = vmatprep.subr.bf16.mxu0 0
        %2225 = vmatpush1.bf16.msra.mxu0 0
        %2226 = vmatprep.subr.bf16.mxu0 0
        %2227 = vmatpush1.bf16.msra.mxu0 0
        %2228 = vmatprep.subr.bf16.mxu0 0
        %2229 = vmatpush1.bf16.msra.mxu0 0
        %2230 = vmatprep.subr.bf16.mxu0 0
        %2231 = vmatpush1.bf16.msra.mxu0 0
        %2232 = vmatprep.subr.bf16.mxu0 0
        %2233 = vmatpush1.bf16.msra.mxu0 0
        %2234 = vmatprep.subr.bf16.mxu0 0
        %2235 = vmatpush1.bf16.msra.mxu0 0
        %2236 = vmatprep.subr.bf16.mxu0 0
        %2237 = vmatpush1.bf16.msra.mxu0 0
        %2238 = vmatprep.mubr.bf16.mxu0 0
        %2239 = vmatmul.mubr.bf16.gmra.mrb[0].mxu0 %v2154
        %v2240 = vpop.f32.mrb[0].mxu0
        %v2241 = vadd.f32 0.0, %v2240
        %v2242 = vpop.f32.mrb[0].mxu0
        %v2243 = vpop.f32.mrb[0].mxu0
        %v2244 = vpop.f32.mrb[0].mxu0
        %2245 = vdwg.mxu0
        %v2246 = vadd.f32 %v2140, %v2200
        %v2247 = vadd.f32 %v2141, %v2202
        %v2248 = vadd.f32 %v2142, %v2241
        %s2249 = scalar_lea.vmem %s2, 32
        %v2250 = vld [vmem:[%s2249] sm:$0xf]
        %2251 = vrot.lane.b32.xlu0 %v1322, 90
        %v2252 = vpop.permute.xlu0 %2251
        %2253 = vrot.lane.b32.xlu0 %v1317, 90
        %v2254 = vpop.permute.xlu0 %2253
        %2255 = vrot.lane.b32.xlu0 %v1325, 90
        %v2256 = vpop.permute.xlu0 %2255
        %v2257 = vsel %vm1173, %v2252, %v2254
        %v2258 = vsel %vm1173, %v2254, %v2256
        %v2260 = vsel %vm1328, %v2250, 0
        %v2263 = vsel %vm1332, %v2257, 0
        %v2266 = vsel %vm1332, %v2258, 0
        %v2269 = vsel %vm1332, %v2256, 0
        %2271 = vmatprep.subr.bf16.mxu0 %v2266
        %2272 = vmatpush1.bf16.msra.mxu0 %v2263
        %2273 = vmatprep.subr.bf16.mxu0 0
        %2274 = vmatpush1.bf16.msra.mxu0 0
        %2275 = vmatprep.subr.bf16.mxu0 0
        %2276 = vmatpush1.bf16.msra.mxu0 0
        %2277 = vmatprep.subr.bf16.mxu0 0
        %2278 = vmatpush1.bf16.msra.mxu0 0
        %2279 = vmatprep.subr.bf16.mxu0 0
        %2280 = vmatpush1.bf16.msra.mxu0 0
        %2281 = vmatprep.subr.bf16.mxu0 0
        %2282 = vmatpush1.bf16.msra.mxu0 0
        %2283 = vmatprep.subr.bf16.mxu0 0
        %2284 = vmatpush1.bf16.msra.mxu0 0
        %2285 = vmatprep.subr.bf16.mxu0 0
        %2286 = vmatpush1.bf16.msra.mxu0 0
        %2287 = vmatprep.subr.bf16.mxu0 0
        %2288 = vmatpush1.bf16.msra.mxu0 0
        %2289 = vmatprep.subr.bf16.mxu0 0
        %2290 = vmatpush1.bf16.msra.mxu0 0
        %2291 = vmatprep.subr.bf16.mxu0 0
        %2292 = vmatpush1.bf16.msra.mxu0 0
        %2293 = vmatprep.subr.bf16.mxu0 0
        %2294 = vmatpush1.bf16.msra.mxu0 0
        %2295 = vmatprep.subr.bf16.mxu0 0
        %2296 = vmatpush1.bf16.msra.mxu0 0
        %2297 = vmatprep.subr.bf16.mxu0 0
        %2298 = vmatpush1.bf16.msra.mxu0 0
        %2299 = vmatprep.subr.bf16.mxu0 0
        %2300 = vmatpush1.bf16.msra.mxu0 0
        %2301 = vmatprep.subr.bf16.mxu0 0
        %2302 = vmatpush1.bf16.msra.mxu0 0
        %2303 = vmatprep.mubr.bf16.mxu0 0
        %2304 = vmatmul.mubr.bf16.gmra.mrb[0].mxu0 %v2260
        %v2305 = vpop.f32.mrb[0].mxu0
        %v2306 = vadd.f32 0.0, %v2305
        %v2307 = vpop.f32.mrb[0].mxu0
        %v2308 = vadd.f32 0.0, %v2307
        %v2309 = vpop.f32.mrb[0].mxu0
        %v2310 = vpop.f32.mrb[0].mxu0
        %2311 = vdwg.mxu0
        %2312 = vmatprep.subr.bf16.mxu0 0
        %2313 = vmatpush1.bf16.msra.mxu0 %v2269
        %2314 = vmatprep.subr.bf16.mxu0 0
        %2315 = vmatpush1.bf16.msra.mxu0 0
        %2316 = vmatprep.subr.bf16.mxu0 0
        %2317 = vmatpush1.bf16.msra.mxu0 0
        %2318 = vmatprep.subr.bf16.mxu0 0
        %2319 = vmatpush1.bf16.msra.mxu0 0
        %2320 = vmatprep.subr.bf16.mxu0 0
        %2321 = vmatpush1.bf16.msra.mxu0 0
        %2322 = vmatprep.subr.bf16.mxu0 0
        %2323 = vmatpush1.bf16.msra.mxu0 0
        %2324 = vmatprep.subr.bf16.mxu0 0
        %2325 = vmatpush1.bf16.msra.mxu0 0
        %2326 = vmatprep.subr.bf16.mxu0 0
        %2327 = vmatpush1.bf16.msra.mxu0 0
        %2328 = vmatprep.subr.bf16.mxu0 0
        %2329 = vmatpush1.bf16.msra.mxu0 0
        %2330 = vmatprep.subr.bf16.mxu0 0
        %2331 = vmatpush1.bf16.msra.mxu0 0
        %2332 = vmatprep.subr.bf16.mxu0 0
        %2333 = vmatpush1.bf16.msra.mxu0 0
        %2334 = vmatprep.subr.bf16.mxu0 0
        %2335 = vmatpush1.bf16.msra.mxu0 0
        %2336 = vmatprep.subr.bf16.mxu0 0
        %2337 = vmatpush1.bf16.msra.mxu0 0
        %2338 = vmatprep.subr.bf16.mxu0 0
        %2339 = vmatpush1.bf16.msra.mxu0 0
        %2340 = vmatprep.subr.bf16.mxu0 0
        %2341 = vmatpush1.bf16.msra.mxu0 0
        %2342 = vmatprep.subr.bf16.mxu0 0
        %2343 = vmatpush1.bf16.msra.mxu0 0
        %2344 = vmatprep.mubr.bf16.mxu0 0
        %2345 = vmatmul.mubr.bf16.gmra.mrb[0].mxu0 %v2260
        %v2346 = vpop.f32.mrb[0].mxu0
        %v2347 = vadd.f32 0.0, %v2346
        %v2348 = vpop.f32.mrb[0].mxu0
        %v2349 = vpop.f32.mrb[0].mxu0
        %v2350 = vpop.f32.mrb[0].mxu0
        %2351 = vdwg.mxu0
        %v2352 = vadd.f32 %v2246, %v2306
        %v2353 = vadd.f32 %v2247, %v2308
        %v2354 = vadd.f32 %v2248, %v2347
        %v2355 = vld [vmem:[%s5] sm:$0xff]
        %2357 = vset.pattern.permute.xlu0 0
        %2358 = vperm.xlu0 %2357, %v2355
        %v2359 = vpop.permute.xlu0 %2358
        %v2361 = vadd.f32 %v2352, %v2359
        %v2362 = vadd.f32 %v2353, %v2359
        %v2363 = vadd.f32 %v2354, %v2359
        %v2364 = vld [vmem:[%s7] sm:$0xff]
        %v2365 = vld [vmem:[%s7 + $0x8] sm:$0xff]
        %v2366 = vld [vmem:[%s7 + $0x10] sm:$0x3]
        %vm2367 = vcmask 146432
        %v2369 = vsel %vm2367, %v2361, 0
        %v2372 = vsel %vm339, %v2366, 0
        %2374 = vmatprep.subr.mxu0 0.0
        %2375 = vmatpush1.msra.mxu0 %v2364
        %2376 = vmatprep.subr.mxu0 0.0
        %2377 = vmatpush1.msra.mxu0 %v2365
        %2378 = vmatprep.subr.mxu0 0.0
        %2379 = vmatpush1.msra.mxu0 %v2372
        %2380 = vmatprep.subr.mxu0 0.0
        %2381 = vmatpush1.msra.mxu0 0.0
        %2382 = vmatprep.subr.mxu0 0.0
        %2383 = vmatpush1.msra.mxu0 0.0
        %2384 = vmatprep.subr.mxu0 0.0
        %2385 = vmatpush1.msra.mxu0 0.0
        %2386 = vmatprep.subr.mxu0 0.0
        %2387 = vmatpush1.msra.mxu0 0.0
        %2388 = vmatprep.subr.mxu0 0.0
        %2389 = vmatpush1.msra.mxu0 0.0
        %2390 = vmatprep.subr.mxu0 0.0
        %2391 = vmatpush1.msra.mxu0 0.0
        %2392 = vmatprep.subr.mxu0 0.0
        %2393 = vmatpush1.msra.mxu0 0.0
        %2394 = vmatprep.subr.mxu0 0.0
        %2395 = vmatpush1.msra.mxu0 0.0
        %2396 = vmatprep.subr.mxu0 0.0
        %2397 = vmatpush1.msra.mxu0 0.0
        %2398 = vmatprep.subr.mxu0 0.0
        %2399 = vmatpush1.msra.mxu0 0.0
        %2400 = vmatprep.subr.mxu0 0.0
        %2401 = vmatpush1.msra.mxu0 0.0
        %2402 = vmatprep.subr.mxu0 0.0
        %2403 = vmatpush1.msra.mxu0 0.0
        %2404 = vmatprep.subr.mxu0 0.0
        %2405 = vmatpush1.msra.mxu0 0.0
        %2406 = vmatprep.subr.mxu0 0.0
        %2407 = vmatpush1.msra.mxu0 0.0
        %2408 = vmatprep.subr.mxu0 0.0
        %2409 = vmatpush1.msra.mxu0 0.0
        %2410 = vmatprep.subr.mxu0 0.0
        %2411 = vmatpush1.msra.mxu0 0.0
        %2412 = vmatprep.subr.mxu0 0.0
        %2413 = vmatpush1.msra.mxu0 0.0
        %2414 = vmatprep.subr.mxu0 0.0
        %2415 = vmatpush1.msra.mxu0 0.0
        %2416 = vmatprep.subr.mxu0 0.0
        %2417 = vmatpush1.msra.mxu0 0.0
        %2418 = vmatprep.subr.mxu0 0.0
        %2419 = vmatpush1.msra.mxu0 0.0
        %2420 = vmatprep.subr.mxu0 0.0
        %2421 = vmatpush1.msra.mxu0 0.0
        %2422 = vmatprep.subr.mxu0 0.0
        %2423 = vmatpush1.msra.mxu0 0.0
        %2424 = vmatprep.subr.mxu0 0.0
        %2425 = vmatpush1.msra.mxu0 0.0
        %2426 = vmatprep.subr.mxu0 0.0
        %2427 = vmatpush1.msra.mxu0 0.0
        %2428 = vmatprep.subr.mxu0 0.0
        %2429 = vmatpush1.msra.mxu0 0.0
        %2430 = vmatprep.subr.mxu0 0.0
        %2431 = vmatpush1.msra.mxu0 0.0
        %2432 = vmatprep.subr.mxu0 0.0
        %2433 = vmatpush1.msra.mxu0 0.0
        %2434 = vmatprep.subr.mxu0 0.0
        %2435 = vmatpush1.msra.mxu0 0.0
        %2436 = vmatprep.subr.mxu0 0.0
        %2437 = vmatpush1.msra.mxu0 0.0
        %2438 = vmatprep.mubr.f32.mxu0 0.0
        %2439 = vmatmul.mubr.f32.gmra.mrb[0].mxu0 %v2369
        %v2440 = vpop.f32.mrb[0].mxu0
        %v2441 = vadd.f32 0.0, %v2440
        %v2442 = vpop.f32.mrb[0].mxu0
        %2443 = vdwg.mxu0
        %2444 = vrot.lane.b32.xlu0 %v2361, 110
        %v2445 = vpop.permute.xlu0 %2444
        %v2447 = vadd.f32 %v2361, %v2445
        %2449 = vrot.lane.b32.xlu0 %v2447, 110
        %v2450 = vpop.permute.xlu0 %2449
        %v2451 = vsel %vm2367, %v2450, 0
        %2453 = vmatprep.subr.mxu0 0.0
        %2454 = vmatpush1.msra.mxu0 %v2364
        %2455 = vmatprep.subr.mxu0 0.0
        %2456 = vmatpush1.msra.mxu0 %v2365
        %2457 = vmatprep.subr.mxu0 0.0
        %2458 = vmatpush1.msra.mxu0 %v2372
        %2459 = vmatprep.subr.mxu0 0.0
        %2460 = vmatpush1.msra.mxu0 0.0
        %2461 = vmatprep.subr.mxu0 0.0
        %2462 = vmatpush1.msra.mxu0 0.0
        %2463 = vmatprep.subr.mxu0 0.0
        %2464 = vmatpush1.msra.mxu0 0.0
        %2465 = vmatprep.subr.mxu0 0.0
        %2466 = vmatpush1.msra.mxu0 0.0
        %2467 = vmatprep.subr.mxu0 0.0
        %2468 = vmatpush1.msra.mxu0 0.0
        %2469 = vmatprep.subr.mxu0 0.0
        %2470 = vmatpush1.msra.mxu0 0.0
        %2471 = vmatprep.subr.mxu0 0.0
        %2472 = vmatpush1.msra.mxu0 0.0
        %2473 = vmatprep.subr.mxu0 0.0
        %2474 = vmatpush1.msra.mxu0 0.0
        %2475 = vmatprep.subr.mxu0 0.0
        %2476 = vmatpush1.msra.mxu0 0.0
        %2477 = vmatprep.subr.mxu0 0.0
        %2478 = vmatpush1.msra.mxu0 0.0
        %2479 = vmatprep.subr.mxu0 0.0
        %2480 = vmatpush1.msra.mxu0 0.0
        %2481 = vmatprep.subr.mxu0 0.0
        %2482 = vmatpush1.msra.mxu0 0.0
        %2483 = vmatprep.subr.mxu0 0.0
        %2484 = vmatpush1.msra.mxu0 0.0
        %2485 = vmatprep.subr.mxu0 0.0
        %2486 = vmatpush1.msra.mxu0 0.0
        %2487 = vmatprep.subr.mxu0 0.0
        %2488 = vmatpush1.msra.mxu0 0.0
        %2489 = vmatprep.subr.mxu0 0.0
        %2490 = vmatpush1.msra.mxu0 0.0
        %2491 = vmatprep.subr.mxu0 0.0
        %2492 = vmatpush1.msra.mxu0 0.0
        %2493 = vmatprep.subr.mxu0 0.0
        %2494 = vmatpush1.msra.mxu0 0.0
        %2495 = vmatprep.subr.mxu0 0.0
        %2496 = vmatpush1.msra.mxu0 0.0
        %2497 = vmatprep.subr.mxu0 0.0
        %2498 = vmatpush1.msra.mxu0 0.0
        %2499 = vmatprep.subr.mxu0 0.0
        %2500 = vmatpush1.msra.mxu0 0.0
        %2501 = vmatprep.subr.mxu0 0.0
        %2502 = vmatpush1.msra.mxu0 0.0
        %2503 = vmatprep.subr.mxu0 0.0
        %2504 = vmatpush1.msra.mxu0 0.0
        %2505 = vmatprep.subr.mxu0 0.0
        %2506 = vmatpush1.msra.mxu0 0.0
        %2507 = vmatprep.subr.mxu0 0.0
        %2508 = vmatpush1.msra.mxu0 0.0
        %2509 = vmatprep.subr.mxu0 0.0
        %2510 = vmatpush1.msra.mxu0 0.0
        %2511 = vmatprep.subr.mxu0 0.0
        %2512 = vmatpush1.msra.mxu0 0.0
        %2513 = vmatprep.subr.mxu0 0.0
        %2514 = vmatpush1.msra.mxu0 0.0
        %2515 = vmatprep.subr.mxu0 0.0
        %2516 = vmatpush1.msra.mxu0 0.0
        %2517 = vmatprep.mubr.f32.mxu0 0.0
        %2518 = vmatmul.mubr.f32.gmra.mrb[0].mxu0 %v2451
        %v2519 = vpop.f32.mrb[0].mxu0
        %v2520 = vadd.f32 0.0, %v2519
        %v2521 = vpop.f32.mrb[0].mxu0
        %2522 = vdwg.mxu0
        %2523 = vrot.lane.b32.xlu0 %v2447, 74
        %v2524 = vpop.permute.xlu0 %2523
        %v2525 = vsel %vm2367, %v2524, 0
        %2527 = vmatprep.subr.mxu0 0.0
        %2528 = vmatpush1.msra.mxu0 %v2364
        %2529 = vmatprep.subr.mxu0 0.0
        %2530 = vmatpush1.msra.mxu0 %v2365
        %2531 = vmatprep.subr.mxu0 0.0
        %2532 = vmatpush1.msra.mxu0 %v2372
        %2533 = vmatprep.subr.mxu0 0.0
        %2534 = vmatpush1.msra.mxu0 0.0
        %2535 = vmatprep.subr.mxu0 0.0
        %2536 = vmatpush1.msra.mxu0 0.0
        %2537 = vmatprep.subr.mxu0 0.0
        %2538 = vmatpush1.msra.mxu0 0.0
        %2539 = vmatprep.subr.mxu0 0.0
        %2540 = vmatpush1.msra.mxu0 0.0
        %2541 = vmatprep.subr.mxu0 0.0
        %2542 = vmatpush1.msra.mxu0 0.0
        %2543 = vmatprep.subr.mxu0 0.0
        %2544 = vmatpush1.msra.mxu0 0.0
        %2545 = vmatprep.subr.mxu0 0.0
        %2546 = vmatpush1.msra.mxu0 0.0
        %2547 = vmatprep.subr.mxu0 0.0
        %2548 = vmatpush1.msra.mxu0 0.0
        %2549 = vmatprep.subr.mxu0 0.0
        %2550 = vmatpush1.msra.mxu0 0.0
        %2551 = vmatprep.subr.mxu0 0.0
        %2552 = vmatpush1.msra.mxu0 0.0
        %2553 = vmatprep.subr.mxu0 0.0
        %2554 = vmatpush1.msra.mxu0 0.0
        %2555 = vmatprep.subr.mxu0 0.0
        %2556 = vmatpush1.msra.mxu0 0.0
        %2557 = vmatprep.subr.mxu0 0.0
        %2558 = vmatpush1.msra.mxu0 0.0
        %2559 = vmatprep.subr.mxu0 0.0
        %2560 = vmatpush1.msra.mxu0 0.0
        %2561 = vmatprep.subr.mxu0 0.0
        %2562 = vmatpush1.msra.mxu0 0.0
        %2563 = vmatprep.subr.mxu0 0.0
        %2564 = vmatpush1.msra.mxu0 0.0
        %2565 = vmatprep.subr.mxu0 0.0
        %2566 = vmatpush1.msra.mxu0 0.0
        %2567 = vmatprep.subr.mxu0 0.0
        %2568 = vmatpush1.msra.mxu0 0.0
        %2569 = vmatprep.subr.mxu0 0.0
        %2570 = vmatpush1.msra.mxu0 0.0
        %2571 = vmatprep.subr.mxu0 0.0
        %2572 = vmatpush1.msra.mxu0 0.0
        %2573 = vmatprep.subr.mxu0 0.0
        %2574 = vmatpush1.msra.mxu0 0.0
        %2575 = vmatprep.subr.mxu0 0.0
        %2576 = vmatpush1.msra.mxu0 0.0
        %2577 = vmatprep.subr.mxu0 0.0
        %2578 = vmatpush1.msra.mxu0 0.0
        %2579 = vmatprep.subr.mxu0 0.0
        %2580 = vmatpush1.msra.mxu0 0.0
        %2581 = vmatprep.subr.mxu0 0.0
        %2582 = vmatpush1.msra.mxu0 0.0
        %2583 = vmatprep.subr.mxu0 0.0
        %2584 = vmatpush1.msra.mxu0 0.0
        %2585 = vmatprep.subr.mxu0 0.0
        %2586 = vmatpush1.msra.mxu0 0.0
        %2587 = vmatprep.subr.mxu0 0.0
        %2588 = vmatpush1.msra.mxu0 0.0
        %2589 = vmatprep.subr.mxu0 0.0
        %2590 = vmatpush1.msra.mxu0 0.0
        %2591 = vmatprep.mubr.f32.mxu0 0.0
        %2592 = vmatmul.mubr.f32.gmra.mrb[0].mxu0 %v2525
        %v2593 = vpop.f32.mrb[0].mxu0
        %v2594 = vadd.f32 0.0, %v2593
        %v2595 = vpop.f32.mrb[0].mxu0
        %2596 = vdwg.mxu0
        %2597 = vrot.lane.b32.xlu0 %v2447, 38
        %v2598 = vpop.permute.xlu0 %2597
        %v2599 = vsel %vm2367, %v2598, 0
        %2601 = vmatprep.subr.mxu0 0.0
        %2602 = vmatpush1.msra.mxu0 %v2364
        %2603 = vmatprep.subr.mxu0 0.0
        %2604 = vmatpush1.msra.mxu0 %v2365
        %2605 = vmatprep.subr.mxu0 0.0
        %2606 = vmatpush1.msra.mxu0 %v2372
        %2607 = vmatprep.subr.mxu0 0.0
        %2608 = vmatpush1.msra.mxu0 0.0
        %2609 = vmatprep.subr.mxu0 0.0
        %2610 = vmatpush1.msra.mxu0 0.0
        %2611 = vmatprep.subr.mxu0 0.0
        %2612 = vmatpush1.msra.mxu0 0.0
        %2613 = vmatprep.subr.mxu0 0.0
        %2614 = vmatpush1.msra.mxu0 0.0
        %2615 = vmatprep.subr.mxu0 0.0
        %2616 = vmatpush1.msra.mxu0 0.0
        %2617 = vmatprep.subr.mxu0 0.0
        %2618 = vmatpush1.msra.mxu0 0.0
        %2619 = vmatprep.subr.mxu0 0.0
        %2620 = vmatpush1.msra.mxu0 0.0
        %2621 = vmatprep.subr.mxu0 0.0
        %2622 = vmatpush1.msra.mxu0 0.0
        %2623 = vmatprep.subr.mxu0 0.0
        %2624 = vmatpush1.msra.mxu0 0.0
        %2625 = vmatprep.subr.mxu0 0.0
        %2626 = vmatpush1.msra.mxu0 0.0
        %2627 = vmatprep.subr.mxu0 0.0
        %2628 = vmatpush1.msra.mxu0 0.0
        %2629 = vmatprep.subr.mxu0 0.0
        %2630 = vmatpush1.msra.mxu0 0.0
        %2631 = vmatprep.subr.mxu0 0.0
        %2632 = vmatpush1.msra.mxu0 0.0
        %2633 = vmatprep.subr.mxu0 0.0
        %2634 = vmatpush1.msra.mxu0 0.0
        %2635 = vmatprep.subr.mxu0 0.0
        %2636 = vmatpush1.msra.mxu0 0.0
        %2637 = vmatprep.subr.mxu0 0.0
        %2638 = vmatpush1.msra.mxu0 0.0
        %2639 = vmatprep.subr.mxu0 0.0
        %2640 = vmatpush1.msra.mxu0 0.0
        %2641 = vmatprep.subr.mxu0 0.0
        %2642 = vmatpush1.msra.mxu0 0.0
        %2643 = vmatprep.subr.mxu0 0.0
        %2644 = vmatpush1.msra.mxu0 0.0
        %2645 = vmatprep.subr.mxu0 0.0
        %2646 = vmatpush1.msra.mxu0 0.0
        %2647 = vmatprep.subr.mxu0 0.0
        %2648 = vmatpush1.msra.mxu0 0.0
        %2649 = vmatprep.subr.mxu0 0.0
        %2650 = vmatpush1.msra.mxu0 0.0
        %2651 = vmatprep.subr.mxu0 0.0
        %2652 = vmatpush1.msra.mxu0 0.0
        %2653 = vmatprep.subr.mxu0 0.0
        %2654 = vmatpush1.msra.mxu0 0.0
        %2655 = vmatprep.subr.mxu0 0.0
        %2656 = vmatpush1.msra.mxu0 0.0
        %2657 = vmatprep.subr.mxu0 0.0
        %2658 = vmatpush1.msra.mxu0 0.0
        %2659 = vmatprep.subr.mxu0 0.0
        %2660 = vmatpush1.msra.mxu0 0.0
        %2661 = vmatprep.subr.mxu0 0.0
        %2662 = vmatpush1.msra.mxu0 0.0
        %2663 = vmatprep.subr.mxu0 0.0
        %2664 = vmatpush1.msra.mxu0 0.0
        %2665 = vmatprep.mubr.f32.mxu0 0.0
        %2666 = vmatmul.mubr.f32.gmra.mrb[0].mxu0 %v2599
        %v2667 = vpop.f32.mrb[0].mxu0
        %v2668 = vadd.f32 0.0, %v2667
        %v2669 = vpop.f32.mrb[0].mxu0
        %2670 = vdwg.mxu0
        %2672 = vrot.lane.b32.xlu0 %v2362, 110
        %v2673 = vpop.permute.xlu0 %2672
        %v2675 = vadd.f32 %v2361, %v2673
        %v2676 = vadd.f32 %v2362, %v2673
        %2679 = vrot.lane.b32.xlu0 %v2675, 2
        %v2680 = vpop.permute.xlu0 %2679
        %2681 = vrot.lane.b32.xlu0 %v2676, 2
        %v2682 = vpop.permute.xlu0 %2681
        %vm2683 = vcmask 15360
        %v2684 = vsel %vm2683, %v2680, %v2682
        %v2685 = vsel %vm2367, %v2684, 0
        %2687 = vmatprep.subr.mxu0 0.0
        %2688 = vmatpush1.msra.mxu0 %v2364
        %2689 = vmatprep.subr.mxu0 0.0
        %2690 = vmatpush1.msra.mxu0 %v2365
        %2691 = vmatprep.subr.mxu0 0.0
        %2692 = vmatpush1.msra.mxu0 %v2372
        %2693 = vmatprep.subr.mxu0 0.0
        %2694 = vmatpush1.msra.mxu0 0.0
        %2695 = vmatprep.subr.mxu0 0.0
        %2696 = vmatpush1.msra.mxu0 0.0
        %2697 = vmatprep.subr.mxu0 0.0
        %2698 = vmatpush1.msra.mxu0 0.0
        %2699 = vmatprep.subr.mxu0 0.0
        %2700 = vmatpush1.msra.mxu0 0.0
        %2701 = vmatprep.subr.mxu0 0.0
        %2702 = vmatpush1.msra.mxu0 0.0
        %2703 = vmatprep.subr.mxu0 0.0
        %2704 = vmatpush1.msra.mxu0 0.0
        %2705 = vmatprep.subr.mxu0 0.0
        %2706 = vmatpush1.msra.mxu0 0.0
        %2707 = vmatprep.subr.mxu0 0.0
        %2708 = vmatpush1.msra.mxu0 0.0
        %2709 = vmatprep.subr.mxu0 0.0
        %2710 = vmatpush1.msra.mxu0 0.0
        %2711 = vmatprep.subr.mxu0 0.0
        %2712 = vmatpush1.msra.mxu0 0.0
        %2713 = vmatprep.subr.mxu0 0.0
        %2714 = vmatpush1.msra.mxu0 0.0
        %2715 = vmatprep.subr.mxu0 0.0
        %2716 = vmatpush1.msra.mxu0 0.0
        %2717 = vmatprep.subr.mxu0 0.0
        %2718 = vmatpush1.msra.mxu0 0.0
        %2719 = vmatprep.subr.mxu0 0.0
        %2720 = vmatpush1.msra.mxu0 0.0
        %2721 = vmatprep.subr.mxu0 0.0
        %2722 = vmatpush1.msra.mxu0 0.0
        %2723 = vmatprep.subr.mxu0 0.0
        %2724 = vmatpush1.msra.mxu0 0.0
        %2725 = vmatprep.subr.mxu0 0.0
        %2726 = vmatpush1.msra.mxu0 0.0
        %2727 = vmatprep.subr.mxu0 0.0
        %2728 = vmatpush1.msra.mxu0 0.0
        %2729 = vmatprep.subr.mxu0 0.0
        %2730 = vmatpush1.msra.mxu0 0.0
        %2731 = vmatprep.subr.mxu0 0.0
        %2732 = vmatpush1.msra.mxu0 0.0
        %2733 = vmatprep.subr.mxu0 0.0
        %2734 = vmatpush1.msra.mxu0 0.0
        %2735 = vmatprep.subr.mxu0 0.0
        %2736 = vmatpush1.msra.mxu0 0.0
        %2737 = vmatprep.subr.mxu0 0.0
        %2738 = vmatpush1.msra.mxu0 0.0
        %2739 = vmatprep.subr.mxu0 0.0
        %2740 = vmatpush1.msra.mxu0 0.0
        %2741 = vmatprep.subr.mxu0 0.0
        %2742 = vmatpush1.msra.mxu0 0.0
        %2743 = vmatprep.subr.mxu0 0.0
        %2744 = vmatpush1.msra.mxu0 0.0
        %2745 = vmatprep.subr.mxu0 0.0
        %2746 = vmatpush1.msra.mxu0 0.0
        %2747 = vmatprep.subr.mxu0 0.0
        %2748 = vmatpush1.msra.mxu0 0.0
        %2749 = vmatprep.subr.mxu0 0.0
        %2750 = vmatpush1.msra.mxu0 0.0
        %2751 = vmatprep.mubr.f32.mxu0 0.0
        %2752 = vmatmul.mubr.f32.gmra.mrb[0].mxu0 %v2685
        %v2753 = vpop.f32.mrb[0].mxu0
        %v2754 = vadd.f32 0.0, %v2753
        %v2755 = vpop.f32.mrb[0].mxu0
        %2756 = vdwg.mxu0
        %2757 = vrot.lane.b32.xlu0 %v2676, 94
        %v2758 = vpop.permute.xlu0 %2757
        %v2759 = vsel %vm2367, %v2758, 0
        %2761 = vmatprep.subr.mxu0 0.0
        %2762 = vmatpush1.msra.mxu0 %v2364
        %2763 = vmatprep.subr.mxu0 0.0
        %2764 = vmatpush1.msra.mxu0 %v2365
        %2765 = vmatprep.subr.mxu0 0.0
        %2766 = vmatpush1.msra.mxu0 %v2372
        %2767 = vmatprep.subr.mxu0 0.0
        %2768 = vmatpush1.msra.mxu0 0.0
        %2769 = vmatprep.subr.mxu0 0.0
        %2770 = vmatpush1.msra.mxu0 0.0
        %2771 = vmatprep.subr.mxu0 0.0
        %2772 = vmatpush1.msra.mxu0 0.0
        %2773 = vmatprep.subr.mxu0 0.0
        %2774 = vmatpush1.msra.mxu0 0.0
        %2775 = vmatprep.subr.mxu0 0.0
        %2776 = vmatpush1.msra.mxu0 0.0
        %2777 = vmatprep.subr.mxu0 0.0
        %2778 = vmatpush1.msra.mxu0 0.0
        %2779 = vmatprep.subr.mxu0 0.0
        %2780 = vmatpush1.msra.mxu0 0.0
        %2781 = vmatprep.subr.mxu0 0.0
        %2782 = vmatpush1.msra.mxu0 0.0
        %2783 = vmatprep.subr.mxu0 0.0
        %2784 = vmatpush1.msra.mxu0 0.0
        %2785 = vmatprep.subr.mxu0 0.0
        %2786 = vmatpush1.msra.mxu0 0.0
        %2787 = vmatprep.subr.mxu0 0.0
        %2788 = vmatpush1.msra.mxu0 0.0
        %2789 = vmatprep.subr.mxu0 0.0
        %2790 = vmatpush1.msra.mxu0 0.0
        %2791 = vmatprep.subr.mxu0 0.0
        %2792 = vmatpush1.msra.mxu0 0.0
        %2793 = vmatprep.subr.mxu0 0.0
        %2794 = vmatpush1.msra.mxu0 0.0
        %2795 = vmatprep.subr.mxu0 0.0
        %2796 = vmatpush1.msra.mxu0 0.0
        %2797 = vmatprep.subr.mxu0 0.0
        %2798 = vmatpush1.msra.mxu0 0.0
        %2799 = vmatprep.subr.mxu0 0.0
        %2800 = vmatpush1.msra.mxu0 0.0
        %2801 = vmatprep.subr.mxu0 0.0
        %2802 = vmatpush1.msra.mxu0 0.0
        %2803 = vmatprep.subr.mxu0 0.0
        %2804 = vmatpush1.msra.mxu0 0.0
        %2805 = vmatprep.subr.mxu0 0.0
        %2806 = vmatpush1.msra.mxu0 0.0
        %2807 = vmatprep.subr.mxu0 0.0
        %2808 = vmatpush1.msra.mxu0 0.0
        %2809 = vmatprep.subr.mxu0 0.0
        %2810 = vmatpush1.msra.mxu0 0.0
        %2811 = vmatprep.subr.mxu0 0.0
        %2812 = vmatpush1.msra.mxu0 0.0
        %2813 = vmatprep.subr.mxu0 0.0
        %2814 = vmatpush1.msra.mxu0 0.0
        %2815 = vmatprep.subr.mxu0 0.0
        %2816 = vmatpush1.msra.mxu0 0.0
        %2817 = vmatprep.subr.mxu0 0.0
        %2818 = vmatpush1.msra.mxu0 0.0
        %2819 = vmatprep.subr.mxu0 0.0
        %2820 = vmatpush1.msra.mxu0 0.0
        %2821 = vmatprep.subr.mxu0 0.0
        %2822 = vmatpush1.msra.mxu0 0.0
        %2823 = vmatprep.subr.mxu0 0.0
        %2824 = vmatpush1.msra.mxu0 0.0
        %2825 = vmatprep.mubr.f32.mxu0 0.0
        %2826 = vmatmul.mubr.f32.gmra.mrb[0].mxu0 %v2759
        %v2827 = vpop.f32.mrb[0].mxu0
        %v2828 = vadd.f32 0.0, %v2827
        %v2829 = vpop.f32.mrb[0].mxu0
        %2830 = vdwg.mxu0
        %2831 = vrot.lane.b32.xlu0 %v2676, 58
        %v2832 = vpop.permute.xlu0 %2831
        %v2833 = vsel %vm2367, %v2832, 0
        %2835 = vmatprep.subr.mxu0 0.0
        %2836 = vmatpush1.msra.mxu0 %v2364
        %2837 = vmatprep.subr.mxu0 0.0
        %2838 = vmatpush1.msra.mxu0 %v2365
        %2839 = vmatprep.subr.mxu0 0.0
        %2840 = vmatpush1.msra.mxu0 %v2372
        %2841 = vmatprep.subr.mxu0 0.0
        %2842 = vmatpush1.msra.mxu0 0.0
        %2843 = vmatprep.subr.mxu0 0.0
        %2844 = vmatpush1.msra.mxu0 0.0
        %2845 = vmatprep.subr.mxu0 0.0
        %2846 = vmatpush1.msra.mxu0 0.0
        %2847 = vmatprep.subr.mxu0 0.0
        %2848 = vmatpush1.msra.mxu0 0.0
        %2849 = vmatprep.subr.mxu0 0.0
        %2850 = vmatpush1.msra.mxu0 0.0
        %2851 = vmatprep.subr.mxu0 0.0
        %2852 = vmatpush1.msra.mxu0 0.0
        %2853 = vmatprep.subr.mxu0 0.0
        %2854 = vmatpush1.msra.mxu0 0.0
        %2855 = vmatprep.subr.mxu0 0.0
        %2856 = vmatpush1.msra.mxu0 0.0
        %2857 = vmatprep.subr.mxu0 0.0
        %2858 = vmatpush1.msra.mxu0 0.0
        %2859 = vmatprep.subr.mxu0 0.0
        %2860 = vmatpush1.msra.mxu0 0.0
        %2861 = vmatprep.subr.mxu0 0.0
        %2862 = vmatpush1.msra.mxu0 0.0
        %2863 = vmatprep.subr.mxu0 0.0
        %2864 = vmatpush1.msra.mxu0 0.0
        %2865 = vmatprep.subr.mxu0 0.0
        %2866 = vmatpush1.msra.mxu0 0.0
        %2867 = vmatprep.subr.mxu0 0.0
        %2868 = vmatpush1.msra.mxu0 0.0
        %2869 = vmatprep.subr.mxu0 0.0
        %2870 = vmatpush1.msra.mxu0 0.0
        %2871 = vmatprep.subr.mxu0 0.0
        %2872 = vmatpush1.msra.mxu0 0.0
        %2873 = vmatprep.subr.mxu0 0.0
        %2874 = vmatpush1.msra.mxu0 0.0
        %2875 = vmatprep.subr.mxu0 0.0
        %2876 = vmatpush1.msra.mxu0 0.0
        %2877 = vmatprep.subr.mxu0 0.0
        %2878 = vmatpush1.msra.mxu0 0.0
        %2879 = vmatprep.subr.mxu0 0.0
        %2880 = vmatpush1.msra.mxu0 0.0
        %2881 = vmatprep.subr.mxu0 0.0
        %2882 = vmatpush1.msra.mxu0 0.0
        %2883 = vmatprep.subr.mxu0 0.0
        %2884 = vmatpush1.msra.mxu0 0.0
        %2885 = vmatprep.subr.mxu0 0.0
        %2886 = vmatpush1.msra.mxu0 0.0
        %2887 = vmatprep.subr.mxu0 0.0
        %2888 = vmatpush1.msra.mxu0 0.0
        %2889 = vmatprep.subr.mxu0 0.0
        %2890 = vmatpush1.msra.mxu0 0.0
        %2891 = vmatprep.subr.mxu0 0.0
        %2892 = vmatpush1.msra.mxu0 0.0
        %2893 = vmatprep.subr.mxu0 0.0
        %2894 = vmatpush1.msra.mxu0 0.0
        %2895 = vmatprep.subr.mxu0 0.0
        %2896 = vmatpush1.msra.mxu0 0.0
        %2897 = vmatprep.subr.mxu0 0.0
        %2898 = vmatpush1.msra.mxu0 0.0
        %2899 = vmatprep.mubr.f32.mxu0 0.0
        %2900 = vmatmul.mubr.f32.gmra.mrb[0].mxu0 %v2833
        %v2901 = vpop.f32.mrb[0].mxu0
        %v2902 = vadd.f32 0.0, %v2901
        %v2903 = vpop.f32.mrb[0].mxu0
        %2904 = vdwg.mxu0
        %2906 = vrot.lane.b32.xlu0 %v2363, 110
        %v2907 = vpop.permute.xlu0 %2906
        %vm2908 = vcmask 900096
        %v2909 = vsel %vm2908, %v2673, %v2907
        %v2911 = vadd.f32 %v2362, %v2909
        %2913 = vrot.lane.b32.xlu0 %v2911, 22
        %v2914 = vpop.permute.xlu0 %2913
        %v2915 = vsel %vm2367, %v2914, 0
        %2917 = vmatprep.subr.mxu0 0.0
        %2918 = vmatpush1.msra.mxu0 %v2364
        %2919 = vmatprep.subr.mxu0 0.0
        %2920 = vmatpush1.msra.mxu0 %v2365
        %2921 = vmatprep.subr.mxu0 0.0
        %2922 = vmatpush1.msra.mxu0 %v2372
        %2923 = vmatprep.subr.mxu0 0.0
        %2924 = vmatpush1.msra.mxu0 0.0
        %2925 = vmatprep.subr.mxu0 0.0
        %2926 = vmatpush1.msra.mxu0 0.0
        %2927 = vmatprep.subr.mxu0 0.0
        %2928 = vmatpush1.msra.mxu0 0.0
        %2929 = vmatprep.subr.mxu0 0.0
        %2930 = vmatpush1.msra.mxu0 0.0
        %2931 = vmatprep.subr.mxu0 0.0
        %2932 = vmatpush1.msra.mxu0 0.0
        %2933 = vmatprep.subr.mxu0 0.0
        %2934 = vmatpush1.msra.mxu0 0.0
        %2935 = vmatprep.subr.mxu0 0.0
        %2936 = vmatpush1.msra.mxu0 0.0
        %2937 = vmatprep.subr.mxu0 0.0
        %2938 = vmatpush1.msra.mxu0 0.0
        %2939 = vmatprep.subr.mxu0 0.0
        %2940 = vmatpush1.msra.mxu0 0.0
        %2941 = vmatprep.subr.mxu0 0.0
        %2942 = vmatpush1.msra.mxu0 0.0
        %2943 = vmatprep.subr.mxu0 0.0
        %2944 = vmatpush1.msra.mxu0 0.0
        %2945 = vmatprep.subr.mxu0 0.0
        %2946 = vmatpush1.msra.mxu0 0.0
        %2947 = vmatprep.subr.mxu0 0.0
        %2948 = vmatpush1.msra.mxu0 0.0
        %2949 = vmatprep.subr.mxu0 0.0
        %2950 = vmatpush1.msra.mxu0 0.0
        %2951 = vmatprep.subr.mxu0 0.0
        %2952 = vmatpush1.msra.mxu0 0.0
        %2953 = vmatprep.subr.mxu0 0.0
        %2954 = vmatpush1.msra.mxu0 0.0
        %2955 = vmatprep.subr.mxu0 0.0
        %2956 = vmatpush1.msra.mxu0 0.0
        %2957 = vmatprep.subr.mxu0 0.0
        %2958 = vmatpush1.msra.mxu0 0.0
        %2959 = vmatprep.subr.mxu0 0.0
        %2960 = vmatpush1.msra.mxu0 0.0
        %2961 = vmatprep.subr.mxu0 0.0
        %2962 = vmatpush1.msra.mxu0 0.0
        %2963 = vmatprep.subr.mxu0 0.0
        %2964 = vmatpush1.msra.mxu0 0.0
        %2965 = vmatprep.subr.mxu0 0.0
        %2966 = vmatpush1.msra.mxu0 0.0
        %2967 = vmatprep.subr.mxu0 0.0
        %2968 = vmatpush1.msra.mxu0 0.0
        %2969 = vmatprep.subr.mxu0 0.0
        %2970 = vmatpush1.msra.mxu0 0.0
        %2971 = vmatprep.subr.mxu0 0.0
        %2972 = vmatpush1.msra.mxu0 0.0
        %2973 = vmatprep.subr.mxu0 0.0
        %2974 = vmatpush1.msra.mxu0 0.0
        %2975 = vmatprep.subr.mxu0 0.0
        %2976 = vmatpush1.msra.mxu0 0.0
        %2977 = vmatprep.subr.mxu0 0.0
        %2978 = vmatpush1.msra.mxu0 0.0
        %2979 = vmatprep.subr.mxu0 0.0
        %2980 = vmatpush1.msra.mxu0 0.0
        %2981 = vmatprep.mubr.f32.mxu0 0.0
        %2982 = vmatmul.mubr.f32.gmra.mrb[0].mxu0 %v2915
        %v2983 = vpop.f32.mrb[0].mxu0
        %v2984 = vadd.f32 0.0, %v2983
        %v2985 = vpop.f32.mrb[0].mxu0
        %2986 = vdwg.mxu0
        %2987 = vrot.lane.b32.xlu0 %v2363, 114
        %v2988 = vpop.permute.xlu0 %2987
        %v2989 = vsel %vm2367, %v2988, 0
        %2991 = vmatprep.subr.mxu0 0.0
        %2992 = vmatpush1.msra.mxu0 %v2364
        %2993 = vmatprep.subr.mxu0 0.0
        %2994 = vmatpush1.msra.mxu0 %v2365
        %2995 = vmatprep.subr.mxu0 0.0
        %2996 = vmatpush1.msra.mxu0 %v2372
        %2997 = vmatprep.subr.mxu0 0.0
        %2998 = vmatpush1.msra.mxu0 0.0
        %2999 = vmatprep.subr.mxu0 0.0
        %3000 = vmatpush1.msra.mxu0 0.0
        %3001 = vmatprep.subr.mxu0 0.0
        %3002 = vmatpush1.msra.mxu0 0.0
        %3003 = vmatprep.subr.mxu0 0.0
        %3004 = vmatpush1.msra.mxu0 0.0
        %3005 = vmatprep.subr.mxu0 0.0
        %3006 = vmatpush1.msra.mxu0 0.0
        %3007 = vmatprep.subr.mxu0 0.0
        %3008 = vmatpush1.msra.mxu0 0.0
        %3009 = vmatprep.subr.mxu0 0.0
        %3010 = vmatpush1.msra.mxu0 0.0
        %3011 = vmatprep.subr.mxu0 0.0
        %3012 = vmatpush1.msra.mxu0 0.0
        %3013 = vmatprep.subr.mxu0 0.0
        %3014 = vmatpush1.msra.mxu0 0.0
        %3015 = vmatprep.subr.mxu0 0.0
        %3016 = vmatpush1.msra.mxu0 0.0
        %3017 = vmatprep.subr.mxu0 0.0
        %3018 = vmatpush1.msra.mxu0 0.0
        %3019 = vmatprep.subr.mxu0 0.0
        %3020 = vmatpush1.msra.mxu0 0.0
        %3021 = vmatprep.subr.mxu0 0.0
        %3022 = vmatpush1.msra.mxu0 0.0
        %3023 = vmatprep.subr.mxu0 0.0
        %3024 = vmatpush1.msra.mxu0 0.0
        %3025 = vmatprep.subr.mxu0 0.0
        %3026 = vmatpush1.msra.mxu0 0.0
        %3027 = vmatprep.subr.mxu0 0.0
        %3028 = vmatpush1.msra.mxu0 0.0
        %3029 = vmatprep.subr.mxu0 0.0
        %3030 = vmatpush1.msra.mxu0 0.0
        %3031 = vmatprep.subr.mxu0 0.0
        %3032 = vmatpush1.msra.mxu0 0.0
        %3033 = vmatprep.subr.mxu0 0.0
        %3034 = vmatpush1.msra.mxu0 0.0
        %3035 = vmatprep.subr.mxu0 0.0
        %3036 = vmatpush1.msra.mxu0 0.0
        %3037 = vmatprep.subr.mxu0 0.0
        %3038 = vmatpush1.msra.mxu0 0.0
        %3039 = vmatprep.subr.mxu0 0.0
        %3040 = vmatpush1.msra.mxu0 0.0
        %3041 = vmatprep.subr.mxu0 0.0
        %3042 = vmatpush1.msra.mxu0 0.0
        %3043 = vmatprep.subr.mxu0 0.0
        %3044 = vmatpush1.msra.mxu0 0.0
        %3045 = vmatprep.subr.mxu0 0.0
        %3046 = vmatpush1.msra.mxu0 0.0
        %3047 = vmatprep.subr.mxu0 0.0
        %3048 = vmatpush1.msra.mxu0 0.0
        %3049 = vmatprep.subr.mxu0 0.0
        %3050 = vmatpush1.msra.mxu0 0.0
        %3051 = vmatprep.subr.mxu0 0.0
        %3052 = vmatpush1.msra.mxu0 0.0
        %3053 = vmatprep.subr.mxu0 0.0
        %3054 = vmatpush1.msra.mxu0 0.0
        %3055 = vmatprep.mubr.f32.mxu0 0.0
        %3056 = vmatmul.mubr.f32.gmra.mrb[0].mxu0 %v2989
        %v3057 = vpop.f32.mrb[0].mxu0
        %v3058 = vadd.f32 0.0, %v3057
        %v3059 = vpop.f32.mrb[0].mxu0
        %3060 = vdwg.mxu0
        %3062 = vrot.lane.b32.xlu0 %v2520, 9
        %v3063 = vpop.permute.xlu0 %3062
        %3066 = vrot.lane.b32.xlu0 %v2594, 18
        %v3067 = vpop.permute.xlu0 %3066
        %3070 = vrot.lane.b32.xlu0 %v2668, 27
        %v3071 = vpop.permute.xlu0 %3070
        %3074 = vrot.lane.b32.xlu0 %v2754, 36
        %v3075 = vpop.permute.xlu0 %3074
        %3078 = vrot.lane.b32.xlu0 %v2828, 45
        %v3079 = vpop.permute.xlu0 %3078
        %3082 = vrot.lane.b32.xlu0 %v2902, 54
        %v3083 = vpop.permute.xlu0 %3082
        %3086 = vrot.lane.b32.xlu0 %v2984, 63
        %v3087 = vpop.permute.xlu0 %3086
        %3090 = vrot.lane.b32.xlu0 %v3058, 72
        %v3091 = vpop.permute.xlu0 %3090
        %vm3093 = vcmask 72704
        %v3094 = vsel %vm3093, %v2441, %v3063
        %v3095 = vsel %vm2367, %v3094, %v3067
        %vm3096 = vcmask 220160
        %v3097 = vsel %vm3096, %v3095, %v3071
        %vm3098 = vcmask 293888
        %v3099 = vsel %vm3098, %v3097, %v3075
        %vm3100 = vcmask 367616
        %v3101 = vsel %vm3100, %v3099, %v3079
        %vm3102 = vcmask 441344
        %v3103 = vsel %vm3102, %v3101, %v3083
        %vm3104 = vcmask 515072
        %v3105 = vsel %vm3104, %v3103, %v3087
        %vm3106 = vcmask 588800
        %v3107 = vsel %vm3106, %v3105, %v3091
        %vm3108 = vcmask 662528
        %3109 = vst.msk [vmem:[%s298] sm:$0xff] %vm3108, %v3107
        %s3110 = sand.u32 %s203, 1
        %s3111 = scalar_lea.sflag [#allocation3], %s3110
        %s3112 = sand.u32 %s203, 1
        %s3113 = smul.addr %s3112, 8
        %s3114 = scalar_lea.vmem [#allocation2], %s3113
        // Predicated region
        $region53: #{tpu_custom_call.1} parent=51 // pred_check
          %p3115 = pneg %p213
        $region54: #{tpu_custom_call.1} parent=51 // pred_check_branch
          %3117 = sbr.rel (%p3115) target = $region56
        $region55: #{tpu_custom_call.1} parent=51 // pred_region
          %s3119 = ssub.s32 128, 128
          %3120 = vsyncadd %s3111, %s3119
          %s3121 = smul.addr %s22, 128
          %s3122 = scalar_lea.hbm %s8, %s3121
          %s3124 = sshll.u32 %s3114, 4
          %s3125 = int_to_ptr.vmem [resolvable:$true] %s3124
          %3127 = dma.vmem_to_hbm [thread:$0]  %s3125, 128, %s3122, %s3111
        $region56: #{tpu_custom_call.1} parent=51 // pred_fallthru
          _
      $region52: #{tpu_custom_call.1} parent=5 // pred_fallthru
        _
      %p3128 = scmp.le.s32.totalorder 2, %s17
      // Predicated region
      $region57: #{tpu_custom_call.1} parent=5 // pred_check
        %p3129 = pneg %p3128
      $region58: #{tpu_custom_call.1} parent=5 // pred_check_branch
        %3131 = sbr.rel (%p3129) target = $region60
      $region59: #{tpu_custom_call.1} parent=5 // pred_region
        %s3132 = ssub.s32 %s17, 2
        // Predicated region
        $region61: #{tpu_custom_call.1} parent=59 // pred_check
          %p3133 = pneg %p219
        $region62: #{tpu_custom_call.1} parent=59 // pred_check_branch
          %3135 = sbr.rel (%p3133) target = $region64
        $region63: #{tpu_custom_call.1} parent=59 // pred_region
          %s3136 = sand.u32 %s204, 1
          %s3137 = scalar_lea.sflag [#allocation3], %s3136
          %s3138 = sand.u32 %s204, 1
          %s3139 = smul.addr %s3138, 8
          %s3140 = scalar_lea.vmem [#allocation2], %s3139
          %3141 = dma.done %s3137, 128
        $region64: #{tpu_custom_call.1} parent=59 // pred_fallthru
          _
      $region60: #{tpu_custom_call.1} parent=5 // pred_fallthru
        _
    $region6: #{tpu_custom_call.1} parent=1 // loop_footer
      %s21 = sadd.s32 1, %s17
    $region7: #{tpu_custom_call.1} parent=1 // loop_footer_branch
      %16 = sbr.rel target = $region3
    $region8: #{tpu_custom_call.1} parent=1 // loop_exit
      _
    %3142 = vsyncpa [#allocation3], 1
    %s3143 = scalar_lea.sflag [#allocation3], 1
    %3144 = vsyncpa %s3143, 1

</llo_original>
